<compile_context>
chip_gen: v7x
topology: tpu7x:2x2x1
jax: 0.10.0
libtpu: 0.0.40
codegen_flags: <defaults>
</compile_context>

<pallas_src>
import jax
import jax.numpy as jnp
from jax.experimental import pallas as pl
from jax.experimental.pallas import tpu as pltpu

# ---- static configuration (mirrors the PyTorch `opt`) ----
B = 2            # batch
H = W = 14       # att spatial size (MaxPool2d(14) in ResSeq forces 14x14)
C = 16           # opt.rnn_size
E = 16           # opt.input_encoding_size
NB = 2           # opt.resblock_num
EPS = 1e-9       # CBN2D eps

HP = WP = 16     # halo-padded grid (rows/cols 14,15 are zero halo)
PB = HP * WP     # 256 lanes per batch (= 2 full lane tiles)
NPAD = B * PB    # 512 lanes total (lane-dense)
TAPS = tuple((di, dj) for di in (-1, 0, 1) for dj in (-1, 0, 1))

# const_pack row offsets (all multiples of 8 -> clean sublane slices)
_AB_B1_OFF = 0
_AB_B2_OFF = _AB_B1_OFF + 2 * NB * C        # 64
_LSTM_B_OFF = _AB_B2_OFF + 4 * NB * C       # 192
_BLK_OFF = _LSTM_B_OFF + 4 * C              # 256
_BLK_STRIDE = 5 * C                         # 80 rows of per-block constants
_CONST_ROWS = _BLK_OFF + NB * _BLK_STRIDE   # 416


def _rescore_kernel(attT_ref, state_ref, const_ref,
                    ab_w1T_ref, ab_w2T_ref, c1_wT_ref, c3_wT_ref, lstm_wT_ref,
                    hc_out_ref):
    f32 = jnp.float32

    # Lane classification from an iota: lane = b*256 + i*16 + j (all powers of
    # two -> pure bit ops, no mask DMA, no int div/mod).
    lane = jax.lax.broadcasted_iota(jnp.int32, (1, NPAD), 1)
    pos = lane & (PB - 1)
    valid = ((pos >> 4) < H) & ((pos & (WP - 1)) < W)            # real 14x14 lanes
    batch_masks = [(lane >= b * PB) & (lane < (b + 1) * PB) for b in range(B)]

    def expand_cols(vT):          # per-batch (C, B) values -> (C, NPAD) columns
        out = jnp.broadcast_to(vT[:, 0:1], (C, NPAD))
        for b in range(1, B):
            out = jnp.where(batch_masks[b], vT[:, b:b + 1], out)
        return out

    hT = state_ref[0:C, :]                                       # (C, B)
    cT = state_ref[C:2 * C, :]                                   # (C, B)
    xtT = state_ref[2 * C:2 * C + E, :]                          # (E, B)

    # --- alpha_beta MLPs for all blocks & batches, fused & hoisted ---
    t = jnp.maximum(
        jnp.dot(ab_w1T_ref[...], hT, preferred_element_type=f32)
        + const_ref[_AB_B1_OFF:_AB_B1_OFF + 2 * NB * C, :], 0.0)  # (2*NB*C, B)
    g = (jnp.dot(ab_w2T_ref[...], t, preferred_element_type=f32)
         + const_ref[_AB_B2_OFF:_AB_B2_OFF + 4 * NB * C, :])      # (4*NB*C, B)

    x = attT_ref[...]                                             # (C, NPAD); halo lanes are 0
    for blk in range(NB):                                         # NB=2, unrolled
        gb = blk * 4 * C
        gamma1 = g[gb + 0 * C:gb + 1 * C, :]                      # (C, B)
        beta1 = g[gb + 1 * C:gb + 2 * C, :]
        gamma2 = g[gb + 2 * C:gb + 3 * C, :]
        beta2 = g[gb + 3 * C:gb + 4 * C, :]

        cb = _BLK_OFF + blk * _BLK_STRIDE
        c1_b = const_ref[cb + 0 * C:cb + 1 * C, :]                # (C, 1)
        bn1_miu = const_ref[cb + 1 * C:cb + 2 * C, :]
        bn1_inv = const_ref[cb + 2 * C:cb + 3 * C, :]
        bn2_off = const_ref[cb + 3 * C:cb + 4 * C, :]             # = conv3_b - bn2_miu
        bn2_inv = const_ref[cb + 4 * C:cb + 5 * C, :]

        # --- conv1 (1x1) + ReLU: one lane-dense matmul over all batch pixels ---
        res = jnp.maximum(
            jnp.dot(c1_wT_ref[blk], x, preferred_element_type=f32) + c1_b, 0.0)

        # --- CBN2D #1 (+ReLU): single multiply-add, inv_std folded host-side ---
        s1 = bn1_inv * (gamma1 + 1.0)                             # (C, B)
        xn = jnp.maximum(res * expand_cols(s1)
                         + expand_cols(beta1 - bn1_miu * s1), 0.0)

        # Zero the halo lanes ONCE so every 3x3 tap read below lands either on
        # real data or on a zero (== conv zero padding).  jnp.where, not a
        # multiply: halo lanes may carry junk from the previous block.
        xn = jnp.where(valid, xn, 0.0)

        # --- conv3 (3x3, pad=1): 9 accumulated K=16 matmuls; taps are XLU rolls ---
        # No im2col scratch round-trip; the roll of tap k+1 overlaps the matmul
        # of tap k.  (A/B alternative on v5e/v6e: single fused K=144 matmul.)
        y = None
        for k, (di, dj) in enumerate(TAPS):
            s = di * WP + dj
            shifted = xn if s == 0 else pltpu.roll(xn, (-s) % NPAD, axis=1)
            contrib = jnp.dot(c3_wT_ref[blk * 9 + k], shifted,
                              preferred_element_type=f32)
            y = contrib if y is None else y + contrib             # (C, NPAD)

        # --- CBN2D #2 (conv3 bias folded into shift), residual add, ReLU ---
        s2 = bn2_inv * (gamma2 + 1.0)
        x = jnp.maximum(y * expand_cols(s2)
                        + expand_cols(beta2 + bn2_off * s2) + res, 0.0)

    # --- MaxPool2d(14): per-batch max over the 196 valid lanes -> (C, B) ---
    pooledT = jnp.concatenate(
        [jnp.max(jnp.where(batch_masks[b] & valid, x, -jnp.inf),
                 axis=1, keepdims=True) for b in range(B)], axis=1)

    # --- ResLSTM: one fused matmul over cat([pooled, xt, h]) ---
    zT = jnp.concatenate([pooledT, xtT, hT], axis=0)              # (2C+E, B)
    isum = (jnp.dot(lstm_wT_ref[...], zT, preferred_element_type=f32)
            + const_ref[_LSTM_B_OFF:_LSTM_B_OFF + 4 * C, :])      # (4C, B)
    sig = jax.nn.sigmoid(isum[:3 * C, :])
    in_gate = sig[:C, :]
    out_gate = sig[C:2 * C, :]
    forget_gate = sig[2 * C:3 * C, :]
    in_transform = isum[3 * C:4 * C, :]      # NOTE: no tanh (faithful to ResLSTM source)
    next_c = forget_gate * cT + in_gate * in_transform
    next_h = out_gate * jnp.tanh(next_c)

    hc_out_ref[0:C, :] = next_h              # dropout = identity in eval
    hc_out_ref[C:2 * C, :] = next_c


def init_params(key):
    ks = iter(jax.random.split(key, 24))

    def n(shape):
        return 0.1 * jax.random.normal(next(ks), shape, dtype=jnp.float32)

    return {
        # alpha_beta1 / alpha_beta2 MLPs per resblock (Linear->ReLU->Linear)
        "ab1_w1": n((NB, C, C)), "ab1_b1": n((NB, 1, C)),
        "ab1_w2": n((NB, C, 2 * C)), "ab1_b2": n((NB, 1, 2 * C)),
        "ab2_w1": n((NB, C, C)), "ab2_b1": n((NB, 1, C)),
        "ab2_w2": n((NB, C, 2 * C)), "ab2_b2": n((NB, 1, 2 * C)),
        # conv1 (1x1, stored (Cin, Cout)) and conv3 (3x3, tap-major (NB, 9, Cin, Cout))
        "c1_w": n((NB, C, C)), "c1_b": n((NB, 1, C)),
        "c3_w": n((NB, 9, C, C)), "c3_b": n((NB, 1, C)),
        # CBN2D registered buffers (miu=0, var=1)
        "bn1_miu": jnp.zeros((NB, 1, C), jnp.float32),
        "bn1_var": jnp.ones((NB, 1, C), jnp.float32),
        "bn2_miu": jnp.zeros((NB, 1, C), jnp.float32),
        "bn2_var": jnp.ones((NB, 1, C), jnp.float32),
        # ResLSTM: i2h weight split for cat([conved(C), xt(E)]); stored (in, out)
        "i2h_wc": n((C, 4 * C)), "i2h_wx": n((E, 4 * C)), "i2h_b": n((1, 4 * C)),
        "h2h_w": n((C, 4 * C)), "h2h_b": n((1, 4 * C)),
    }


@jax.jit
def rescore_forward(xt, fc_feats, att_feats, p_att_feats, state, params):
    del fc_feats, p_att_feats                   # unused by ResCore.forward
    f32 = jnp.float32
    p = params

    h_prev = state[0][0].astype(f32)            # (B, C); == state[0][-1] (1-layer state)
    c_prev = state[1][-1].astype(f32)           # (B, C)

    # --- activations, transposed + halo-padded: channels on sublanes,
    #     (batch, 16x16 padded spatial) on exactly 512 lanes ---
    att = att_feats.astype(f32)                                    # (B, 14, 14, C) NHWC
    att_pad = jnp.pad(att, ((0, 0), (0, HP - H), (0, WP - W), (0, 0)))
    attT = att_pad.transpose(3, 0, 1, 2).reshape(C, NPAD)          # (C, 512)

    state_pack = jnp.concatenate(
        [h_prev.T, c_prev.T, xt.astype(f32).T], axis=0)            # (2C+E, B)

    # --- fuse the 2*NB alpha_beta MLPs: stacked layer-1, block-diagonal layer-2 ---
    w1_l, b1_l, w2_l, b2_l = [], [], [], []
    for blk in range(NB):
        for pre in ("ab1", "ab2"):
            w1_l.append(p[pre + "_w1"][blk]); b1_l.append(p[pre + "_b1"][blk])
            w2_l.append(p[pre + "_w2"][blk]); b2_l.append(p[pre + "_b2"][blk])
    ab_w1T = jnp.concatenate(w1_l, axis=1).T                       # (2*NB*C, C)
    ab_b1T = jnp.concatenate(b1_l, axis=1).T                       # (2*NB*C, 1)
    ab_w2T = jax.scipy.linalg.block_diag(*w2_l).T                  # (4*NB*C, 2*NB*C)
    ab_b2T = jnp.concatenate(b2_l, axis=1).T                       # (4*NB*C, 1)

    # --- conv weights: (Cout, Cin) per block / per tap ---
    c1_wT = jnp.transpose(p["c1_w"], (0, 2, 1))                    # (NB, C, C)
    c3_wT = jnp.transpose(p["c3_w"], (0, 1, 3, 2)).reshape(NB * 9, C, C)

    # --- CBN2D constants folded host-side ---
    bn1_inv = 1.0 / jnp.sqrt(p["bn1_var"] + EPS)                   # (NB, 1, C)
    bn2_inv = 1.0 / jnp.sqrt(p["bn2_var"] + EPS)
    bn2_off = p["c3_b"] - p["bn2_miu"]      # conv3 bias folded into CBN2 shift

    # --- ResLSTM: fuse i2h (split for cat([pooled, xt])) and h2h into one matmul ---
    lstm_wT = jnp.concatenate([p["i2h_wc"], p["i2h_wx"], p["h2h_w"]], axis=0).T  # (4C, 2C+E)
    lstm_bT = (p["i2h_b"] + p["h2h_b"]).T                                        # (4C, 1)

    # --- pack every small per-channel constant into ONE column array (1 DMA) ---
    blk_cols = []
    for blk in range(NB):
        blk_cols += [p["c1_b"][blk].T, p["bn1_miu"][blk].T, bn1_inv[blk].T,
                     bn2_off[blk].T, bn2_inv[blk].T]               # each (C, 1)
    const_pack = jnp.concatenate([ab_b1T, ab_b2T, lstm_bT] + blk_cols, axis=0)
    assert const_pack.shape == (_CONST_ROWS, 1)

    inputs = (attT, state_pack, const_pack,
              ab_w1T, ab_w2T, c1_wT, c3_wT, lstm_wT)

    def vmem():
        return pl.BlockSpec(memory_space=pltpu.MemorySpace.VMEM)

    hc = pl.pallas_call(
        _rescore_kernel,
        out_shape=jax.ShapeDtypeStruct((2 * C, B), f32),
        in_specs=[vmem() for _ in inputs],
        out_specs=vmem(),
    )(*inputs)

    next_h = hc[0:C, :].T                                          # (B, C)
    next_c = hc[C:2 * C, :].T
    out = next_h                                                   # dropout = identity (eval)
    return out, (next_h[None], next_c[None])


if __name__ == "__main__":
    key = jax.random.PRNGKey(0)
    k1, k2, k3, k4, k5, k6, kp = jax.random.split(key, 7)
    xt = jax.random.normal(k1, (B, E), jnp.float32)
    fc_feats = jax.random.normal(k2, (B, C), jnp.float32)          # unused in forward
    att_feats = jax.random.normal(k3, (B, H, W, C), jnp.float32)   # NHWC, as fed to ResCore
    p_att_feats = jax.random.normal(k4, (B, H * W, C), jnp.float32)  # unused in forward
    h0 = jax.random.normal(k5, (1, B, C), jnp.float32)
    c0 = jax.random.normal(k6, (1, B, C), jnp.float32)
    state = (h0, c0)
    params = init_params(kp)

    out, new_state = rescore_forward(xt, fc_feats, att_feats, p_att_feats, state, params)
    jax.block_until_ready(out)
    jax.block_until_ready(new_state)
    assert out.shape == (B, C)
    assert new_state[0].shape == (1, B, C) and new_state[1].shape == (1, B, C)
    print("KERNEL_OK")
</pallas_src>

<mosaic_0001>
module attributes {stable_mosaic.version = 11 : i64} {
  func.func @_rescore_kernel(%arg0: memref<16x512xf32, #tpu.memory_space<vmem>>, %arg1: memref<48x2xf32, #tpu.memory_space<vmem>>, %arg2: memref<416x1xf32, #tpu.memory_space<vmem>>, %arg3: memref<64x16xf32, #tpu.memory_space<vmem>>, %arg4: memref<128x64xf32, #tpu.memory_space<vmem>>, %arg5: memref<2x16x16xf32, #tpu.memory_space<vmem>>, %arg6: memref<18x16x16xf32, #tpu.memory_space<vmem>>, %arg7: memref<64x48xf32, #tpu.memory_space<vmem>>, %arg8: memref<32x2xf32, #tpu.memory_space<vmem>>) attributes {dimension_semantics = [], scalar_prefetch = 0 : i64, scratch_operands = 0 : i64, tpu.core_type = #tpu.core_type<tc>} {
    %0 = tpu.iota {dimensions = array<i32: 1>} : vector<1x512xi32>
    %c255_i32 = arith.constant 255 : i32
    %1 = vector.broadcast %c255_i32 : i32 to vector<1x512xi32>
    %2 = arith.andi %0, %1 : vector<1x512xi32>
    %c4_i32 = arith.constant 4 : i32
    %3 = vector.broadcast %c4_i32 : i32 to vector<1x512xi32>
    %4 = arith.shrsi %2, %3 : vector<1x512xi32>
    %c14_i32 = arith.constant 14 : i32
    %5 = vector.broadcast %c14_i32 : i32 to vector<1x512xi32>
    %6 = arith.cmpi slt, %4, %5 : vector<1x512xi32>
    %c15_i32 = arith.constant 15 : i32
    %7 = vector.broadcast %c15_i32 : i32 to vector<1x512xi32>
    %8 = arith.andi %2, %7 : vector<1x512xi32>
    %c14_i32_0 = arith.constant 14 : i32
    %9 = vector.broadcast %c14_i32_0 : i32 to vector<1x512xi32>
    %10 = arith.cmpi slt, %8, %9 : vector<1x512xi32>
    %11 = arith.andi %6, %10 : vector<1x512xi1>
    %c0_i32 = arith.constant 0 : i32
    %12 = vector.broadcast %c0_i32 : i32 to vector<1x512xi32>
    %13 = arith.cmpi sge, %0, %12 : vector<1x512xi32>
    %c256_i32 = arith.constant 256 : i32
    %14 = vector.broadcast %c256_i32 : i32 to vector<1x512xi32>
    %15 = arith.cmpi slt, %0, %14 : vector<1x512xi32>
    %16 = arith.andi %13, %15 : vector<1x512xi1>
    %c256_i32_1 = arith.constant 256 : i32
    %17 = vector.broadcast %c256_i32_1 : i32 to vector<1x512xi32>
    %18 = arith.cmpi sge, %0, %17 : vector<1x512xi32>
    %c512_i32 = arith.constant 512 : i32
    %19 = vector.broadcast %c512_i32 : i32 to vector<1x512xi32>
    %20 = arith.cmpi slt, %0, %19 : vector<1x512xi32>
    %21 = arith.andi %18, %20 : vector<1x512xi1>
    %c0 = arith.constant 0 : index
    %c0_2 = arith.constant 0 : index
    %22 = vector.load %arg1[%c0, %c0_2] : memref<48x2xf32, #tpu.memory_space<vmem>>, vector<16x2xf32>
    %c16 = arith.constant 16 : index
    %c0_3 = arith.constant 0 : index
    %23 = vector.load %arg1[%c16, %c0_3] : memref<48x2xf32, #tpu.memory_space<vmem>>, vector<16x2xf32>
    %c32 = arith.constant 32 : index
    %c0_4 = arith.constant 0 : index
    %24 = vector.load %arg1[%c32, %c0_4] : memref<48x2xf32, #tpu.memory_space<vmem>>, vector<16x2xf32>
    %c0_5 = arith.constant 0 : index
    %c0_6 = arith.constant 0 : index
    %25 = vector.load %arg3[%c0_5, %c0_6] : memref<64x16xf32, #tpu.memory_space<vmem>>, vector<64x16xf32>
    %cst = arith.constant dense<0.000000e+00> : vector<64x2xf32>
    %26 = tpu.matmul %25, %22, %cst {dimension_numbers = #tpu.dot_dimension_numbers<[1], [0], [0], [1], [0, 0, 1, 1], [], []>} : vector<64x16xf32>, vector<16x2xf32>, vector<64x2xf32> -> vector<64x2xf32>
    %c0_7 = arith.constant 0 : index
    %c0_8 = arith.constant 0 : index
    %27 = vector.load %arg2[%c0_7, %c0_8] : memref<416x1xf32, #tpu.memory_space<vmem>>, vector<64x1xf32>
    %28 = vector.broadcast %27 : vector<64x1xf32> to vector<64x2xf32>
    %29 = arith.addf %26, %28 : vector<64x2xf32>
    %cst_9 = arith.constant 0.000000e+00 : f32
    %30 = vector.broadcast %cst_9 : f32 to vector<64x2xf32>
    %31 = arith.maximumf %29, %30 : vector<64x2xf32>
    %c0_10 = arith.constant 0 : index
    %c0_11 = arith.constant 0 : index
    %32 = vector.load %arg4[%c0_10, %c0_11] : memref<128x64xf32, #tpu.memory_space<vmem>>, vector<128x64xf32>
    %cst_12 = arith.constant dense<0.000000e+00> : vector<128x2xf32>
    %33 = tpu.matmul %32, %31, %cst_12 {dimension_numbers = #tpu.dot_dimension_numbers<[1], [0], [0], [1], [0, 0, 1, 1], [], []>} : vector<128x64xf32>, vector<64x2xf32>, vector<128x2xf32> -> vector<128x2xf32>
    %c64 = arith.constant 64 : index
    %c0_13 = arith.constant 0 : index
    %34 = vector.load %arg2[%c64, %c0_13] : memref<416x1xf32, #tpu.memory_space<vmem>>, vector<128x1xf32>
    %35 = vector.broadcast %34 : vector<128x1xf32> to vector<128x2xf32>
    %36 = arith.addf %33, %35 : vector<128x2xf32>
    %c0_14 = arith.constant 0 : index
    %c0_15 = arith.constant 0 : index
    %37 = vector.load %arg0[%c0_14, %c0_15] : memref<16x512xf32, #tpu.memory_space<vmem>>, vector<16x512xf32>
    %38 = vector.extract_strided_slice %36 {offsets = [0, 0], sizes = [16, 2], strides = [1, 1]} : vector<128x2xf32> to vector<16x2xf32>
    %39 = vector.extract_strided_slice %36 {offsets = [16, 0], sizes = [16, 2], strides = [1, 1]} : vector<128x2xf32> to vector<16x2xf32>
    %40 = vector.extract_strided_slice %36 {offsets = [32, 0], sizes = [16, 2], strides = [1, 1]} : vector<128x2xf32> to vector<16x2xf32>
    %41 = vector.extract_strided_slice %36 {offsets = [48, 0], sizes = [16, 2], strides = [1, 1]} : vector<128x2xf32> to vector<16x2xf32>
    %c256 = arith.constant 256 : index
    %c0_16 = arith.constant 0 : index
    %42 = vector.load %arg2[%c256, %c0_16] : memref<416x1xf32, #tpu.memory_space<vmem>>, vector<16x1xf32>
    %c272 = arith.constant 272 : index
    %c0_17 = arith.constant 0 : index
    %43 = vector.load %arg2[%c272, %c0_17] : memref<416x1xf32, #tpu.memory_space<vmem>>, vector<16x1xf32>
    %c288 = arith.constant 288 : index
    %c0_18 = arith.constant 0 : index
    %44 = vector.load %arg2[%c288, %c0_18] : memref<416x1xf32, #tpu.memory_space<vmem>>, vector<16x1xf32>
    %c304 = arith.constant 304 : index
    %c0_19 = arith.constant 0 : index
    %45 = vector.load %arg2[%c304, %c0_19] : memref<416x1xf32, #tpu.memory_space<vmem>>, vector<16x1xf32>
    %c320 = arith.constant 320 : index
    %c0_20 = arith.constant 0 : index
    %46 = vector.load %arg2[%c320, %c0_20] : memref<416x1xf32, #tpu.memory_space<vmem>>, vector<16x1xf32>
    %c0_21 = arith.constant 0 : index
    %c0_22 = arith.constant 0 : index
    %c0_23 = arith.constant 0 : index
    %47 = vector.load %arg5[%c0_21, %c0_22, %c0_23] : memref<2x16x16xf32, #tpu.memory_space<vmem>>, vector<1x16x16xf32>
    %48 = vector.shape_cast %47 : vector<1x16x16xf32> to vector<16x16xf32>
    %cst_24 = arith.constant dense<0.000000e+00> : vector<16x512xf32>
    %49 = tpu.matmul %48, %37, %cst_24 {dimension_numbers = #tpu.dot_dimension_numbers<[1], [0], [0], [1], [0, 0, 1, 1], [], []>} : vector<16x16xf32>, vector<16x512xf32>, vector<16x512xf32> -> vector<16x512xf32>
    %50 = vector.broadcast %42 : vector<16x1xf32> to vector<16x512xf32>
    %51 = arith.addf %49, %50 : vector<16x512xf32>
    %cst_25 = arith.constant 0.000000e+00 : f32
    %52 = vector.broadcast %cst_25 : f32 to vector<16x512xf32>
    %53 = arith.maximumf %51, %52 : vector<16x512xf32>
    %cst_26 = arith.constant 1.000000e+00 : f32
    %54 = vector.broadcast %cst_26 : f32 to vector<16x2xf32>
    %55 = arith.addf %38, %54 : vector<16x2xf32>
    %56 = vector.broadcast %44 : vector<16x1xf32> to vector<16x2xf32>
    %57 = arith.mulf %56, %55 : vector<16x2xf32>
    %58 = vector.extract_strided_slice %57 {offsets = [0, 0], sizes = [16, 1], strides = [1, 1]} : vector<16x2xf32> to vector<16x1xf32>
    %59 = vector.shape_cast %58 : vector<16x1xf32> to vector<16x1xf32>
    %60 = vector.broadcast %59 : vector<16x1xf32> to vector<16x512xf32>
    %61 = vector.extract_strided_slice %57 {offsets = [0, 1], sizes = [16, 1], strides = [1, 1]} : vector<16x2xf32> to vector<16x1xf32>
    %62 = vector.shape_cast %21 : vector<1x512xi1> to vector<1x512xi1>
    %63 = vector.broadcast %62 : vector<1x512xi1> to vector<16x512xi1>
    %64 = vector.shape_cast %61 : vector<16x1xf32> to vector<16x1xf32>
    %65 = vector.broadcast %64 : vector<16x1xf32> to vector<16x512xf32>
    %66 = arith.select %63, %65, %60 : vector<16x512xi1>, vector<16x512xf32>
    %67 = arith.mulf %53, %66 : vector<16x512xf32>
    %68 = vector.broadcast %43 : vector<16x1xf32> to vector<16x2xf32>
    %69 = arith.mulf %68, %57 : vector<16x2xf32>
    %70 = arith.subf %39, %69 : vector<16x2xf32>
    %71 = vector.extract_strided_slice %70 {offsets = [0, 0], sizes = [16, 1], strides = [1, 1]} : vector<16x2xf32> to vector<16x1xf32>
    %72 = vector.shape_cast %71 : vector<16x1xf32> to vector<16x1xf32>
    %73 = vector.broadcast %72 : vector<16x1xf32> to vector<16x512xf32>
    %74 = vector.extract_strided_slice %70 {offsets = [0, 1], sizes = [16, 1], strides = [1, 1]} : vector<16x2xf32> to vector<16x1xf32>
    %75 = vector.shape_cast %21 : vector<1x512xi1> to vector<1x512xi1>
    %76 = vector.broadcast %75 : vector<1x512xi1> to vector<16x512xi1>
    %77 = vector.shape_cast %74 : vector<16x1xf32> to vector<16x1xf32>
    %78 = vector.broadcast %77 : vector<16x1xf32> to vector<16x512xf32>
    %79 = arith.select %76, %78, %73 : vector<16x512xi1>, vector<16x512xf32>
    %80 = arith.addf %67, %79 : vector<16x512xf32>
    %cst_27 = arith.constant 0.000000e+00 : f32
    %81 = vector.broadcast %cst_27 : f32 to vector<16x512xf32>
    %82 = arith.maximumf %80, %81 : vector<16x512xf32>
    %cst_28 = arith.constant 0.000000e+00 : f32
    %83 = vector.shape_cast %11 : vector<1x512xi1> to vector<1x512xi1>
    %84 = vector.broadcast %83 : vector<1x512xi1> to vector<16x512xi1>
    %85 = vector.broadcast %cst_28 : f32 to vector<16x512xf32>
    %86 = arith.select %84, %82, %85 : vector<16x512xi1>, vector<16x512xf32>
    %c17_i32 = arith.constant 17 : i32
    %87 = tpu.dynamic_rotate %86 by %c17_i32 dim 1 : vector<16x512xf32>, i32 -> vector<16x512xf32>
    %c0_29 = arith.constant 0 : index
    %c0_30 = arith.constant 0 : index
    %c0_31 = arith.constant 0 : index
    %88 = vector.load %arg6[%c0_29, %c0_30, %c0_31] : memref<18x16x16xf32, #tpu.memory_space<vmem>>, vector<1x16x16xf32>
    %89 = vector.shape_cast %88 : vector<1x16x16xf32> to vector<16x16xf32>
    %cst_32 = arith.constant dense<0.000000e+00> : vector<16x512xf32>
    %90 = tpu.matmul %89, %87, %cst_32 {dimension_numbers = #tpu.dot_dimension_numbers<[1], [0], [0], [1], [0, 0, 1, 1], [], []>} : vector<16x16xf32>, vector<16x512xf32>, vector<16x512xf32> -> vector<16x512xf32>
    %c16_i32 = arith.constant 16 : i32
    %91 = tpu.dynamic_rotate %86 by %c16_i32 dim 1 : vector<16x512xf32>, i32 -> vector<16x512xf32>
    %c1 = arith.constant 1 : index
    %c0_33 = arith.constant 0 : index
    %c0_34 = arith.constant 0 : index
    %92 = vector.load %arg6[%c1, %c0_33, %c0_34] : memref<18x16x16xf32, #tpu.memory_space<vmem>>, vector<1x16x16xf32>
    %93 = vector.shape_cast %92 : vector<1x16x16xf32> to vector<16x16xf32>
    %cst_35 = arith.constant dense<0.000000e+00> : vector<16x512xf32>
    %94 = tpu.matmul %93, %91, %cst_35 {dimension_numbers = #tpu.dot_dimension_numbers<[1], [0], [0], [1], [0, 0, 1, 1], [], []>} : vector<16x16xf32>, vector<16x512xf32>, vector<16x512xf32> -> vector<16x512xf32>
    %95 = arith.addf %90, %94 : vector<16x512xf32>
    %c15_i32_36 = arith.constant 15 : i32
    %96 = tpu.dynamic_rotate %86 by %c15_i32_36 dim 1 : vector<16x512xf32>, i32 -> vector<16x512xf32>
    %c2 = arith.constant 2 : index
    %c0_37 = arith.constant 0 : index
    %c0_38 = arith.constant 0 : index
    %97 = vector.load %arg6[%c2, %c0_37, %c0_38] : memref<18x16x16xf32, #tpu.memory_space<vmem>>, vector<1x16x16xf32>
    %98 = vector.shape_cast %97 : vector<1x16x16xf32> to vector<16x16xf32>
    %cst_39 = arith.constant dense<0.000000e+00> : vector<16x512xf32>
    %99 = tpu.matmul %98, %96, %cst_39 {dimension_numbers = #tpu.dot_dimension_numbers<[1], [0], [0], [1], [0, 0, 1, 1], [], []>} : vector<16x16xf32>, vector<16x512xf32>, vector<16x512xf32> -> vector<16x512xf32>
    %100 = arith.addf %95, %99 : vector<16x512xf32>
    %c1_i32 = arith.constant 1 : i32
    %101 = tpu.dynamic_rotate %86 by %c1_i32 dim 1 : vector<16x512xf32>, i32 -> vector<16x512xf32>
    %c3 = arith.constant 3 : index
    %c0_40 = arith.constant 0 : index
    %c0_41 = arith.constant 0 : index
    %102 = vector.load %arg6[%c3, %c0_40, %c0_41] : memref<18x16x16xf32, #tpu.memory_space<vmem>>, vector<1x16x16xf32>
    %103 = vector.shape_cast %102 : vector<1x16x16xf32> to vector<16x16xf32>
    %cst_42 = arith.constant dense<0.000000e+00> : vector<16x512xf32>
    %104 = tpu.matmul %103, %101, %cst_42 {dimension_numbers = #tpu.dot_dimension_numbers<[1], [0], [0], [1], [0, 0, 1, 1], [], []>} : vector<16x16xf32>, vector<16x512xf32>, vector<16x512xf32> -> vector<16x512xf32>
    %105 = arith.addf %100, %104 : vector<16x512xf32>
    %c4 = arith.constant 4 : index
    %c0_43 = arith.constant 0 : index
    %c0_44 = arith.constant 0 : index
    %106 = vector.load %arg6[%c4, %c0_43, %c0_44] : memref<18x16x16xf32, #tpu.memory_space<vmem>>, vector<1x16x16xf32>
    %107 = vector.shape_cast %106 : vector<1x16x16xf32> to vector<16x16xf32>
    %cst_45 = arith.constant dense<0.000000e+00> : vector<16x512xf32>
    %108 = tpu.matmul %107, %86, %cst_45 {dimension_numbers = #tpu.dot_dimension_numbers<[1], [0], [0], [1], [0, 0, 1, 1], [], []>} : vector<16x16xf32>, vector<16x512xf32>, vector<16x512xf32> -> vector<16x512xf32>
    %109 = arith.addf %105, %108 : vector<16x512xf32>
    %c511_i32 = arith.constant 511 : i32
    %110 = tpu.dynamic_rotate %86 by %c511_i32 dim 1 : vector<16x512xf32>, i32 -> vector<16x512xf32>
    %c5 = arith.constant 5 : index
    %c0_46 = arith.constant 0 : index
    %c0_47 = arith.constant 0 : index
    %111 = vector.load %arg6[%c5, %c0_46, %c0_47] : memref<18x16x16xf32, #tpu.memory_space<vmem>>, vector<1x16x16xf32>
    %112 = vector.shape_cast %111 : vector<1x16x16xf32> to vector<16x16xf32>
    %cst_48 = arith.constant dense<0.000000e+00> : vector<16x512xf32>
    %113 = tpu.matmul %112, %110, %cst_48 {dimension_numbers = #tpu.dot_dimension_numbers<[1], [0], [0], [1], [0, 0, 1, 1], [], []>} : vector<16x16xf32>, vector<16x512xf32>, vector<16x512xf32> -> vector<16x512xf32>
    %114 = arith.addf %109, %113 : vector<16x512xf32>
    %c497_i32 = arith.constant 497 : i32
    %115 = tpu.dynamic_rotate %86 by %c497_i32 dim 1 : vector<16x512xf32>, i32 -> vector<16x512xf32>
    %c6 = arith.constant 6 : index
    %c0_49 = arith.constant 0 : index
    %c0_50 = arith.constant 0 : index
    %116 = vector.load %arg6[%c6, %c0_49, %c0_50] : memref<18x16x16xf32, #tpu.memory_space<vmem>>, vector<1x16x16xf32>
    %117 = vector.shape_cast %116 : vector<1x16x16xf32> to vector<16x16xf32>
    %cst_51 = arith.constant dense<0.000000e+00> : vector<16x512xf32>
    %118 = tpu.matmul %117, %115, %cst_51 {dimension_numbers = #tpu.dot_dimension_numbers<[1], [0], [0], [1], [0, 0, 1, 1], [], []>} : vector<16x16xf32>, vector<16x512xf32>, vector<16x512xf32> -> vector<16x512xf32>
    %119 = arith.addf %114, %118 : vector<16x512xf32>
    %c496_i32 = arith.constant 496 : i32
    %120 = tpu.dynamic_rotate %86 by %c496_i32 dim 1 : vector<16x512xf32>, i32 -> vector<16x512xf32>
    %c7 = arith.constant 7 : index
    %c0_52 = arith.constant 0 : index
    %c0_53 = arith.constant 0 : index
    %121 = vector.load %arg6[%c7, %c0_52, %c0_53] : memref<18x16x16xf32, #tpu.memory_space<vmem>>, vector<1x16x16xf32>
    %122 = vector.shape_cast %121 : vector<1x16x16xf32> to vector<16x16xf32>
    %cst_54 = arith.constant dense<0.000000e+00> : vector<16x512xf32>
    %123 = tpu.matmul %122, %120, %cst_54 {dimension_numbers = #tpu.dot_dimension_numbers<[1], [0], [0], [1], [0, 0, 1, 1], [], []>} : vector<16x16xf32>, vector<16x512xf32>, vector<16x512xf32> -> vector<16x512xf32>
    %124 = arith.addf %119, %123 : vector<16x512xf32>
    %c495_i32 = arith.constant 495 : i32
    %125 = tpu.dynamic_rotate %86 by %c495_i32 dim 1 : vector<16x512xf32>, i32 -> vector<16x512xf32>
    %c8 = arith.constant 8 : index
    %c0_55 = arith.constant 0 : index
    %c0_56 = arith.constant 0 : index
    %126 = vector.load %arg6[%c8, %c0_55, %c0_56] : memref<18x16x16xf32, #tpu.memory_space<vmem>>, vector<1x16x16xf32>
    %127 = vector.shape_cast %126 : vector<1x16x16xf32> to vector<16x16xf32>
    %cst_57 = arith.constant dense<0.000000e+00> : vector<16x512xf32>
    %128 = tpu.matmul %127, %125, %cst_57 {dimension_numbers = #tpu.dot_dimension_numbers<[1], [0], [0], [1], [0, 0, 1, 1], [], []>} : vector<16x16xf32>, vector<16x512xf32>, vector<16x512xf32> -> vector<16x512xf32>
    %129 = arith.addf %124, %128 : vector<16x512xf32>
    %cst_58 = arith.constant 1.000000e+00 : f32
    %130 = vector.broadcast %cst_58 : f32 to vector<16x2xf32>
    %131 = arith.addf %40, %130 : vector<16x2xf32>
    %132 = vector.broadcast %46 : vector<16x1xf32> to vector<16x2xf32>
    %133 = arith.mulf %132, %131 : vector<16x2xf32>
    %134 = vector.extract_strided_slice %133 {offsets = [0, 0], sizes = [16, 1], strides = [1, 1]} : vector<16x2xf32> to vector<16x1xf32>
    %135 = vector.shape_cast %134 : vector<16x1xf32> to vector<16x1xf32>
    %136 = vector.broadcast %135 : vector<16x1xf32> to vector<16x512xf32>
    %137 = vector.extract_strided_slice %133 {offsets = [0, 1], sizes = [16, 1], strides = [1, 1]} : vector<16x2xf32> to vector<16x1xf32>
    %138 = vector.shape_cast %21 : vector<1x512xi1> to vector<1x512xi1>
    %139 = vector.broadcast %138 : vector<1x512xi1> to vector<16x512xi1>
    %140 = vector.shape_cast %137 : vector<16x1xf32> to vector<16x1xf32>
    %141 = vector.broadcast %140 : vector<16x1xf32> to vector<16x512xf32>
    %142 = arith.select %139, %141, %136 : vector<16x512xi1>, vector<16x512xf32>
    %143 = arith.mulf %129, %142 : vector<16x512xf32>
    %144 = vector.broadcast %45 : vector<16x1xf32> to vector<16x2xf32>
    %145 = arith.mulf %144, %133 : vector<16x2xf32>
    %146 = arith.addf %41, %145 : vector<16x2xf32>
    %147 = vector.extract_strided_slice %146 {offsets = [0, 0], sizes = [16, 1], strides = [1, 1]} : vector<16x2xf32> to vector<16x1xf32>
    %148 = vector.shape_cast %147 : vector<16x1xf32> to vector<16x1xf32>
    %149 = vector.broadcast %148 : vector<16x1xf32> to vector<16x512xf32>
    %150 = vector.extract_strided_slice %146 {offsets = [0, 1], sizes = [16, 1], strides = [1, 1]} : vector<16x2xf32> to vector<16x1xf32>
    %151 = vector.shape_cast %21 : vector<1x512xi1> to vector<1x512xi1>
    %152 = vector.broadcast %151 : vector<1x512xi1> to vector<16x512xi1>
    %153 = vector.shape_cast %150 : vector<16x1xf32> to vector<16x1xf32>
    %154 = vector.broadcast %153 : vector<16x1xf32> to vector<16x512xf32>
    %155 = arith.select %152, %154, %149 : vector<16x512xi1>, vector<16x512xf32>
    %156 = arith.addf %143, %155 : vector<16x512xf32>
    %157 = arith.addf %156, %53 : vector<16x512xf32>
    %cst_59 = arith.constant 0.000000e+00 : f32
    %158 = vector.broadcast %cst_59 : f32 to vector<16x512xf32>
    %159 = arith.maximumf %157, %158 : vector<16x512xf32>
    %160 = vector.extract_strided_slice %36 {offsets = [64, 0], sizes = [16, 2], strides = [1, 1]} : vector<128x2xf32> to vector<16x2xf32>
    %161 = vector.extract_strided_slice %36 {offsets = [80, 0], sizes = [16, 2], strides = [1, 1]} : vector<128x2xf32> to vector<16x2xf32>
    %162 = vector.extract_strided_slice %36 {offsets = [96, 0], sizes = [16, 2], strides = [1, 1]} : vector<128x2xf32> to vector<16x2xf32>
    %163 = vector.extract_strided_slice %36 {offsets = [112, 0], sizes = [16, 2], strides = [1, 1]} : vector<128x2xf32> to vector<16x2xf32>
    %c336 = arith.constant 336 : index
    %c0_60 = arith.constant 0 : index
    %164 = vector.load %arg2[%c336, %c0_60] : memref<416x1xf32, #tpu.memory_space<vmem>>, vector<16x1xf32>
    %c352 = arith.constant 352 : index
    %c0_61 = arith.constant 0 : index
    %165 = vector.load %arg2[%c352, %c0_61] : memref<416x1xf32, #tpu.memory_space<vmem>>, vector<16x1xf32>
    %c368 = arith.constant 368 : index
    %c0_62 = arith.constant 0 : index
    %166 = vector.load %arg2[%c368, %c0_62] : memref<416x1xf32, #tpu.memory_space<vmem>>, vector<16x1xf32>
    %c384 = arith.constant 384 : index
    %c0_63 = arith.constant 0 : index
    %167 = vector.load %arg2[%c384, %c0_63] : memref<416x1xf32, #tpu.memory_space<vmem>>, vector<16x1xf32>
    %c400 = arith.constant 400 : index
    %c0_64 = arith.constant 0 : index
    %168 = vector.load %arg2[%c400, %c0_64] : memref<416x1xf32, #tpu.memory_space<vmem>>, vector<16x1xf32>
    %c1_65 = arith.constant 1 : index
    %c0_66 = arith.constant 0 : index
    %c0_67 = arith.constant 0 : index
    %169 = vector.load %arg5[%c1_65, %c0_66, %c0_67] : memref<2x16x16xf32, #tpu.memory_space<vmem>>, vector<1x16x16xf32>
    %170 = vector.shape_cast %169 : vector<1x16x16xf32> to vector<16x16xf32>
    %cst_68 = arith.constant dense<0.000000e+00> : vector<16x512xf32>
    %171 = tpu.matmul %170, %159, %cst_68 {dimension_numbers = #tpu.dot_dimension_numbers<[1], [0], [0], [1], [0, 0, 1, 1], [], []>} : vector<16x16xf32>, vector<16x512xf32>, vector<16x512xf32> -> vector<16x512xf32>
    %172 = vector.broadcast %164 : vector<16x1xf32> to vector<16x512xf32>
    %173 = arith.addf %171, %172 : vector<16x512xf32>
    %cst_69 = arith.constant 0.000000e+00 : f32
    %174 = vector.broadcast %cst_69 : f32 to vector<16x512xf32>
    %175 = arith.maximumf %173, %174 : vector<16x512xf32>
    %cst_70 = arith.constant 1.000000e+00 : f32
    %176 = vector.broadcast %cst_70 : f32 to vector<16x2xf32>
    %177 = arith.addf %160, %176 : vector<16x2xf32>
    %178 = vector.broadcast %166 : vector<16x1xf32> to vector<16x2xf32>
    %179 = arith.mulf %178, %177 : vector<16x2xf32>
    %180 = vector.extract_strided_slice %179 {offsets = [0, 0], sizes = [16, 1], strides = [1, 1]} : vector<16x2xf32> to vector<16x1xf32>
    %181 = vector.shape_cast %180 : vector<16x1xf32> to vector<16x1xf32>
    %182 = vector.broadcast %181 : vector<16x1xf32> to vector<16x512xf32>
    %183 = vector.extract_strided_slice %179 {offsets = [0, 1], sizes = [16, 1], strides = [1, 1]} : vector<16x2xf32> to vector<16x1xf32>
    %184 = vector.shape_cast %21 : vector<1x512xi1> to vector<1x512xi1>
    %185 = vector.broadcast %184 : vector<1x512xi1> to vector<16x512xi1>
    %186 = vector.shape_cast %183 : vector<16x1xf32> to vector<16x1xf32>
    %187 = vector.broadcast %186 : vector<16x1xf32> to vector<16x512xf32>
    %188 = arith.select %185, %187, %182 : vector<16x512xi1>, vector<16x512xf32>
    %189 = arith.mulf %175, %188 : vector<16x512xf32>
    %190 = vector.broadcast %165 : vector<16x1xf32> to vector<16x2xf32>
    %191 = arith.mulf %190, %179 : vector<16x2xf32>
    %192 = arith.subf %161, %191 : vector<16x2xf32>
    %193 = vector.extract_strided_slice %192 {offsets = [0, 0], sizes = [16, 1], strides = [1, 1]} : vector<16x2xf32> to vector<16x1xf32>
    %194 = vector.shape_cast %193 : vector<16x1xf32> to vector<16x1xf32>
    %195 = vector.broadcast %194 : vector<16x1xf32> to vector<16x512xf32>
    %196 = vector.extract_strided_slice %192 {offsets = [0, 1], sizes = [16, 1], strides = [1, 1]} : vector<16x2xf32> to vector<16x1xf32>
    %197 = vector.shape_cast %21 : vector<1x512xi1> to vector<1x512xi1>
    %198 = vector.broadcast %197 : vector<1x512xi1> to vector<16x512xi1>
    %199 = vector.shape_cast %196 : vector<16x1xf32> to vector<16x1xf32>
    %200 = vector.broadcast %199 : vector<16x1xf32> to vector<16x512xf32>
    %201 = arith.select %198, %200, %195 : vector<16x512xi1>, vector<16x512xf32>
    %202 = arith.addf %189, %201 : vector<16x512xf32>
    %cst_71 = arith.constant 0.000000e+00 : f32
    %203 = vector.broadcast %cst_71 : f32 to vector<16x512xf32>
    %204 = arith.maximumf %202, %203 : vector<16x512xf32>
    %cst_72 = arith.constant 0.000000e+00 : f32
    %205 = vector.shape_cast %11 : vector<1x512xi1> to vector<1x512xi1>
    %206 = vector.broadcast %205 : vector<1x512xi1> to vector<16x512xi1>
    %207 = vector.broadcast %cst_72 : f32 to vector<16x512xf32>
    %208 = arith.select %206, %204, %207 : vector<16x512xi1>, vector<16x512xf32>
    %c17_i32_73 = arith.constant 17 : i32
    %209 = tpu.dynamic_rotate %208 by %c17_i32_73 dim 1 : vector<16x512xf32>, i32 -> vector<16x512xf32>
    %c9 = arith.constant 9 : index
    %c0_74 = arith.constant 0 : index
    %c0_75 = arith.constant 0 : index
    %210 = vector.load %arg6[%c9, %c0_74, %c0_75] : memref<18x16x16xf32, #tpu.memory_space<vmem>>, vector<1x16x16xf32>
    %211 = vector.shape_cast %210 : vector<1x16x16xf32> to vector<16x16xf32>
    %cst_76 = arith.constant dense<0.000000e+00> : vector<16x512xf32>
    %212 = tpu.matmul %211, %209, %cst_76 {dimension_numbers = #tpu.dot_dimension_numbers<[1], [0], [0], [1], [0, 0, 1, 1], [], []>} : vector<16x16xf32>, vector<16x512xf32>, vector<16x512xf32> -> vector<16x512xf32>
    %c16_i32_77 = arith.constant 16 : i32
    %213 = tpu.dynamic_rotate %208 by %c16_i32_77 dim 1 : vector<16x512xf32>, i32 -> vector<16x512xf32>
    %c10 = arith.constant 10 : index
    %c0_78 = arith.constant 0 : index
    %c0_79 = arith.constant 0 : index
    %214 = vector.load %arg6[%c10, %c0_78, %c0_79] : memref<18x16x16xf32, #tpu.memory_space<vmem>>, vector<1x16x16xf32>
    %215 = vector.shape_cast %214 : vector<1x16x16xf32> to vector<16x16xf32>
    %cst_80 = arith.constant dense<0.000000e+00> : vector<16x512xf32>
    %216 = tpu.matmul %215, %213, %cst_80 {dimension_numbers = #tpu.dot_dimension_numbers<[1], [0], [0], [1], [0, 0, 1, 1], [], []>} : vector<16x16xf32>, vector<16x512xf32>, vector<16x512xf32> -> vector<16x512xf32>
    %217 = arith.addf %212, %216 : vector<16x512xf32>
    %c15_i32_81 = arith.constant 15 : i32
    %218 = tpu.dynamic_rotate %208 by %c15_i32_81 dim 1 : vector<16x512xf32>, i32 -> vector<16x512xf32>
    %c11 = arith.constant 11 : index
    %c0_82 = arith.constant 0 : index
    %c0_83 = arith.constant 0 : index
    %219 = vector.load %arg6[%c11, %c0_82, %c0_83] : memref<18x16x16xf32, #tpu.memory_space<vmem>>, vector<1x16x16xf32>
    %220 = vector.shape_cast %219 : vector<1x16x16xf32> to vector<16x16xf32>
    %cst_84 = arith.constant dense<0.000000e+00> : vector<16x512xf32>
    %221 = tpu.matmul %220, %218, %cst_84 {dimension_numbers = #tpu.dot_dimension_numbers<[1], [0], [0], [1], [0, 0, 1, 1], [], []>} : vector<16x16xf32>, vector<16x512xf32>, vector<16x512xf32> -> vector<16x512xf32>
    %222 = arith.addf %217, %221 : vector<16x512xf32>
    %c1_i32_85 = arith.constant 1 : i32
    %223 = tpu.dynamic_rotate %208 by %c1_i32_85 dim 1 : vector<16x512xf32>, i32 -> vector<16x512xf32>
    %c12 = arith.constant 12 : index
    %c0_86 = arith.constant 0 : index
    %c0_87 = arith.constant 0 : index
    %224 = vector.load %arg6[%c12, %c0_86, %c0_87] : memref<18x16x16xf32, #tpu.memory_space<vmem>>, vector<1x16x16xf32>
    %225 = vector.shape_cast %224 : vector<1x16x16xf32> to vector<16x16xf32>
    %cst_88 = arith.constant dense<0.000000e+00> : vector<16x512xf32>
    %226 = tpu.matmul %225, %223, %cst_88 {dimension_numbers = #tpu.dot_dimension_numbers<[1], [0], [0], [1], [0, 0, 1, 1], [], []>} : vector<16x16xf32>, vector<16x512xf32>, vector<16x512xf32> -> vector<16x512xf32>
    %227 = arith.addf %222, %226 : vector<16x512xf32>
    %c13 = arith.constant 13 : index
    %c0_89 = arith.constant 0 : index
    %c0_90 = arith.constant 0 : index
    %228 = vector.load %arg6[%c13, %c0_89, %c0_90] : memref<18x16x16xf32, #tpu.memory_space<vmem>>, vector<1x16x16xf32>
    %229 = vector.shape_cast %228 : vector<1x16x16xf32> to vector<16x16xf32>
    %cst_91 = arith.constant dense<0.000000e+00> : vector<16x512xf32>
    %230 = tpu.matmul %229, %208, %cst_91 {dimension_numbers = #tpu.dot_dimension_numbers<[1], [0], [0], [1], [0, 0, 1, 1], [], []>} : vector<16x16xf32>, vector<16x512xf32>, vector<16x512xf32> -> vector<16x512xf32>
    %231 = arith.addf %227, %230 : vector<16x512xf32>
    %c511_i32_92 = arith.constant 511 : i32
    %232 = tpu.dynamic_rotate %208 by %c511_i32_92 dim 1 : vector<16x512xf32>, i32 -> vector<16x512xf32>
    %c14 = arith.constant 14 : index
    %c0_93 = arith.constant 0 : index
    %c0_94 = arith.constant 0 : index
    %233 = vector.load %arg6[%c14, %c0_93, %c0_94] : memref<18x16x16xf32, #tpu.memory_space<vmem>>, vector<1x16x16xf32>
    %234 = vector.shape_cast %233 : vector<1x16x16xf32> to vector<16x16xf32>
    %cst_95 = arith.constant dense<0.000000e+00> : vector<16x512xf32>
    %235 = tpu.matmul %234, %232, %cst_95 {dimension_numbers = #tpu.dot_dimension_numbers<[1], [0], [0], [1], [0, 0, 1, 1], [], []>} : vector<16x16xf32>, vector<16x512xf32>, vector<16x512xf32> -> vector<16x512xf32>
    %236 = arith.addf %231, %235 : vector<16x512xf32>
    %c497_i32_96 = arith.constant 497 : i32
    %237 = tpu.dynamic_rotate %208 by %c497_i32_96 dim 1 : vector<16x512xf32>, i32 -> vector<16x512xf32>
    %c15 = arith.constant 15 : index
    %c0_97 = arith.constant 0 : index
    %c0_98 = arith.constant 0 : index
    %238 = vector.load %arg6[%c15, %c0_97, %c0_98] : memref<18x16x16xf32, #tpu.memory_space<vmem>>, vector<1x16x16xf32>
    %239 = vector.shape_cast %238 : vector<1x16x16xf32> to vector<16x16xf32>
    %cst_99 = arith.constant dense<0.000000e+00> : vector<16x512xf32>
    %240 = tpu.matmul %239, %237, %cst_99 {dimension_numbers = #tpu.dot_dimension_numbers<[1], [0], [0], [1], [0, 0, 1, 1], [], []>} : vector<16x16xf32>, vector<16x512xf32>, vector<16x512xf32> -> vector<16x512xf32>
    %241 = arith.addf %236, %240 : vector<16x512xf32>
    %c496_i32_100 = arith.constant 496 : i32
    %242 = tpu.dynamic_rotate %208 by %c496_i32_100 dim 1 : vector<16x512xf32>, i32 -> vector<16x512xf32>
    %c16_101 = arith.constant 16 : index
    %c0_102 = arith.constant 0 : index
    %c0_103 = arith.constant 0 : index
    %243 = vector.load %arg6[%c16_101, %c0_102, %c0_103] : memref<18x16x16xf32, #tpu.memory_space<vmem>>, vector<1x16x16xf32>
    %244 = vector.shape_cast %243 : vector<1x16x16xf32> to vector<16x16xf32>
    %cst_104 = arith.constant dense<0.000000e+00> : vector<16x512xf32>
    %245 = tpu.matmul %244, %242, %cst_104 {dimension_numbers = #tpu.dot_dimension_numbers<[1], [0], [0], [1], [0, 0, 1, 1], [], []>} : vector<16x16xf32>, vector<16x512xf32>, vector<16x512xf32> -> vector<16x512xf32>
    %246 = arith.addf %241, %245 : vector<16x512xf32>
    %c495_i32_105 = arith.constant 495 : i32
    %247 = tpu.dynamic_rotate %208 by %c495_i32_105 dim 1 : vector<16x512xf32>, i32 -> vector<16x512xf32>
    %c17 = arith.constant 17 : index
    %c0_106 = arith.constant 0 : index
    %c0_107 = arith.constant 0 : index
    %248 = vector.load %arg6[%c17, %c0_106, %c0_107] : memref<18x16x16xf32, #tpu.memory_space<vmem>>, vector<1x16x16xf32>
    %249 = vector.shape_cast %248 : vector<1x16x16xf32> to vector<16x16xf32>
    %cst_108 = arith.constant dense<0.000000e+00> : vector<16x512xf32>
    %250 = tpu.matmul %249, %247, %cst_108 {dimension_numbers = #tpu.dot_dimension_numbers<[1], [0], [0], [1], [0, 0, 1, 1], [], []>} : vector<16x16xf32>, vector<16x512xf32>, vector<16x512xf32> -> vector<16x512xf32>
    %251 = arith.addf %246, %250 : vector<16x512xf32>
    %cst_109 = arith.constant 1.000000e+00 : f32
    %252 = vector.broadcast %cst_109 : f32 to vector<16x2xf32>
    %253 = arith.addf %162, %252 : vector<16x2xf32>
    %254 = vector.broadcast %168 : vector<16x1xf32> to vector<16x2xf32>
    %255 = arith.mulf %254, %253 : vector<16x2xf32>
    %256 = vector.extract_strided_slice %255 {offsets = [0, 0], sizes = [16, 1], strides = [1, 1]} : vector<16x2xf32> to vector<16x1xf32>
    %257 = vector.shape_cast %256 : vector<16x1xf32> to vector<16x1xf32>
    %258 = vector.broadcast %257 : vector<16x1xf32> to vector<16x512xf32>
    %259 = vector.extract_strided_slice %255 {offsets = [0, 1], sizes = [16, 1], strides = [1, 1]} : vector<16x2xf32> to vector<16x1xf32>
    %260 = vector.shape_cast %21 : vector<1x512xi1> to vector<1x512xi1>
    %261 = vector.broadcast %260 : vector<1x512xi1> to vector<16x512xi1>
    %262 = vector.shape_cast %259 : vector<16x1xf32> to vector<16x1xf32>
    %263 = vector.broadcast %262 : vector<16x1xf32> to vector<16x512xf32>
    %264 = arith.select %261, %263, %258 : vector<16x512xi1>, vector<16x512xf32>
    %265 = arith.mulf %251, %264 : vector<16x512xf32>
    %266 = vector.broadcast %167 : vector<16x1xf32> to vector<16x2xf32>
    %267 = arith.mulf %266, %255 : vector<16x2xf32>
    %268 = arith.addf %163, %267 : vector<16x2xf32>
    %269 = vector.extract_strided_slice %268 {offsets = [0, 0], sizes = [16, 1], strides = [1, 1]} : vector<16x2xf32> to vector<16x1xf32>
    %270 = vector.shape_cast %269 : vector<16x1xf32> to vector<16x1xf32>
    %271 = vector.broadcast %270 : vector<16x1xf32> to vector<16x512xf32>
    %272 = vector.extract_strided_slice %268 {offsets = [0, 1], sizes = [16, 1], strides = [1, 1]} : vector<16x2xf32> to vector<16x1xf32>
    %273 = vector.shape_cast %21 : vector<1x512xi1> to vector<1x512xi1>
    %274 = vector.broadcast %273 : vector<1x512xi1> to vector<16x512xi1>
    %275 = vector.shape_cast %272 : vector<16x1xf32> to vector<16x1xf32>
    %276 = vector.broadcast %275 : vector<16x1xf32> to vector<16x512xf32>
    %277 = arith.select %274, %276, %271 : vector<16x512xi1>, vector<16x512xf32>
    %278 = arith.addf %265, %277 : vector<16x512xf32>
    %279 = arith.addf %278, %175 : vector<16x512xf32>
    %cst_110 = arith.constant 0.000000e+00 : f32
    %280 = vector.broadcast %cst_110 : f32 to vector<16x512xf32>
    %281 = arith.maximumf %279, %280 : vector<16x512xf32>
    %282 = arith.andi %16, %11 : vector<1x512xi1>
    %cst_111 = arith.constant 0xFF800000 : f32
    %283 = vector.shape_cast %282 : vector<1x512xi1> to vector<1x512xi1>
    %284 = vector.broadcast %283 : vector<1x512xi1> to vector<16x512xi1>
    %285 = vector.broadcast %cst_111 : f32 to vector<16x512xf32>
    %286 = arith.select %284, %281, %285 : vector<16x512xi1>, vector<16x512xf32>
    %cst_112 = arith.constant dense<0xFF800000> : vector<16xf32>
    %287 = vector.multi_reduction <maximumf>, %286, %cst_112 [1] : vector<16x512xf32> to vector<16xf32>
    %288 = vector.shape_cast %287 : vector<16xf32> to vector<16x1xf32>
    %289 = arith.andi %21, %11 : vector<1x512xi1>
    %cst_113 = arith.constant 0xFF800000 : f32
    %290 = vector.shape_cast %289 : vector<1x512xi1> to vector<1x512xi1>
    %291 = vector.broadcast %290 : vector<1x512xi1> to vector<16x512xi1>
    %292 = vector.broadcast %cst_113 : f32 to vector<16x512xf32>
    %293 = arith.select %291, %281, %292 : vector<16x512xi1>, vector<16x512xf32>
    %cst_114 = arith.constant dense<0xFF800000> : vector<16xf32>
    %294 = vector.multi_reduction <maximumf>, %293, %cst_114 [1] : vector<16x512xf32> to vector<16xf32>
    %295 = vector.shape_cast %294 : vector<16xf32> to vector<16x1xf32>
    %296 = tpu.concatenate %288, %295 in 1 : vector<16x1xf32>, vector<16x1xf32> -> vector<16x2xf32>
    %297 = tpu.concatenate %296, %24, %22 in 0 : vector<16x2xf32>, vector<16x2xf32>, vector<16x2xf32> -> vector<48x2xf32>
    %c0_115 = arith.constant 0 : index
    %c0_116 = arith.constant 0 : index
    %298 = vector.load %arg7[%c0_115, %c0_116] : memref<64x48xf32, #tpu.memory_space<vmem>>, vector<64x48xf32>
    %cst_117 = arith.constant dense<0.000000e+00> : vector<64x2xf32>
    %299 = tpu.matmul %298, %297, %cst_117 {dimension_numbers = #tpu.dot_dimension_numbers<[1], [0], [0], [1], [0, 0, 1, 1], [], []>} : vector<64x48xf32>, vector<48x2xf32>, vector<64x2xf32> -> vector<64x2xf32>
    %c192 = arith.constant 192 : index
    %c0_118 = arith.constant 0 : index
    %300 = vector.load %arg2[%c192, %c0_118] : memref<416x1xf32, #tpu.memory_space<vmem>>, vector<64x1xf32>
    %301 = vector.broadcast %300 : vector<64x1xf32> to vector<64x2xf32>
    %302 = arith.addf %299, %301 : vector<64x2xf32>
    %303 = vector.extract_strided_slice %302 {offsets = [0, 0], sizes = [48, 2], strides = [1, 1]} : vector<64x2xf32> to vector<48x2xf32>
    %304 = arith.negf %303 : vector<48x2xf32>
    %305 = math.exp %304 : vector<48x2xf32>
    %cst_119 = arith.constant 1.000000e+00 : f32
    %306 = vector.broadcast %cst_119 : f32 to vector<48x2xf32>
    %307 = arith.addf %306, %305 : vector<48x2xf32>
    %308 = arith.divf %306, %307 : vector<48x2xf32>
    %309 = vector.extract_strided_slice %308 {offsets = [0, 0], sizes = [16, 2], strides = [1, 1]} : vector<48x2xf32> to vector<16x2xf32>
    %310 = vector.extract_strided_slice %308 {offsets = [16, 0], sizes = [16, 2], strides = [1, 1]} : vector<48x2xf32> to vector<16x2xf32>
    %311 = vector.extract_strided_slice %308 {offsets = [32, 0], sizes = [16, 2], strides = [1, 1]} : vector<48x2xf32> to vector<16x2xf32>
    %312 = vector.extract_strided_slice %302 {offsets = [48, 0], sizes = [16, 2], strides = [1, 1]} : vector<64x2xf32> to vector<16x2xf32>
    %313 = arith.mulf %311, %23 : vector<16x2xf32>
    %314 = arith.mulf %309, %312 : vector<16x2xf32>
    %315 = arith.addf %313, %314 : vector<16x2xf32>
    %316 = math.tanh %315 : vector<16x2xf32>
    %317 = arith.mulf %310, %316 : vector<16x2xf32>
    %c0_120 = arith.constant 0 : index
    %c0_121 = arith.constant 0 : index
    %318 = vector.load %arg8[%c0_120, %c0_121] : memref<32x2xf32, #tpu.memory_space<vmem>>, vector<16x2xf32>
    tpu.vector_store %arg8[%c0_120, %c0_121], %317 {strides = array<i32>} : memref<32x2xf32, #tpu.memory_space<vmem>>, vector<16x2xf32>,
    %c16_122 = arith.constant 16 : index
    %c0_123 = arith.constant 0 : index
    %319 = vector.load %arg8[%c16_122, %c0_123] : memref<32x2xf32, #tpu.memory_space<vmem>>, vector<16x2xf32>
    tpu.vector_store %arg8[%c16_122, %c0_123], %315 {strides = array<i32>} : memref<32x2xf32, #tpu.memory_space<vmem>>, vector<16x2xf32>,
    return
  }
}

</mosaic_0001>

<llo_original>
// kernel: sub.1
$region0: #{sub.1}
  #allocation0 [shape = 's32[1]{0}', space=sflag, size = 0x4, scoped, tag = 'scoped memory for sub.1']
  %s0 = inlined_call_operand.vmem [shape: f32[2,1,16], index: 0, kind: input, shape index: {}]
  %s1 = inlined_call_operand.vmem [shape: f32[2,1,16], index: 1, kind: input, shape index: {}]
  %s2 = inlined_call_operand.vmem [shape: f32[2,1,16], index: 2, kind: output, shape index: {}]
  %v3 = vld [vmem:[%s0] sm:$0x1]
  %v4 = vld [vmem:[%s1] sm:$0x1]
  %5 = xla_tuple %v3, %v4
  %6 = xla_tuple %5
  %v7 = vsub.f32 %v3, %v4
  %8 = xla_tuple %v7
  %9 = vst [vmem:[%s2] sm:$0x1] %v7
  %s10 = scalar_lea.vmem %s0, 1
  %v11 = vld [vmem:[%s10] sm:$0x1]
  %s12 = scalar_lea.vmem %s1, 1
  %v13 = vld [vmem:[%s12] sm:$0x1]
  %14 = xla_tuple %v11, %v13
  %15 = xla_tuple %14
  %v16 = vsub.f32 %v11, %v13
  %17 = xla_tuple %v16
  %s18 = scalar_lea.vmem %s2, 1
  %19 = vst [vmem:[%s18] sm:$0x1] %v16

// kernel: rescore_forward.1
$region0: #{rescore_forward.1}
  #allocation0 [shape = 'u32[]', space=smem, size = 0x4, offset = 0x4, fixed_abs, tag = 'smem constant byte address 0x4 - core index']
  #allocation1 [shape = 'u32[144,128]{1,0:T(1,128)}', space=vmem, size = 0x12000, scoped, tag = 'internal scratch']
  %s0 = inlined_call_operand.vmem [shape: f32[16,512], index: 0, kind: input, shape index: {}]
  %s1 = inlined_call_operand.vmem [shape: f32[48,2], index: 1, kind: input, shape index: {}]
  %s2 = inlined_call_operand.vmem [shape: f32[416,1], index: 2, kind: input, shape index: {}]
  %s3 = inlined_call_operand.vmem [shape: f32[64,16], index: 3, kind: input, shape index: {}]
  %s4 = inlined_call_operand.vmem [shape: f32[128,64], index: 4, kind: input, shape index: {}]
  %s5 = inlined_call_operand.vmem [shape: f32[2,16,16], index: 5, kind: input, shape index: {}]
  %s6 = inlined_call_operand.vmem [shape: f32[18,16,16], index: 6, kind: input, shape index: {}]
  %s7 = inlined_call_operand.vmem [shape: f32[64,48], index: 7, kind: input, shape index: {}]
  %s8 = inlined_call_operand.vmem [shape: f32[32,2], index: 8, kind: output, shape index: {}]
  %s9 = sld [smem:[#allocation0]]
  $region42: #{rescore_forward.1} parent=0
    _
  %s11 = ssub.s32 1, %s9
  %s12 = scalar_select 0, %s11, %s9
  // Predicated region
  $region2: #{rescore_forward.1} parent=0 // pred_check
    _
  $region3: #{rescore_forward.1} parent=0 // pred_check_branch
    %14 = sbr.rel (0) target = $region5
  $region4: #{rescore_forward.1} parent=0 // pred_region
    _
  $region5: #{rescore_forward.1} parent=0 // pred_fallthru
    _
  // Predicated region
  $region6: #{rescore_forward.1} parent=0 // pred_check
    _
  $region7: #{rescore_forward.1} parent=0 // pred_check_branch
    %16 = sbr.rel (0) target = $region9
  $region8: #{rescore_forward.1} parent=0 // pred_region
    _
  $region9: #{rescore_forward.1} parent=0 // pred_fallthru
    _
  // Predicated region
  $region10: #{rescore_forward.1} parent=0 // pred_check
    _
  $region11: #{rescore_forward.1} parent=0 // pred_check_branch
    %18 = sbr.rel (0) target = $region13
  $region12: #{rescore_forward.1} parent=0 // pred_region
    _
  $region13: #{rescore_forward.1} parent=0 // pred_fallthru
    _
  // Predicated region
  $region14: #{rescore_forward.1} parent=0 // pred_check
    _
  $region15: #{rescore_forward.1} parent=0 // pred_check_branch
    %20 = sbr.rel (0) target = $region17
  $region16: #{rescore_forward.1} parent=0 // pred_region
    _
  $region17: #{rescore_forward.1} parent=0 // pred_fallthru
    _
  // Predicated region
  $region18: #{rescore_forward.1} parent=0 // pred_check
    _
  $region19: #{rescore_forward.1} parent=0 // pred_check_branch
    %22 = sbr.rel (0) target = $region21
  $region20: #{rescore_forward.1} parent=0 // pred_region
    _
  $region21: #{rescore_forward.1} parent=0 // pred_fallthru
    _
  // Predicated region
  $region22: #{rescore_forward.1} parent=0 // pred_check
    _
  $region23: #{rescore_forward.1} parent=0 // pred_check_branch
    %24 = sbr.rel (0) target = $region25
  $region24: #{rescore_forward.1} parent=0 // pred_region
    _
  $region25: #{rescore_forward.1} parent=0 // pred_fallthru
    _
  // Predicated region
  $region26: #{rescore_forward.1} parent=0 // pred_check
    _
  $region27: #{rescore_forward.1} parent=0 // pred_check_branch
    %26 = sbr.rel (0) target = $region29
  $region28: #{rescore_forward.1} parent=0 // pred_region
    _
  $region29: #{rescore_forward.1} parent=0 // pred_fallthru
    _
  // Predicated region
  $region30: #{rescore_forward.1} parent=0 // pred_check
    _
  $region31: #{rescore_forward.1} parent=0 // pred_check_branch
    %28 = sbr.rel (0) target = $region33
  $region32: #{rescore_forward.1} parent=0 // pred_region
    _
  $region33: #{rescore_forward.1} parent=0 // pred_fallthru
    _
  %v29 = vlaneseq
  %v30 = vand.u32 %v29, 127
  %v31 = vadd.s32 %v30, 128
  %v32 = vadd.s32 %v30, 256
  %v33 = vadd.s32 %v30, 384
  %v34 = vand.u32 %v30, 255
  %v35 = vand.u32 %v31, 255
  %v36 = vand.u32 %v32, 255
  %v37 = vand.u32 %v33, 255
  %v38 = vshra.s32 %v34, 4
  %v39 = vshra.s32 %v35, 4
  %v40 = vshra.s32 %v36, 4
  %v41 = vshra.s32 %v37, 4
  %vm42 = vcmp.lt.s32.totalorder %v38, 14
  %vm43 = vcmp.lt.s32.totalorder %v39, 14
  %vm44 = vcmp.lt.s32.totalorder %v40, 14
  %vm45 = vcmp.lt.s32.totalorder %v41, 14
  %v46 = vand.u32 %v34, 15
  %v47 = vand.u32 %v35, 15
  %v48 = vand.u32 %v36, 15
  %v49 = vand.u32 %v37, 15
  %vm50 = vcmp.lt.s32.totalorder %v46, 14
  %vm51 = vcmp.lt.s32.totalorder %v47, 14
  %vm52 = vcmp.lt.s32.totalorder %v48, 14
  %vm53 = vcmp.lt.s32.totalorder %v49, 14
  %vm54 = vmand %vm42, %vm50
  %vm55 = vmand %vm43, %vm51
  %vm56 = vmand %vm44, %vm52
  %vm57 = vmand %vm45, %vm53
  %vm58 = vcmp.ge.s32.totalorder %v30, 0
  %vm59 = vcmp.ge.s32.totalorder %v31, 0
  %vm60 = vcmp.ge.s32.totalorder %v32, 0
  %vm61 = vcmp.ge.s32.totalorder %v33, 0
  %vm62 = vcmp.lt.s32.totalorder %v30, 256
  %vm63 = vcmp.lt.s32.totalorder %v31, 256
  %vm64 = vcmp.lt.s32.totalorder %v32, 256
  %vm65 = vcmp.lt.s32.totalorder %v33, 256
  %vm66 = vmand %vm58, %vm62
  %vm67 = vmand %vm59, %vm63
  %vm68 = vmand %vm60, %vm64
  %vm69 = vmand %vm61, %vm65
  %vm70 = vcmp.ge.s32.totalorder %v30, 256
  %vm71 = vcmp.ge.s32.totalorder %v31, 256
  %vm72 = vcmp.ge.s32.totalorder %v32, 256
  %vm73 = vcmp.ge.s32.totalorder %v33, 256
  %vm74 = vcmp.lt.s32.totalorder %v30, 512
  %vm75 = vcmp.lt.s32.totalorder %v31, 512
  %vm76 = vcmp.lt.s32.totalorder %v32, 512
  %vm77 = vcmp.lt.s32.totalorder %v33, 512
  %vm78 = vmand %vm70, %vm74
  %vm79 = vmand %vm71, %vm75
  %vm80 = vmand %vm72, %vm76
  %vm81 = vmand %vm73, %vm77
  %v82 = vld [vmem:[%s1] sm:$0xff]
  %v83 = vld [vmem:[%s1 + $0x8] sm:$0xff]
  %v84 = vld [vmem:[%s1 + $0x10] sm:$0xff]
  %v85 = vld [vmem:[%s1 + $0x18] sm:$0xff]
  %v86 = vld [vmem:[%s1 + $0x20] sm:$0xff]
  %v87 = vld [vmem:[%s1 + $0x28] sm:$0xff]
  %v88 = vld [vmem:[%s3] sm:$0xff]
  %v89 = vld [vmem:[%s3 + $0x8] sm:$0xff]
  %v90 = vld [vmem:[%s3 + $0x10] sm:$0xff]
  %v91 = vld [vmem:[%s3 + $0x18] sm:$0xff]
  %v92 = vld [vmem:[%s3 + $0x20] sm:$0xff]
  %v93 = vld [vmem:[%s3 + $0x28] sm:$0xff]
  %v94 = vld [vmem:[%s3 + $0x30] sm:$0xff]
  %v95 = vld [vmem:[%s3 + $0x38] sm:$0xff]
  %v96 = vld [vmem:[%s2] sm:$0xff]
  %v97 = vld [vmem:[%s2 + $0x8] sm:$0xff]
  %v98 = vld [vmem:[%s2 + $0x10] sm:$0xff]
  %v99 = vld [vmem:[%s2 + $0x18] sm:$0xff]
  %v100 = vld [vmem:[%s2 + $0x20] sm:$0xff]
  %v101 = vld [vmem:[%s2 + $0x28] sm:$0xff]
  %v102 = vld [vmem:[%s2 + $0x30] sm:$0xff]
  %v103 = vld [vmem:[%s2 + $0x38] sm:$0xff]
  %105 = vset.pattern.permute.xlu0 0
  %106 = vperm.xlu0 %105, %v96
  %v107 = vpop.permute.xlu0 %106
  %110 = vset.pattern.permute.xlu0 0
  %111 = vperm.xlu0 %110, %v97
  %v112 = vpop.permute.xlu0 %111
  %115 = vset.pattern.permute.xlu0 0
  %116 = vperm.xlu0 %115, %v98
  %v117 = vpop.permute.xlu0 %116
  %120 = vset.pattern.permute.xlu0 0
  %121 = vperm.xlu0 %120, %v99
  %v122 = vpop.permute.xlu0 %121
  %125 = vset.pattern.permute.xlu0 0
  %126 = vperm.xlu0 %125, %v100
  %v127 = vpop.permute.xlu0 %126
  %130 = vset.pattern.permute.xlu0 0
  %131 = vperm.xlu0 %130, %v101
  %v132 = vpop.permute.xlu0 %131
  %135 = vset.pattern.permute.xlu0 0
  %136 = vperm.xlu0 %135, %v102
  %v137 = vpop.permute.xlu0 %136
  %140 = vset.pattern.permute.xlu0 0
  %141 = vperm.xlu0 %140, %v103
  %v142 = vpop.permute.xlu0 %141
  %vm144 = vcmask 130048
  %v146 = vsel %vm144, %v88, 0
  %v149 = vsel %vm144, %v89, 0
  %v152 = vsel %vm144, %v90, 0
  %v155 = vsel %vm144, %v91, 0
  %v158 = vsel %vm144, %v92, 0
  %v161 = vsel %vm144, %v93, 0
  %v164 = vsel %vm144, %v94, 0
  %v167 = vsel %vm144, %v95, 0
  %169 = vmatprep.subr.mxu0 0.0
  %170 = vmatpush1.msra.mxu0 %v82
  %171 = vmatprep.subr.mxu0 0.0
  %172 = vmatpush1.msra.mxu0 %v83
  %173 = vmatprep.subr.mxu0 0.0
  %174 = vmatpush1.msra.mxu0 0.0
  %175 = vmatprep.subr.mxu0 0.0
  %176 = vmatpush1.msra.mxu0 0.0
  %177 = vmatprep.subr.mxu0 0.0
  %178 = vmatpush1.msra.mxu0 0.0
  %179 = vmatprep.subr.mxu0 0.0
  %180 = vmatpush1.msra.mxu0 0.0
  %181 = vmatprep.subr.mxu0 0.0
  %182 = vmatpush1.msra.mxu0 0.0
  %183 = vmatprep.subr.mxu0 0.0
  %184 = vmatpush1.msra.mxu0 0.0
  %185 = vmatprep.subr.mxu0 0.0
  %186 = vmatpush1.msra.mxu0 0.0
  %187 = vmatprep.subr.mxu0 0.0
  %188 = vmatpush1.msra.mxu0 0.0
  %189 = vmatprep.subr.mxu0 0.0
  %190 = vmatpush1.msra.mxu0 0.0
  %191 = vmatprep.subr.mxu0 0.0
  %192 = vmatpush1.msra.mxu0 0.0
  %193 = vmatprep.subr.mxu0 0.0
  %194 = vmatpush1.msra.mxu0 0.0
  %195 = vmatprep.subr.mxu0 0.0
  %196 = vmatpush1.msra.mxu0 0.0
  %197 = vmatprep.subr.mxu0 0.0
  %198 = vmatpush1.msra.mxu0 0.0
  %199 = vmatprep.subr.mxu0 0.0
  %200 = vmatpush1.msra.mxu0 0.0
  %201 = vmatprep.subr.mxu0 0.0
  %202 = vmatpush1.msra.mxu0 0.0
  %203 = vmatprep.subr.mxu0 0.0
  %204 = vmatpush1.msra.mxu0 0.0
  %205 = vmatprep.subr.mxu0 0.0
  %206 = vmatpush1.msra.mxu0 0.0
  %207 = vmatprep.subr.mxu0 0.0
  %208 = vmatpush1.msra.mxu0 0.0
  %209 = vmatprep.subr.mxu0 0.0
  %210 = vmatpush1.msra.mxu0 0.0
  %211 = vmatprep.subr.mxu0 0.0
  %212 = vmatpush1.msra.mxu0 0.0
  %213 = vmatprep.subr.mxu0 0.0
  %214 = vmatpush1.msra.mxu0 0.0
  %215 = vmatprep.subr.mxu0 0.0
  %216 = vmatpush1.msra.mxu0 0.0
  %217 = vmatprep.subr.mxu0 0.0
  %218 = vmatpush1.msra.mxu0 0.0
  %219 = vmatprep.subr.mxu0 0.0
  %220 = vmatpush1.msra.mxu0 0.0
  %221 = vmatprep.subr.mxu0 0.0
  %222 = vmatpush1.msra.mxu0 0.0
  %223 = vmatprep.subr.mxu0 0.0
  %224 = vmatpush1.msra.mxu0 0.0
  %225 = vmatprep.subr.mxu0 0.0
  %226 = vmatpush1.msra.mxu0 0.0
  %227 = vmatprep.subr.mxu0 0.0
  %228 = vmatpush1.msra.mxu0 0.0
  %229 = vmatprep.subr.mxu0 0.0
  %230 = vmatpush1.msra.mxu0 0.0
  %231 = vmatprep.subr.mxu0 0.0
  %232 = vmatpush1.msra.mxu0 0.0
  %233 = vmatprep.mubr.f32.mxu0 0.0
  %234 = vmatmul.mubr.f32.gmra.mrb[0].mxu0 %v146
  %v235 = vpop.f32.mrb[0].mxu0
  %v236 = vadd.f32 %v107, %v235
  %v237 = vpop.f32.mrb[0].mxu0
  %238 = vmatprep.mubr.f32.mxu0 0.0
  %239 = vmatmul.mubr.f32.gmra.mrb[0].mxu0 %v149
  %v240 = vpop.f32.mrb[0].mxu0
  %v241 = vadd.f32 %v112, %v240
  %v242 = vpop.f32.mrb[0].mxu0
  %243 = vmatprep.mubr.f32.mxu0 0.0
  %244 = vmatmul.mubr.f32.gmra.mrb[0].mxu0 %v152
  %v245 = vpop.f32.mrb[0].mxu0
  %v246 = vadd.f32 %v117, %v245
  %v247 = vpop.f32.mrb[0].mxu0
  %248 = vmatprep.mubr.f32.mxu0 0.0
  %249 = vmatmul.mubr.f32.gmra.mrb[0].mxu0 %v155
  %v250 = vpop.f32.mrb[0].mxu0
  %v251 = vadd.f32 %v122, %v250
  %v252 = vpop.f32.mrb[0].mxu0
  %253 = vmatprep.mubr.f32.mxu0 0.0
  %254 = vmatmul.mubr.f32.gmra.mrb[0].mxu0 %v158
  %v255 = vpop.f32.mrb[0].mxu0
  %v256 = vadd.f32 %v127, %v255
  %v257 = vpop.f32.mrb[0].mxu0
  %258 = vmatprep.mubr.f32.mxu0 0.0
  %259 = vmatmul.mubr.f32.gmra.mrb[0].mxu0 %v161
  %v260 = vpop.f32.mrb[0].mxu0
  %v261 = vadd.f32 %v132, %v260
  %v262 = vpop.f32.mrb[0].mxu0
  %263 = vmatprep.mubr.f32.mxu0 0.0
  %264 = vmatmul.mubr.f32.gmra.mrb[0].mxu0 %v164
  %v265 = vpop.f32.mrb[0].mxu0
  %v266 = vadd.f32 %v137, %v265
  %v267 = vpop.f32.mrb[0].mxu0
  %268 = vmatprep.mubr.f32.mxu0 0.0
  %269 = vmatmul.mubr.f32.gmra.mrb[0].mxu0 %v167
  %v270 = vpop.f32.mrb[0].mxu0
  %v271 = vadd.f32 %v142, %v270
  %v272 = vpop.f32.mrb[0].mxu0
  %273 = vdwg.mxu0
  %v274 = vmax.f32 %v236, 0.0
  %v275 = vmax.f32 %v241, 0.0
  %v276 = vmax.f32 %v246, 0.0
  %v277 = vmax.f32 %v251, 0.0
  %v278 = vmax.f32 %v256, 0.0
  %v279 = vmax.f32 %v261, 0.0
  %v280 = vmax.f32 %v266, 0.0
  %v281 = vmax.f32 %v271, 0.0
  %v282 = vld [vmem:[%s4] sm:$0xff]
  %v283 = vld [vmem:[%s4 + $0x8] sm:$0xff]
  %v284 = vld [vmem:[%s4 + $0x10] sm:$0xff]
  %v285 = vld [vmem:[%s4 + $0x18] sm:$0xff]
  %v286 = vld [vmem:[%s4 + $0x20] sm:$0xff]
  %v287 = vld [vmem:[%s4 + $0x28] sm:$0xff]
  %v288 = vld [vmem:[%s4 + $0x30] sm:$0xff]
  %v289 = vld [vmem:[%s4 + $0x38] sm:$0xff]
  %v290 = vld [vmem:[%s4 + $0x40] sm:$0xff]
  %v291 = vld [vmem:[%s4 + $0x48] sm:$0xff]
  %v292 = vld [vmem:[%s4 + $0x50] sm:$0xff]
  %v293 = vld [vmem:[%s4 + $0x58] sm:$0xff]
  %v294 = vld [vmem:[%s4 + $0x60] sm:$0xff]
  %v295 = vld [vmem:[%s4 + $0x68] sm:$0xff]
  %v296 = vld [vmem:[%s4 + $0x70] sm:$0xff]
  %v297 = vld [vmem:[%s4 + $0x78] sm:$0xff]
  %v298 = vld [vmem:[%s2 + $0x40] sm:$0xff]
  %v299 = vld [vmem:[%s2 + $0x48] sm:$0xff]
  %v300 = vld [vmem:[%s2 + $0x50] sm:$0xff]
  %v301 = vld [vmem:[%s2 + $0x58] sm:$0xff]
  %v302 = vld [vmem:[%s2 + $0x60] sm:$0xff]
  %v303 = vld [vmem:[%s2 + $0x68] sm:$0xff]
  %v304 = vld [vmem:[%s2 + $0x70] sm:$0xff]
  %v305 = vld [vmem:[%s2 + $0x78] sm:$0xff]
  %v306 = vld [vmem:[%s2 + $0x80] sm:$0xff]
  %v307 = vld [vmem:[%s2 + $0x88] sm:$0xff]
  %v308 = vld [vmem:[%s2 + $0x90] sm:$0xff]
  %v309 = vld [vmem:[%s2 + $0x98] sm:$0xff]
  %v310 = vld [vmem:[%s2 + $0xa0] sm:$0xff]
  %v311 = vld [vmem:[%s2 + $0xa8] sm:$0xff]
  %v312 = vld [vmem:[%s2 + $0xb0] sm:$0xff]
  %v313 = vld [vmem:[%s2 + $0xb8] sm:$0xff]
  %315 = vset.pattern.permute.xlu0 0
  %316 = vperm.xlu0 %315, %v298
  %v317 = vpop.permute.xlu0 %316
  %320 = vset.pattern.permute.xlu0 0
  %321 = vperm.xlu0 %320, %v299
  %v322 = vpop.permute.xlu0 %321
  %325 = vset.pattern.permute.xlu0 0
  %326 = vperm.xlu0 %325, %v300
  %v327 = vpop.permute.xlu0 %326
  %330 = vset.pattern.permute.xlu0 0
  %331 = vperm.xlu0 %330, %v301
  %v332 = vpop.permute.xlu0 %331
  %335 = vset.pattern.permute.xlu0 0
  %336 = vperm.xlu0 %335, %v302
  %v337 = vpop.permute.xlu0 %336
  %340 = vset.pattern.permute.xlu0 0
  %341 = vperm.xlu0 %340, %v303
  %v342 = vpop.permute.xlu0 %341
  %345 = vset.pattern.permute.xlu0 0
  %346 = vperm.xlu0 %345, %v304
  %v347 = vpop.permute.xlu0 %346
  %350 = vset.pattern.permute.xlu0 0
  %351 = vperm.xlu0 %350, %v305
  %v352 = vpop.permute.xlu0 %351
  %355 = vset.pattern.permute.xlu0 0
  %356 = vperm.xlu0 %355, %v306
  %v357 = vpop.permute.xlu0 %356
  %360 = vset.pattern.permute.xlu0 0
  %361 = vperm.xlu0 %360, %v307
  %v362 = vpop.permute.xlu0 %361
  %365 = vset.pattern.permute.xlu0 0
  %366 = vperm.xlu0 %365, %v308
  %v367 = vpop.permute.xlu0 %366
  %370 = vset.pattern.permute.xlu0 0
  %371 = vperm.xlu0 %370, %v309
  %v372 = vpop.permute.xlu0 %371
  %375 = vset.pattern.permute.xlu0 0
  %376 = vperm.xlu0 %375, %v310
  %v377 = vpop.permute.xlu0 %376
  %380 = vset.pattern.permute.xlu0 0
  %381 = vperm.xlu0 %380, %v311
  %v382 = vpop.permute.xlu0 %381
  %385 = vset.pattern.permute.xlu0 0
  %386 = vperm.xlu0 %385, %v312
  %v387 = vpop.permute.xlu0 %386
  %390 = vset.pattern.permute.xlu0 0
  %391 = vperm.xlu0 %390, %v313
  %v392 = vpop.permute.xlu0 %391
  %vm394 = vcmask 523264
  %v396 = vsel %vm394, %v282, 0
  %v399 = vsel %vm394, %v283, 0
  %v402 = vsel %vm394, %v284, 0
  %v405 = vsel %vm394, %v285, 0
  %v408 = vsel %vm394, %v286, 0
  %v411 = vsel %vm394, %v287, 0
  %v414 = vsel %vm394, %v288, 0
  %v417 = vsel %vm394, %v289, 0
  %v420 = vsel %vm394, %v290, 0
  %v423 = vsel %vm394, %v291, 0
  %v426 = vsel %vm394, %v292, 0
  %v429 = vsel %vm394, %v293, 0
  %v432 = vsel %vm394, %v294, 0
  %v435 = vsel %vm394, %v295, 0
  %v438 = vsel %vm394, %v296, 0
  %v441 = vsel %vm394, %v297, 0
  %443 = vmatprep.subr.mxu0 0.0
  %444 = vmatpush1.msra.mxu0 %v274
  %445 = vmatprep.subr.mxu0 0.0
  %446 = vmatpush1.msra.mxu0 %v275
  %447 = vmatprep.subr.mxu0 0.0
  %448 = vmatpush1.msra.mxu0 %v276
  %449 = vmatprep.subr.mxu0 0.0
  %450 = vmatpush1.msra.mxu0 %v277
  %451 = vmatprep.subr.mxu0 0.0
  %452 = vmatpush1.msra.mxu0 %v278
  %453 = vmatprep.subr.mxu0 0.0
  %454 = vmatpush1.msra.mxu0 %v279
  %455 = vmatprep.subr.mxu0 0.0
  %456 = vmatpush1.msra.mxu0 %v280
  %457 = vmatprep.subr.mxu0 0.0
  %458 = vmatpush1.msra.mxu0 %v281
  %459 = vmatprep.subr.mxu0 0.0
  %460 = vmatpush1.msra.mxu0 0.0
  %461 = vmatprep.subr.mxu0 0.0
  %462 = vmatpush1.msra.mxu0 0.0
  %463 = vmatprep.subr.mxu0 0.0
  %464 = vmatpush1.msra.mxu0 0.0
  %465 = vmatprep.subr.mxu0 0.0
  %466 = vmatpush1.msra.mxu0 0.0
  %467 = vmatprep.subr.mxu0 0.0
  %468 = vmatpush1.msra.mxu0 0.0
  %469 = vmatprep.subr.mxu0 0.0
  %470 = vmatpush1.msra.mxu0 0.0
  %471 = vmatprep.subr.mxu0 0.0
  %472 = vmatpush1.msra.mxu0 0.0
  %473 = vmatprep.subr.mxu0 0.0
  %474 = vmatpush1.msra.mxu0 0.0
  %475 = vmatprep.subr.mxu0 0.0
  %476 = vmatpush1.msra.mxu0 0.0
  %477 = vmatprep.subr.mxu0 0.0
  %478 = vmatpush1.msra.mxu0 0.0
  %479 = vmatprep.subr.mxu0 0.0
  %480 = vmatpush1.msra.mxu0 0.0
  %481 = vmatprep.subr.mxu0 0.0
  %482 = vmatpush1.msra.mxu0 0.0
  %483 = vmatprep.subr.mxu0 0.0
  %484 = vmatpush1.msra.mxu0 0.0
  %485 = vmatprep.subr.mxu0 0.0
  %486 = vmatpush1.msra.mxu0 0.0
  %487 = vmatprep.subr.mxu0 0.0
  %488 = vmatpush1.msra.mxu0 0.0
  %489 = vmatprep.subr.mxu0 0.0
  %490 = vmatpush1.msra.mxu0 0.0
  %491 = vmatprep.subr.mxu0 0.0
  %492 = vmatpush1.msra.mxu0 0.0
  %493 = vmatprep.subr.mxu0 0.0
  %494 = vmatpush1.msra.mxu0 0.0
  %495 = vmatprep.subr.mxu0 0.0
  %496 = vmatpush1.msra.mxu0 0.0
  %497 = vmatprep.subr.mxu0 0.0
  %498 = vmatpush1.msra.mxu0 0.0
  %499 = vmatprep.subr.mxu0 0.0
  %500 = vmatpush1.msra.mxu0 0.0
  %501 = vmatprep.subr.mxu0 0.0
  %502 = vmatpush1.msra.mxu0 0.0
  %503 = vmatprep.subr.mxu0 0.0
  %504 = vmatpush1.msra.mxu0 0.0
  %505 = vmatprep.subr.mxu0 0.0
  %506 = vmatpush1.msra.mxu0 0.0
  %507 = vmatprep.mubr.f32.mxu0 0.0
  %508 = vmatmul.mubr.f32.gmra.mrb[0].mxu0 %v396
  %v509 = vpop.f32.mrb[0].mxu0
  %v510 = vadd.f32 %v317, %v509
  %v511 = vpop.f32.mrb[0].mxu0
  %512 = vmatprep.mubr.f32.mxu0 0.0
  %513 = vmatmul.mubr.f32.gmra.mrb[0].mxu0 %v399
  %v514 = vpop.f32.mrb[0].mxu0
  %v515 = vadd.f32 %v322, %v514
  %v516 = vpop.f32.mrb[0].mxu0
  %517 = vmatprep.mubr.f32.mxu0 0.0
  %518 = vmatmul.mubr.f32.gmra.mrb[0].mxu0 %v402
  %v519 = vpop.f32.mrb[0].mxu0
  %v520 = vadd.f32 %v327, %v519
  %v521 = vpop.f32.mrb[0].mxu0
  %522 = vmatprep.mubr.f32.mxu0 0.0
  %523 = vmatmul.mubr.f32.gmra.mrb[0].mxu0 %v405
  %v524 = vpop.f32.mrb[0].mxu0
  %v525 = vadd.f32 %v332, %v524
  %v526 = vpop.f32.mrb[0].mxu0
  %527 = vmatprep.mubr.f32.mxu0 0.0
  %528 = vmatmul.mubr.f32.gmra.mrb[0].mxu0 %v408
  %v529 = vpop.f32.mrb[0].mxu0
  %v530 = vadd.f32 %v337, %v529
  %v531 = vpop.f32.mrb[0].mxu0
  %532 = vmatprep.mubr.f32.mxu0 0.0
  %533 = vmatmul.mubr.f32.gmra.mrb[0].mxu0 %v411
  %v534 = vpop.f32.mrb[0].mxu0
  %v535 = vadd.f32 %v342, %v534
  %v536 = vpop.f32.mrb[0].mxu0
  %537 = vmatprep.mubr.f32.mxu0 0.0
  %538 = vmatmul.mubr.f32.gmra.mrb[0].mxu0 %v414
  %v539 = vpop.f32.mrb[0].mxu0
  %v540 = vadd.f32 %v347, %v539
  %v541 = vpop.f32.mrb[0].mxu0
  %542 = vmatprep.mubr.f32.mxu0 0.0
  %543 = vmatmul.mubr.f32.gmra.mrb[0].mxu0 %v417
  %v544 = vpop.f32.mrb[0].mxu0
  %v545 = vadd.f32 %v352, %v544
  %v546 = vpop.f32.mrb[0].mxu0
  %547 = vmatprep.mubr.f32.mxu0 0.0
  %548 = vmatmul.mubr.f32.gmra.mrb[0].mxu0 %v420
  %v549 = vpop.f32.mrb[0].mxu0
  %v550 = vadd.f32 %v357, %v549
  %v551 = vpop.f32.mrb[0].mxu0
  %552 = vmatprep.mubr.f32.mxu0 0.0
  %553 = vmatmul.mubr.f32.gmra.mrb[0].mxu0 %v423
  %v554 = vpop.f32.mrb[0].mxu0
  %v555 = vadd.f32 %v362, %v554
  %v556 = vpop.f32.mrb[0].mxu0
  %557 = vmatprep.mubr.f32.mxu0 0.0
  %558 = vmatmul.mubr.f32.gmra.mrb[0].mxu0 %v426
  %v559 = vpop.f32.mrb[0].mxu0
  %v560 = vadd.f32 %v367, %v559
  %v561 = vpop.f32.mrb[0].mxu0
  %562 = vmatprep.mubr.f32.mxu0 0.0
  %563 = vmatmul.mubr.f32.gmra.mrb[0].mxu0 %v429
  %v564 = vpop.f32.mrb[0].mxu0
  %v565 = vadd.f32 %v372, %v564
  %v566 = vpop.f32.mrb[0].mxu0
  %567 = vmatprep.mubr.f32.mxu0 0.0
  %568 = vmatmul.mubr.f32.gmra.mrb[0].mxu0 %v432
  %v569 = vpop.f32.mrb[0].mxu0
  %v570 = vadd.f32 %v377, %v569
  %v571 = vpop.f32.mrb[0].mxu0
  %572 = vmatprep.mubr.f32.mxu0 0.0
  %573 = vmatmul.mubr.f32.gmra.mrb[0].mxu0 %v435
  %v574 = vpop.f32.mrb[0].mxu0
  %v575 = vadd.f32 %v382, %v574
  %v576 = vpop.f32.mrb[0].mxu0
  %577 = vmatprep.mubr.f32.mxu0 0.0
  %578 = vmatmul.mubr.f32.gmra.mrb[0].mxu0 %v438
  %v579 = vpop.f32.mrb[0].mxu0
  %v580 = vadd.f32 %v387, %v579
  %v581 = vpop.f32.mrb[0].mxu0
  %582 = vmatprep.mubr.f32.mxu0 0.0
  %583 = vmatmul.mubr.f32.gmra.mrb[0].mxu0 %v441
  %v584 = vpop.f32.mrb[0].mxu0
  %v585 = vadd.f32 %v392, %v584
  %v586 = vpop.f32.mrb[0].mxu0
  %587 = vdwg.mxu0
  %v588 = vld [vmem:[%s0] sm:$0xff]
  %v589 = vld [vmem:[%s0 + $0x8] sm:$0xff]
  %v590 = vld [vmem:[%s0 + $0x10] sm:$0xff]
  %v591 = vld [vmem:[%s0 + $0x18] sm:$0xff]
  %v592 = vld [vmem:[%s0 + $0x20] sm:$0xff]
  %v593 = vld [vmem:[%s0 + $0x28] sm:$0xff]
  %v594 = vld [vmem:[%s0 + $0x30] sm:$0xff]
  %v595 = vld [vmem:[%s0 + $0x38] sm:$0xff]
  %v596 = vld [vmem:[%s2 + $0x100] sm:$0xff]
  %v597 = vld [vmem:[%s2 + $0x108] sm:$0xff]
  %v598 = vld [vmem:[%s2 + $0x110] sm:$0xff]
  %v599 = vld [vmem:[%s2 + $0x118] sm:$0xff]
  %v600 = vld [vmem:[%s2 + $0x120] sm:$0xff]
  %v601 = vld [vmem:[%s2 + $0x128] sm:$0xff]
  %v602 = vld [vmem:[%s2 + $0x130] sm:$0xff]
  %v603 = vld [vmem:[%s2 + $0x138] sm:$0xff]
  %v604 = vld [vmem:[%s2 + $0x140] sm:$0xff]
  %v605 = vld [vmem:[%s2 + $0x148] sm:$0xff]
  %v606 = vld [vmem:[%s5] sm:$0xff]
  %v607 = vld [vmem:[%s5 + $0x8] sm:$0xff]
  %609 = vset.pattern.permute.xlu0 0
  %610 = vperm.xlu0 %609, %v596
  %v611 = vpop.permute.xlu0 %610
  %614 = vset.pattern.permute.xlu0 0
  %615 = vperm.xlu0 %614, %v597
  %v616 = vpop.permute.xlu0 %615
  %v619 = vsel %vm144, %v606, 0
  %v622 = vsel %vm144, %v607, 0
  %624 = vmatprep.subr.mxu0 %v589
  %625 = vmatpush1.msra.mxu0 %v588
  %626 = vmatprep.subr.mxu0 %v593
  %627 = vmatpush1.msra.mxu0 %v592
  %628 = vmatprep.subr.mxu0 0.0
  %629 = vmatpush1.msra.mxu0 0.0
  %630 = vmatprep.subr.mxu0 0.0
  %631 = vmatpush1.msra.mxu0 0.0
  %632 = vmatprep.subr.mxu0 0.0
  %633 = vmatpush1.msra.mxu0 0.0
  %634 = vmatprep.subr.mxu0 0.0
  %635 = vmatpush1.msra.mxu0 0.0
  %636 = vmatprep.subr.mxu0 0.0
  %637 = vmatpush1.msra.mxu0 0.0
  %638 = vmatprep.subr.mxu0 0.0
  %639 = vmatpush1.msra.mxu0 0.0
  %640 = vmatprep.subr.mxu0 0.0
  %641 = vmatpush1.msra.mxu0 0.0
  %642 = vmatprep.subr.mxu0 0.0
  %643 = vmatpush1.msra.mxu0 0.0
  %644 = vmatprep.subr.mxu0 0.0
  %645 = vmatpush1.msra.mxu0 0.0
  %646 = vmatprep.subr.mxu0 0.0
  %647 = vmatpush1.msra.mxu0 0.0
  %648 = vmatprep.subr.mxu0 0.0
  %649 = vmatpush1.msra.mxu0 0.0
  %650 = vmatprep.subr.mxu0 0.0
  %651 = vmatpush1.msra.mxu0 0.0
  %652 = vmatprep.subr.mxu0 0.0
  %653 = vmatpush1.msra.mxu0 0.0
  %654 = vmatprep.subr.mxu0 0.0
  %655 = vmatpush1.msra.mxu0 0.0
  %656 = vmatprep.subr.mxu0 0.0
  %657 = vmatpush1.msra.mxu0 0.0
  %658 = vmatprep.subr.mxu0 0.0
  %659 = vmatpush1.msra.mxu0 0.0
  %660 = vmatprep.subr.mxu0 0.0
  %661 = vmatpush1.msra.mxu0 0.0
  %662 = vmatprep.subr.mxu0 0.0
  %663 = vmatpush1.msra.mxu0 0.0
  %664 = vmatprep.subr.mxu0 0.0
  %665 = vmatpush1.msra.mxu0 0.0
  %666 = vmatprep.subr.mxu0 0.0
  %667 = vmatpush1.msra.mxu0 0.0
  %668 = vmatprep.subr.mxu0 0.0
  %669 = vmatpush1.msra.mxu0 0.0
  %670 = vmatprep.subr.mxu0 0.0
  %671 = vmatpush1.msra.mxu0 0.0
  %672 = vmatprep.subr.mxu0 0.0
  %673 = vmatpush1.msra.mxu0 0.0
  %674 = vmatprep.subr.mxu0 0.0
  %675 = vmatpush1.msra.mxu0 0.0
  %676 = vmatprep.subr.mxu0 0.0
  %677 = vmatpush1.msra.mxu0 0.0
  %678 = vmatprep.subr.mxu0 0.0
  %679 = vmatpush1.msra.mxu0 0.0
  %680 = vmatprep.subr.mxu0 0.0
  %681 = vmatpush1.msra.mxu0 0.0
  %682 = vmatprep.subr.mxu0 0.0
  %683 = vmatpush1.msra.mxu0 0.0
  %684 = vmatprep.subr.mxu0 0.0
  %685 = vmatpush1.msra.mxu0 0.0
  %686 = vmatprep.subr.mxu0 0.0
  %687 = vmatpush1.msra.mxu0 0.0
  %688 = vmatprep.mubr.f32.mxu0 0.0
  %689 = vmatmul.mubr.f32.gmra.mrb[0].mxu0 %v619
  %v690 = vpop.f32.mrb[0].mxu0
  %v691 = vadd.f32 %v611, %v690
  %v692 = vpop.f32.mrb[0].mxu0
  %v693 = vadd.f32 %v611, %v692
  %694 = vmatprep.mubr.f32.mxu0 0.0
  %695 = vmatmul.mubr.f32.gmra.mrb[0].mxu0 %v622
  %v696 = vpop.f32.mrb[0].mxu0
  %v697 = vadd.f32 %v616, %v696
  %v698 = vpop.f32.mrb[0].mxu0
  %v699 = vadd.f32 %v616, %v698
  %700 = vdwg.mxu0
  %701 = vmatprep.subr.mxu0 %v591
  %702 = vmatpush1.msra.mxu0 %v590
  %703 = vmatprep.subr.mxu0 %v595
  %704 = vmatpush1.msra.mxu0 %v594
  %705 = vmatprep.subr.mxu0 0.0
  %706 = vmatpush1.msra.mxu0 0.0
  %707 = vmatprep.subr.mxu0 0.0
  %708 = vmatpush1.msra.mxu0 0.0
  %709 = vmatprep.subr.mxu0 0.0
  %710 = vmatpush1.msra.mxu0 0.0
  %711 = vmatprep.subr.mxu0 0.0
  %712 = vmatpush1.msra.mxu0 0.0
  %713 = vmatprep.subr.mxu0 0.0
  %714 = vmatpush1.msra.mxu0 0.0
  %715 = vmatprep.subr.mxu0 0.0
  %716 = vmatpush1.msra.mxu0 0.0
  %717 = vmatprep.subr.mxu0 0.0
  %718 = vmatpush1.msra.mxu0 0.0
  %719 = vmatprep.subr.mxu0 0.0
  %720 = vmatpush1.msra.mxu0 0.0
  %721 = vmatprep.subr.mxu0 0.0
  %722 = vmatpush1.msra.mxu0 0.0
  %723 = vmatprep.subr.mxu0 0.0
  %724 = vmatpush1.msra.mxu0 0.0
  %725 = vmatprep.subr.mxu0 0.0
  %726 = vmatpush1.msra.mxu0 0.0
  %727 = vmatprep.subr.mxu0 0.0
  %728 = vmatpush1.msra.mxu0 0.0
  %729 = vmatprep.subr.mxu0 0.0
  %730 = vmatpush1.msra.mxu0 0.0
  %731 = vmatprep.subr.mxu0 0.0
  %732 = vmatpush1.msra.mxu0 0.0
  %733 = vmatprep.subr.mxu0 0.0
  %734 = vmatpush1.msra.mxu0 0.0
  %735 = vmatprep.subr.mxu0 0.0
  %736 = vmatpush1.msra.mxu0 0.0
  %737 = vmatprep.subr.mxu0 0.0
  %738 = vmatpush1.msra.mxu0 0.0
  %739 = vmatprep.subr.mxu0 0.0
  %740 = vmatpush1.msra.mxu0 0.0
  %741 = vmatprep.subr.mxu0 0.0
  %742 = vmatpush1.msra.mxu0 0.0
  %743 = vmatprep.subr.mxu0 0.0
  %744 = vmatpush1.msra.mxu0 0.0
  %745 = vmatprep.subr.mxu0 0.0
  %746 = vmatpush1.msra.mxu0 0.0
  %747 = vmatprep.subr.mxu0 0.0
  %748 = vmatpush1.msra.mxu0 0.0
  %749 = vmatprep.subr.mxu0 0.0
  %750 = vmatpush1.msra.mxu0 0.0
  %751 = vmatprep.subr.mxu0 0.0
  %752 = vmatpush1.msra.mxu0 0.0
  %753 = vmatprep.subr.mxu0 0.0
  %754 = vmatpush1.msra.mxu0 0.0
  %755 = vmatprep.subr.mxu0 0.0
  %756 = vmatpush1.msra.mxu0 0.0
  %757 = vmatprep.subr.mxu0 0.0
  %758 = vmatpush1.msra.mxu0 0.0
  %759 = vmatprep.subr.mxu0 0.0
  %760 = vmatpush1.msra.mxu0 0.0
  %761 = vmatprep.subr.mxu0 0.0
  %762 = vmatpush1.msra.mxu0 0.0
  %763 = vmatprep.subr.mxu0 0.0
  %764 = vmatpush1.msra.mxu0 0.0
  %765 = vmatprep.mubr.f32.mxu0 0.0
  %766 = vmatmul.mubr.f32.gmra.mrb[0].mxu0 %v619
  %v767 = vpop.f32.mrb[0].mxu0
  %v768 = vadd.f32 %v611, %v767
  %v769 = vpop.f32.mrb[0].mxu0
  %v770 = vadd.f32 %v611, %v769
  %771 = vmatprep.mubr.f32.mxu0 0.0
  %772 = vmatmul.mubr.f32.gmra.mrb[0].mxu0 %v622
  %v773 = vpop.f32.mrb[0].mxu0
  %v774 = vadd.f32 %v616, %v773
  %v775 = vpop.f32.mrb[0].mxu0
  %v776 = vadd.f32 %v616, %v775
  %777 = vdwg.mxu0
  %v778 = vmax.f32 %v691, 0.0
  %v779 = vmax.f32 %v693, 0.0
  %v780 = vmax.f32 %v768, 0.0
  %v781 = vmax.f32 %v770, 0.0
  %v782 = vmax.f32 %v697, 0.0
  %v783 = vmax.f32 %v699, 0.0
  %v784 = vmax.f32 %v774, 0.0
  %v785 = vmax.f32 %v776, 0.0
  %v786 = vadd.f32 %v510, 1.0
  %v787 = vadd.f32 %v515, 1.0
  %789 = vset.pattern.permute.xlu0 0
  %790 = vperm.xlu0 %789, %v600
  %v791 = vpop.permute.xlu0 %790
  %794 = vset.pattern.permute.xlu0 0
  %795 = vperm.xlu0 %794, %v601
  %v796 = vpop.permute.xlu0 %795
  %v798 = vmul.f32 %v791, %v786
  %v799 = vmul.f32 %v796, %v787
  %801 = vset.pattern.permute.xlu0 0
  %802 = vperm.xlu0 %801, %v798
  %v803 = vpop.permute.xlu0 %802
  %806 = vset.pattern.permute.xlu0 0
  %807 = vperm.xlu0 %806, %v799
  %v808 = vpop.permute.xlu0 %807
  %v810 = vsel %vm78, 1, 0
  %v811 = vsel %vm79, 1, 0
  %v812 = vsel %vm80, 1, 0
  %v813 = vsel %vm81, 1, 0
  %vm814 = vcmp.eq.s32.totalorder %v810, 1
  %vm815 = vcmp.eq.s32.totalorder %v811, 1
  %vm816 = vcmp.eq.s32.totalorder %v812, 1
  %vm817 = vcmp.eq.s32.totalorder %v813, 1
  %818 = vset.pattern.permute.xlu0 1
  %819 = vperm.xlu0 %818, %v798
  %v820 = vpop.permute.xlu0 %819
  %822 = vset.pattern.permute.xlu0 1
  %823 = vperm.xlu0 %822, %v799
  %v824 = vpop.permute.xlu0 %823
  %v826 = vsel %vm814, %v820, %v803
  %v827 = vsel %vm815, %v820, %v803
  %v828 = vsel %vm816, %v820, %v803
  %v829 = vsel %vm817, %v820, %v803
  %v830 = vsel %vm814, %v824, %v808
  %v831 = vsel %vm815, %v824, %v808
  %v832 = vsel %vm816, %v824, %v808
  %v833 = vsel %vm817, %v824, %v808
  %v834 = vmul.f32 %v778, %v826
  %v835 = vmul.f32 %v779, %v827
  %v836 = vmul.f32 %v780, %v828
  %v837 = vmul.f32 %v781, %v829
  %v838 = vmul.f32 %v782, %v830
  %v839 = vmul.f32 %v783, %v831
  %v840 = vmul.f32 %v784, %v832
  %v841 = vmul.f32 %v785, %v833
  %843 = vset.pattern.permute.xlu0 0
  %844 = vperm.xlu0 %843, %v598
  %v845 = vpop.permute.xlu0 %844
  %848 = vset.pattern.permute.xlu0 0
  %849 = vperm.xlu0 %848, %v599
  %v850 = vpop.permute.xlu0 %849
  %v852 = vmul.f32 %v845, %v798
  %v853 = vmul.f32 %v850, %v799
  %v854 = vsub.f32 %v520, %v852
  %v855 = vsub.f32 %v525, %v853
  %857 = vset.pattern.permute.xlu0 0
  %858 = vperm.xlu0 %857, %v854
  %v859 = vpop.permute.xlu0 %858
  %862 = vset.pattern.permute.xlu0 0
  %863 = vperm.xlu0 %862, %v855
  %v864 = vpop.permute.xlu0 %863
  %866 = vset.pattern.permute.xlu0 1
  %867 = vperm.xlu0 %866, %v854
  %v868 = vpop.permute.xlu0 %867
  %870 = vset.pattern.permute.xlu0 1
  %871 = vperm.xlu0 %870, %v855
  %v872 = vpop.permute.xlu0 %871
  %v874 = vsel %vm814, %v868, %v859
  %v875 = vsel %vm815, %v868, %v859
  %v876 = vsel %vm816, %v868, %v859
  %v877 = vsel %vm817, %v868, %v859
  %v878 = vsel %vm814, %v872, %v864
  %v879 = vsel %vm815, %v872, %v864
  %v880 = vsel %vm816, %v872, %v864
  %v881 = vsel %vm817, %v872, %v864
  %v882 = vadd.f32 %v834, %v874
  %v883 = vadd.f32 %v835, %v875
  %v884 = vadd.f32 %v836, %v876
  %v885 = vadd.f32 %v837, %v877
  %v886 = vadd.f32 %v838, %v878
  %v887 = vadd.f32 %v839, %v879
  %v888 = vadd.f32 %v840, %v880
  %v889 = vadd.f32 %v841, %v881
  %v890 = vmax.f32 %v882, 0.0
  %v891 = vmax.f32 %v883, 0.0
  %v892 = vmax.f32 %v884, 0.0
  %v893 = vmax.f32 %v885, 0.0
  %v894 = vmax.f32 %v886, 0.0
  %v895 = vmax.f32 %v887, 0.0
  %v896 = vmax.f32 %v888, 0.0
  %v897 = vmax.f32 %v889, 0.0
  %v898 = vsel %vm54, 1, 0
  %v899 = vsel %vm55, 1, 0
  %v900 = vsel %vm56, 1, 0
  %v901 = vsel %vm57, 1, 0
  %vm902 = vcmp.eq.s32.totalorder %v898, 1
  %vm903 = vcmp.eq.s32.totalorder %v899, 1
  %vm904 = vcmp.eq.s32.totalorder %v900, 1
  %vm905 = vcmp.eq.s32.totalorder %v901, 1
  %v906 = vsel %vm902, %v890, 0.0
  %v907 = vsel %vm903, %v891, 0.0
  %v908 = vsel %vm904, %v892, 0.0
  %v909 = vsel %vm905, %v893, 0.0
  %v910 = vsel %vm902, %v894, 0.0
  %v911 = vsel %vm903, %v895, 0.0
  %v912 = vsel %vm904, %v896, 0.0
  %v913 = vsel %vm905, %v897, 0.0
  %914 = vrot.lane.b32.xlu0 %v906, 17
  %v915 = vpop.permute.xlu0 %914
  %916 = vrot.lane.b32.xlu0 %v910, 17
  %v917 = vpop.permute.xlu0 %916
  %918 = vrot.lane.b32.xlu0 %v907, 17
  %v919 = vpop.permute.xlu0 %918
  %920 = vrot.lane.b32.xlu0 %v911, 17
  %v921 = vpop.permute.xlu0 %920
  %922 = vrot.lane.b32.xlu0 %v908, 17
  %v923 = vpop.permute.xlu0 %922
  %924 = vrot.lane.b32.xlu0 %v912, 17
  %v925 = vpop.permute.xlu0 %924
  %926 = vrot.lane.b32.xlu0 %v909, 17
  %v927 = vpop.permute.xlu0 %926
  %928 = vrot.lane.b32.xlu0 %v913, 17
  %v929 = vpop.permute.xlu0 %928
  %vm930 = vcmp.lt.s32.totalorder %v30, 17
  %v931 = vsel %vm930, %v923, %v927
  %v932 = vsel %vm930, %v925, %v929
  %v933 = vsel %vm930, %v919, %v923
  %v934 = vsel %vm930, %v921, %v925
  %v935 = vsel %vm930, %v915, %v919
  %v936 = vsel %vm930, %v917, %v921
  %v937 = vsel %vm930, %v927, %v915
  %v938 = vsel %vm930, %v929, %v917
  %v939 = vld [vmem:[%s6] sm:$0xff]
  %v940 = vld [vmem:[%s6 + $0x8] sm:$0xff]
  %941 = vrot.lane.b32.xlu0 %v906, 16
  %v942 = vpop.permute.xlu0 %941
  %943 = vrot.lane.b32.xlu0 %v910, 16
  %v944 = vpop.permute.xlu0 %943
  %945 = vrot.lane.b32.xlu0 %v907, 16
  %v946 = vpop.permute.xlu0 %945
  %947 = vrot.lane.b32.xlu0 %v911, 16
  %v948 = vpop.permute.xlu0 %947
  %949 = vrot.lane.b32.xlu0 %v908, 16
  %v950 = vpop.permute.xlu0 %949
  %951 = vrot.lane.b32.xlu0 %v912, 16
  %v952 = vpop.permute.xlu0 %951
  %953 = vrot.lane.b32.xlu0 %v909, 16
  %v954 = vpop.permute.xlu0 %953
  %955 = vrot.lane.b32.xlu0 %v913, 16
  %v956 = vpop.permute.xlu0 %955
  %vm957 = vcmp.lt.s32.totalorder %v30, 16
  %v958 = vsel %vm957, %v950, %v954
  %v959 = vsel %vm957, %v952, %v956
  %v960 = vsel %vm957, %v946, %v950
  %v961 = vsel %vm957, %v948, %v952
  %v962 = vsel %vm957, %v942, %v946
  %v963 = vsel %vm957, %v944, %v948
  %v964 = vsel %vm957, %v954, %v942
  %v965 = vsel %vm957, %v956, %v944
  %s966 = scalar_lea.vmem %s6, 16
  %v967 = vld [vmem:[%s966] sm:$0xff]
  %v968 = vld [vmem:[%s966 + $0x8] sm:$0xff]
  %v970 = vsel %vm144, %v967, 0
  %v973 = vsel %vm144, %v968, 0
  %975 = vmatprep.subr.mxu0 %v962
  %976 = vmatpush1.msra.mxu0 %v964
  %977 = vmatprep.subr.mxu0 %v963
  %978 = vmatpush1.msra.mxu0 %v965
  %979 = vmatprep.subr.mxu0 0.0
  %980 = vmatpush1.msra.mxu0 0.0
  %981 = vmatprep.subr.mxu0 0.0
  %982 = vmatpush1.msra.mxu0 0.0
  %983 = vmatprep.subr.mxu0 0.0
  %984 = vmatpush1.msra.mxu0 0.0
  %985 = vmatprep.subr.mxu0 0.0
  %986 = vmatpush1.msra.mxu0 0.0
  %987 = vmatprep.subr.mxu0 0.0
  %988 = vmatpush1.msra.mxu0 0.0
  %989 = vmatprep.subr.mxu0 0.0
  %990 = vmatpush1.msra.mxu0 0.0
  %991 = vmatprep.subr.mxu0 0.0
  %992 = vmatpush1.msra.mxu0 0.0
  %993 = vmatprep.subr.mxu0 0.0
  %994 = vmatpush1.msra.mxu0 0.0
  %995 = vmatprep.subr.mxu0 0.0
  %996 = vmatpush1.msra.mxu0 0.0
  %997 = vmatprep.subr.mxu0 0.0
  %998 = vmatpush1.msra.mxu0 0.0
  %999 = vmatprep.subr.mxu0 0.0
  %1000 = vmatpush1.msra.mxu0 0.0
  %1001 = vmatprep.subr.mxu0 0.0
  %1002 = vmatpush1.msra.mxu0 0.0
  %1003 = vmatprep.subr.mxu0 0.0
  %1004 = vmatpush1.msra.mxu0 0.0
  %1005 = vmatprep.subr.mxu0 0.0
  %1006 = vmatpush1.msra.mxu0 0.0
  %1007 = vmatprep.subr.mxu0 0.0
  %1008 = vmatpush1.msra.mxu0 0.0
  %1009 = vmatprep.subr.mxu0 0.0
  %1010 = vmatpush1.msra.mxu0 0.0
  %1011 = vmatprep.subr.mxu0 0.0
  %1012 = vmatpush1.msra.mxu0 0.0
  %1013 = vmatprep.subr.mxu0 0.0
  %1014 = vmatpush1.msra.mxu0 0.0
  %1015 = vmatprep.subr.mxu0 0.0
  %1016 = vmatpush1.msra.mxu0 0.0
  %1017 = vmatprep.subr.mxu0 0.0
  %1018 = vmatpush1.msra.mxu0 0.0
  %1019 = vmatprep.subr.mxu0 0.0
  %1020 = vmatpush1.msra.mxu0 0.0
  %1021 = vmatprep.subr.mxu0 0.0
  %1022 = vmatpush1.msra.mxu0 0.0
  %1023 = vmatprep.subr.mxu0 0.0
  %1024 = vmatpush1.msra.mxu0 0.0
  %1025 = vmatprep.subr.mxu0 0.0
  %1026 = vmatpush1.msra.mxu0 0.0
  %1027 = vmatprep.subr.mxu0 0.0
  %1028 = vmatpush1.msra.mxu0 0.0
  %1029 = vmatprep.subr.mxu0 0.0
  %1030 = vmatpush1.msra.mxu0 0.0
  %1031 = vmatprep.subr.mxu0 0.0
  %1032 = vmatpush1.msra.mxu0 0.0
  %1033 = vmatprep.subr.mxu0 0.0
  %1034 = vmatpush1.msra.mxu0 0.0
  %1035 = vmatprep.subr.mxu0 0.0
  %1036 = vmatpush1.msra.mxu0 0.0
  %1037 = vmatprep.subr.mxu0 0.0
  %1038 = vmatpush1.msra.mxu0 0.0
  %1039 = vmatprep.mubr.f32.mxu0 0.0
  %1040 = vmatmul.mubr.f32.gmra.mrb[0].mxu0 %v970
  %v1041 = vpop.f32.mrb[0].mxu0
  %v1042 = vadd.f32 0.0, %v1041
  %v1043 = vpop.f32.mrb[0].mxu0
  %v1044 = vadd.f32 0.0, %v1043
  %1045 = vmatprep.mubr.f32.mxu0 0.0
  %1046 = vmatmul.mubr.f32.gmra.mrb[0].mxu0 %v973
  %v1047 = vpop.f32.mrb[0].mxu0
  %v1048 = vadd.f32 0.0, %v1047
  %v1049 = vpop.f32.mrb[0].mxu0
  %v1050 = vadd.f32 0.0, %v1049
  %1051 = vdwg.mxu0
  %1052 = vmatprep.subr.mxu0 %v958
  %1053 = vmatpush1.msra.mxu0 %v960
  %1054 = vmatprep.subr.mxu0 %v959
  %1055 = vmatpush1.msra.mxu0 %v961
  %1056 = vmatprep.subr.mxu0 0.0
  %1057 = vmatpush1.msra.mxu0 0.0
  %1058 = vmatprep.subr.mxu0 0.0
  %1059 = vmatpush1.msra.mxu0 0.0
  %1060 = vmatprep.subr.mxu0 0.0
  %1061 = vmatpush1.msra.mxu0 0.0
  %1062 = vmatprep.subr.mxu0 0.0
  %1063 = vmatpush1.msra.mxu0 0.0
  %1064 = vmatprep.subr.mxu0 0.0
  %1065 = vmatpush1.msra.mxu0 0.0
  %1066 = vmatprep.subr.mxu0 0.0
  %1067 = vmatpush1.msra.mxu0 0.0
  %1068 = vmatprep.subr.mxu0 0.0
  %1069 = vmatpush1.msra.mxu0 0.0
  %1070 = vmatprep.subr.mxu0 0.0
  %1071 = vmatpush1.msra.mxu0 0.0
  %1072 = vmatprep.subr.mxu0 0.0
  %1073 = vmatpush1.msra.mxu0 0.0
  %1074 = vmatprep.subr.mxu0 0.0
  %1075 = vmatpush1.msra.mxu0 0.0
  %1076 = vmatprep.subr.mxu0 0.0
  %1077 = vmatpush1.msra.mxu0 0.0
  %1078 = vmatprep.subr.mxu0 0.0
  %1079 = vmatpush1.msra.mxu0 0.0
  %1080 = vmatprep.subr.mxu0 0.0
  %1081 = vmatpush1.msra.mxu0 0.0
  %1082 = vmatprep.subr.mxu0 0.0
  %1083 = vmatpush1.msra.mxu0 0.0
  %1084 = vmatprep.subr.mxu0 0.0
  %1085 = vmatpush1.msra.mxu0 0.0
  %1086 = vmatprep.subr.mxu0 0.0
  %1087 = vmatpush1.msra.mxu0 0.0
  %1088 = vmatprep.subr.mxu0 0.0
  %1089 = vmatpush1.msra.mxu0 0.0
  %1090 = vmatprep.subr.mxu0 0.0
  %1091 = vmatpush1.msra.mxu0 0.0
  %1092 = vmatprep.subr.mxu0 0.0
  %1093 = vmatpush1.msra.mxu0 0.0
  %1094 = vmatprep.subr.mxu0 0.0
  %1095 = vmatpush1.msra.mxu0 0.0
  %1096 = vmatprep.subr.mxu0 0.0
  %1097 = vmatpush1.msra.mxu0 0.0
  %1098 = vmatprep.subr.mxu0 0.0
  %1099 = vmatpush1.msra.mxu0 0.0
  %1100 = vmatprep.subr.mxu0 0.0
  %1101 = vmatpush1.msra.mxu0 0.0
  %1102 = vmatprep.subr.mxu0 0.0
  %1103 = vmatpush1.msra.mxu0 0.0
  %1104 = vmatprep.subr.mxu0 0.0
  %1105 = vmatpush1.msra.mxu0 0.0
  %1106 = vmatprep.subr.mxu0 0.0
  %1107 = vmatpush1.msra.mxu0 0.0
  %1108 = vmatprep.subr.mxu0 0.0
  %1109 = vmatpush1.msra.mxu0 0.0
  %1110 = vmatprep.subr.mxu0 0.0
  %1111 = vmatpush1.msra.mxu0 0.0
  %1112 = vmatprep.subr.mxu0 0.0
  %1113 = vmatpush1.msra.mxu0 0.0
  %1114 = vmatprep.subr.mxu0 0.0
  %1115 = vmatpush1.msra.mxu0 0.0
  %1116 = vmatprep.mubr.f32.mxu0 0.0
  %1117 = vmatmul.mubr.f32.gmra.mrb[0].mxu0 %v970
  %v1118 = vpop.f32.mrb[0].mxu0
  %v1119 = vadd.f32 0.0, %v1118
  %v1120 = vpop.f32.mrb[0].mxu0
  %v1121 = vadd.f32 0.0, %v1120
  %1122 = vmatprep.mubr.f32.mxu0 0.0
  %1123 = vmatmul.mubr.f32.gmra.mrb[0].mxu0 %v973
  %v1124 = vpop.f32.mrb[0].mxu0
  %v1125 = vadd.f32 0.0, %v1124
  %v1126 = vpop.f32.mrb[0].mxu0
  %v1127 = vadd.f32 0.0, %v1126
  %1128 = vdwg.mxu0
  %v1130 = vsel %vm144, %v939, 0
  %v1133 = vsel %vm144, %v940, 0
  %1135 = vmatprep.subr.mxu0 %v935
  %1136 = vmatpush1.msra.mxu0 %v937
  %1137 = vmatprep.subr.mxu0 %v936
  %1138 = vmatpush1.msra.mxu0 %v938
  %1139 = vmatprep.subr.mxu0 0.0
  %1140 = vmatpush1.msra.mxu0 0.0
  %1141 = vmatprep.subr.mxu0 0.0
  %1142 = vmatpush1.msra.mxu0 0.0
  %1143 = vmatprep.subr.mxu0 0.0
  %1144 = vmatpush1.msra.mxu0 0.0
  %1145 = vmatprep.subr.mxu0 0.0
  %1146 = vmatpush1.msra.mxu0 0.0
  %1147 = vmatprep.subr.mxu0 0.0
  %1148 = vmatpush1.msra.mxu0 0.0
  %1149 = vmatprep.subr.mxu0 0.0
  %1150 = vmatpush1.msra.mxu0 0.0
  %1151 = vmatprep.subr.mxu0 0.0
  %1152 = vmatpush1.msra.mxu0 0.0
  %1153 = vmatprep.subr.mxu0 0.0
  %1154 = vmatpush1.msra.mxu0 0.0
  %1155 = vmatprep.subr.mxu0 0.0
  %1156 = vmatpush1.msra.mxu0 0.0
  %1157 = vmatprep.subr.mxu0 0.0
  %1158 = vmatpush1.msra.mxu0 0.0
  %1159 = vmatprep.subr.mxu0 0.0
  %1160 = vmatpush1.msra.mxu0 0.0
  %1161 = vmatprep.subr.mxu0 0.0
  %1162 = vmatpush1.msra.mxu0 0.0
  %1163 = vmatprep.subr.mxu0 0.0
  %1164 = vmatpush1.msra.mxu0 0.0
  %1165 = vmatprep.subr.mxu0 0.0
  %1166 = vmatpush1.msra.mxu0 0.0
  %1167 = vmatprep.subr.mxu0 0.0
  %1168 = vmatpush1.msra.mxu0 0.0
  %1169 = vmatprep.subr.mxu0 0.0
  %1170 = vmatpush1.msra.mxu0 0.0
  %1171 = vmatprep.subr.mxu0 0.0
  %1172 = vmatpush1.msra.mxu0 0.0
  %1173 = vmatprep.subr.mxu0 0.0
  %1174 = vmatpush1.msra.mxu0 0.0
  %1175 = vmatprep.subr.mxu0 0.0
  %1176 = vmatpush1.msra.mxu0 0.0
  %1177 = vmatprep.subr.mxu0 0.0
  %1178 = vmatpush1.msra.mxu0 0.0
  %1179 = vmatprep.subr.mxu0 0.0
  %1180 = vmatpush1.msra.mxu0 0.0
  %1181 = vmatprep.subr.mxu0 0.0
  %1182 = vmatpush1.msra.mxu0 0.0
  %1183 = vmatprep.subr.mxu0 0.0
  %1184 = vmatpush1.msra.mxu0 0.0
  %1185 = vmatprep.subr.mxu0 0.0
  %1186 = vmatpush1.msra.mxu0 0.0
  %1187 = vmatprep.subr.mxu0 0.0
  %1188 = vmatpush1.msra.mxu0 0.0
  %1189 = vmatprep.subr.mxu0 0.0
  %1190 = vmatpush1.msra.mxu0 0.0
  %1191 = vmatprep.subr.mxu0 0.0
  %1192 = vmatpush1.msra.mxu0 0.0
  %1193 = vmatprep.subr.mxu0 0.0
  %1194 = vmatpush1.msra.mxu0 0.0
  %1195 = vmatprep.subr.mxu0 0.0
  %1196 = vmatpush1.msra.mxu0 0.0
  %1197 = vmatprep.subr.mxu0 0.0
  %1198 = vmatpush1.msra.mxu0 0.0
  %1199 = vmatprep.mubr.f32.mxu0 0.0
  %1200 = vmatmul.mubr.f32.gmra.mrb[0].mxu0 %v1130
  %v1201 = vpop.f32.mrb[0].mxu0
  %v1202 = vadd.f32 %v1042, %v1201
  %v1203 = vpop.f32.mrb[0].mxu0
  %v1204 = vadd.f32 %v1044, %v1203
  %1205 = vmatprep.mubr.f32.mxu0 0.0
  %1206 = vmatmul.mubr.f32.gmra.mrb[0].mxu0 %v1133
  %v1207 = vpop.f32.mrb[0].mxu0
  %v1208 = vadd.f32 %v1048, %v1207
  %v1209 = vpop.f32.mrb[0].mxu0
  %v1210 = vadd.f32 %v1050, %v1209
  %1211 = vdwg.mxu0
  %1212 = vmatprep.subr.mxu0 %v931
  %1213 = vmatpush1.msra.mxu0 %v933
  %1214 = vmatprep.subr.mxu0 %v932
  %1215 = vmatpush1.msra.mxu0 %v934
  %1216 = vmatprep.subr.mxu0 0.0
  %1217 = vmatpush1.msra.mxu0 0.0
  %1218 = vmatprep.subr.mxu0 0.0
  %1219 = vmatpush1.msra.mxu0 0.0
  %1220 = vmatprep.subr.mxu0 0.0
  %1221 = vmatpush1.msra.mxu0 0.0
  %1222 = vmatprep.subr.mxu0 0.0
  %1223 = vmatpush1.msra.mxu0 0.0
  %1224 = vmatprep.subr.mxu0 0.0
  %1225 = vmatpush1.msra.mxu0 0.0
  %1226 = vmatprep.subr.mxu0 0.0
  %1227 = vmatpush1.msra.mxu0 0.0
  %1228 = vmatprep.subr.mxu0 0.0
  %1229 = vmatpush1.msra.mxu0 0.0
  %1230 = vmatprep.subr.mxu0 0.0
  %1231 = vmatpush1.msra.mxu0 0.0
  %1232 = vmatprep.subr.mxu0 0.0
  %1233 = vmatpush1.msra.mxu0 0.0
  %1234 = vmatprep.subr.mxu0 0.0
  %1235 = vmatpush1.msra.mxu0 0.0
  %1236 = vmatprep.subr.mxu0 0.0
  %1237 = vmatpush1.msra.mxu0 0.0
  %1238 = vmatprep.subr.mxu0 0.0
  %1239 = vmatpush1.msra.mxu0 0.0
  %1240 = vmatprep.subr.mxu0 0.0
  %1241 = vmatpush1.msra.mxu0 0.0
  %1242 = vmatprep.subr.mxu0 0.0
  %1243 = vmatpush1.msra.mxu0 0.0
  %1244 = vmatprep.subr.mxu0 0.0
  %1245 = vmatpush1.msra.mxu0 0.0
  %1246 = vmatprep.subr.mxu0 0.0
  %1247 = vmatpush1.msra.mxu0 0.0
  %1248 = vmatprep.subr.mxu0 0.0
  %1249 = vmatpush1.msra.mxu0 0.0
  %1250 = vmatprep.subr.mxu0 0.0
  %1251 = vmatpush1.msra.mxu0 0.0
  %1252 = vmatprep.subr.mxu0 0.0
  %1253 = vmatpush1.msra.mxu0 0.0
  %1254 = vmatprep.subr.mxu0 0.0
  %1255 = vmatpush1.msra.mxu0 0.0
  %1256 = vmatprep.subr.mxu0 0.0
  %1257 = vmatpush1.msra.mxu0 0.0
  %1258 = vmatprep.subr.mxu0 0.0
  %1259 = vmatpush1.msra.mxu0 0.0
  %1260 = vmatprep.subr.mxu0 0.0
  %1261 = vmatpush1.msra.mxu0 0.0
  %1262 = vmatprep.subr.mxu0 0.0
  %1263 = vmatpush1.msra.mxu0 0.0
  %1264 = vmatprep.subr.mxu0 0.0
  %1265 = vmatpush1.msra.mxu0 0.0
  %1266 = vmatprep.subr.mxu0 0.0
  %1267 = vmatpush1.msra.mxu0 0.0
  %1268 = vmatprep.subr.mxu0 0.0
  %1269 = vmatpush1.msra.mxu0 0.0
  %1270 = vmatprep.subr.mxu0 0.0
  %1271 = vmatpush1.msra.mxu0 0.0
  %1272 = vmatprep.subr.mxu0 0.0
  %1273 = vmatpush1.msra.mxu0 0.0
  %1274 = vmatprep.subr.mxu0 0.0
  %1275 = vmatpush1.msra.mxu0 0.0
  %1276 = vmatprep.mubr.f32.mxu0 0.0
  %1277 = vmatmul.mubr.f32.gmra.mrb[0].mxu0 %v1130
  %v1278 = vpop.f32.mrb[0].mxu0
  %v1279 = vadd.f32 %v1119, %v1278
  %v1280 = vpop.f32.mrb[0].mxu0
  %v1281 = vadd.f32 %v1121, %v1280
  %1282 = vmatprep.mubr.f32.mxu0 0.0
  %1283 = vmatmul.mubr.f32.gmra.mrb[0].mxu0 %v1133
  %v1284 = vpop.f32.mrb[0].mxu0
  %v1285 = vadd.f32 %v1125, %v1284
  %v1286 = vpop.f32.mrb[0].mxu0
  %v1287 = vadd.f32 %v1127, %v1286
  %1288 = vdwg.mxu0
  %1289 = vrot.lane.b32.xlu0 %v906, 15
  %v1290 = vpop.permute.xlu0 %1289
  %1291 = vrot.lane.b32.xlu0 %v910, 15
  %v1292 = vpop.permute.xlu0 %1291
  %1293 = vrot.lane.b32.xlu0 %v907, 15
  %v1294 = vpop.permute.xlu0 %1293
  %1295 = vrot.lane.b32.xlu0 %v911, 15
  %v1296 = vpop.permute.xlu0 %1295
  %1297 = vrot.lane.b32.xlu0 %v908, 15
  %v1298 = vpop.permute.xlu0 %1297
  %1299 = vrot.lane.b32.xlu0 %v912, 15
  %v1300 = vpop.permute.xlu0 %1299
  %1301 = vrot.lane.b32.xlu0 %v909, 15
  %v1302 = vpop.permute.xlu0 %1301
  %1303 = vrot.lane.b32.xlu0 %v913, 15
  %v1304 = vpop.permute.xlu0 %1303
  %vm1305 = vcmp.lt.s32.totalorder %v30, 15
  %v1306 = vsel %vm1305, %v1298, %v1302
  %v1307 = vsel %vm1305, %v1300, %v1304
  %v1308 = vsel %vm1305, %v1294, %v1298
  %v1309 = vsel %vm1305, %v1296, %v1300
  %v1310 = vsel %vm1305, %v1290, %v1294
  %v1311 = vsel %vm1305, %v1292, %v1296
  %v1312 = vsel %vm1305, %v1302, %v1290
  %v1313 = vsel %vm1305, %v1304, %v1292
  %s1314 = scalar_lea.vmem %s6, 32
  %v1315 = vld [vmem:[%s1314] sm:$0xff]
  %v1316 = vld [vmem:[%s1314 + $0x8] sm:$0xff]
  %v1318 = vsel %vm144, %v1315, 0
  %v1321 = vsel %vm144, %v1316, 0
  %1323 = vmatprep.subr.mxu0 %v1310
  %1324 = vmatpush1.msra.mxu0 %v1312
  %1325 = vmatprep.subr.mxu0 %v1311
  %1326 = vmatpush1.msra.mxu0 %v1313
  %1327 = vmatprep.subr.mxu0 0.0
  %1328 = vmatpush1.msra.mxu0 0.0
  %1329 = vmatprep.subr.mxu0 0.0
  %1330 = vmatpush1.msra.mxu0 0.0
  %1331 = vmatprep.subr.mxu0 0.0
  %1332 = vmatpush1.msra.mxu0 0.0
  %1333 = vmatprep.subr.mxu0 0.0
  %1334 = vmatpush1.msra.mxu0 0.0
  %1335 = vmatprep.subr.mxu0 0.0
  %1336 = vmatpush1.msra.mxu0 0.0
  %1337 = vmatprep.subr.mxu0 0.0
  %1338 = vmatpush1.msra.mxu0 0.0
  %1339 = vmatprep.subr.mxu0 0.0
  %1340 = vmatpush1.msra.mxu0 0.0
  %1341 = vmatprep.subr.mxu0 0.0
  %1342 = vmatpush1.msra.mxu0 0.0
  %1343 = vmatprep.subr.mxu0 0.0
  %1344 = vmatpush1.msra.mxu0 0.0
  %1345 = vmatprep.subr.mxu0 0.0
  %1346 = vmatpush1.msra.mxu0 0.0
  %1347 = vmatprep.subr.mxu0 0.0
  %1348 = vmatpush1.msra.mxu0 0.0
  %1349 = vmatprep.subr.mxu0 0.0
  %1350 = vmatpush1.msra.mxu0 0.0
  %1351 = vmatprep.subr.mxu0 0.0
  %1352 = vmatpush1.msra.mxu0 0.0
  %1353 = vmatprep.subr.mxu0 0.0
  %1354 = vmatpush1.msra.mxu0 0.0
  %1355 = vmatprep.subr.mxu0 0.0
  %1356 = vmatpush1.msra.mxu0 0.0
  %1357 = vmatprep.subr.mxu0 0.0
  %1358 = vmatpush1.msra.mxu0 0.0
  %1359 = vmatprep.subr.mxu0 0.0
  %1360 = vmatpush1.msra.mxu0 0.0
  %1361 = vmatprep.subr.mxu0 0.0
  %1362 = vmatpush1.msra.mxu0 0.0
  %1363 = vmatprep.subr.mxu0 0.0
  %1364 = vmatpush1.msra.mxu0 0.0
  %1365 = vmatprep.subr.mxu0 0.0
  %1366 = vmatpush1.msra.mxu0 0.0
  %1367 = vmatprep.subr.mxu0 0.0
  %1368 = vmatpush1.msra.mxu0 0.0
  %1369 = vmatprep.subr.mxu0 0.0
  %1370 = vmatpush1.msra.mxu0 0.0
  %1371 = vmatprep.subr.mxu0 0.0
  %1372 = vmatpush1.msra.mxu0 0.0
  %1373 = vmatprep.subr.mxu0 0.0
  %1374 = vmatpush1.msra.mxu0 0.0
  %1375 = vmatprep.subr.mxu0 0.0
  %1376 = vmatpush1.msra.mxu0 0.0
  %1377 = vmatprep.subr.mxu0 0.0
  %1378 = vmatpush1.msra.mxu0 0.0
  %1379 = vmatprep.subr.mxu0 0.0
  %1380 = vmatpush1.msra.mxu0 0.0
  %1381 = vmatprep.subr.mxu0 0.0
  %1382 = vmatpush1.msra.mxu0 0.0
  %1383 = vmatprep.subr.mxu0 0.0
  %1384 = vmatpush1.msra.mxu0 0.0
  %1385 = vmatprep.subr.mxu0 0.0
  %1386 = vmatpush1.msra.mxu0 0.0
  %1387 = vmatprep.mubr.f32.mxu0 0.0
  %1388 = vmatmul.mubr.f32.gmra.mrb[0].mxu0 %v1318
  %v1389 = vpop.f32.mrb[0].mxu0
  %v1390 = vadd.f32 0.0, %v1389
  %v1391 = vpop.f32.mrb[0].mxu0
  %v1392 = vadd.f32 0.0, %v1391
  %1393 = vmatprep.mubr.f32.mxu0 0.0
  %1394 = vmatmul.mubr.f32.gmra.mrb[0].mxu0 %v1321
  %v1395 = vpop.f32.mrb[0].mxu0
  %v1396 = vadd.f32 0.0, %v1395
  %v1397 = vpop.f32.mrb[0].mxu0
  %v1398 = vadd.f32 0.0, %v1397
  %1399 = vdwg.mxu0
  %1400 = vmatprep.subr.mxu0 %v1306
  %1401 = vmatpush1.msra.mxu0 %v1308
  %1402 = vmatprep.subr.mxu0 %v1307
  %1403 = vmatpush1.msra.mxu0 %v1309
  %1404 = vmatprep.subr.mxu0 0.0
  %1405 = vmatpush1.msra.mxu0 0.0
  %1406 = vmatprep.subr.mxu0 0.0
  %1407 = vmatpush1.msra.mxu0 0.0
  %1408 = vmatprep.subr.mxu0 0.0
  %1409 = vmatpush1.msra.mxu0 0.0
  %1410 = vmatprep.subr.mxu0 0.0
  %1411 = vmatpush1.msra.mxu0 0.0
  %1412 = vmatprep.subr.mxu0 0.0
  %1413 = vmatpush1.msra.mxu0 0.0
  %1414 = vmatprep.subr.mxu0 0.0
  %1415 = vmatpush1.msra.mxu0 0.0
  %1416 = vmatprep.subr.mxu0 0.0
  %1417 = vmatpush1.msra.mxu0 0.0
  %1418 = vmatprep.subr.mxu0 0.0
  %1419 = vmatpush1.msra.mxu0 0.0
  %1420 = vmatprep.subr.mxu0 0.0
  %1421 = vmatpush1.msra.mxu0 0.0
  %1422 = vmatprep.subr.mxu0 0.0
  %1423 = vmatpush1.msra.mxu0 0.0
  %1424 = vmatprep.subr.mxu0 0.0
  %1425 = vmatpush1.msra.mxu0 0.0
  %1426 = vmatprep.subr.mxu0 0.0
  %1427 = vmatpush1.msra.mxu0 0.0
  %1428 = vmatprep.subr.mxu0 0.0
  %1429 = vmatpush1.msra.mxu0 0.0
  %1430 = vmatprep.subr.mxu0 0.0
  %1431 = vmatpush1.msra.mxu0 0.0
  %1432 = vmatprep.subr.mxu0 0.0
  %1433 = vmatpush1.msra.mxu0 0.0
  %1434 = vmatprep.subr.mxu0 0.0
  %1435 = vmatpush1.msra.mxu0 0.0
  %1436 = vmatprep.subr.mxu0 0.0
  %1437 = vmatpush1.msra.mxu0 0.0
  %1438 = vmatprep.subr.mxu0 0.0
  %1439 = vmatpush1.msra.mxu0 0.0
  %1440 = vmatprep.subr.mxu0 0.0
  %1441 = vmatpush1.msra.mxu0 0.0
  %1442 = vmatprep.subr.mxu0 0.0
  %1443 = vmatpush1.msra.mxu0 0.0
  %1444 = vmatprep.subr.mxu0 0.0
  %1445 = vmatpush1.msra.mxu0 0.0
  %1446 = vmatprep.subr.mxu0 0.0
  %1447 = vmatpush1.msra.mxu0 0.0
  %1448 = vmatprep.subr.mxu0 0.0
  %1449 = vmatpush1.msra.mxu0 0.0
  %1450 = vmatprep.subr.mxu0 0.0
  %1451 = vmatpush1.msra.mxu0 0.0
  %1452 = vmatprep.subr.mxu0 0.0
  %1453 = vmatpush1.msra.mxu0 0.0
  %1454 = vmatprep.subr.mxu0 0.0
  %1455 = vmatpush1.msra.mxu0 0.0
  %1456 = vmatprep.subr.mxu0 0.0
  %1457 = vmatpush1.msra.mxu0 0.0
  %1458 = vmatprep.subr.mxu0 0.0
  %1459 = vmatpush1.msra.mxu0 0.0
  %1460 = vmatprep.subr.mxu0 0.0
  %1461 = vmatpush1.msra.mxu0 0.0
  %1462 = vmatprep.subr.mxu0 0.0
  %1463 = vmatpush1.msra.mxu0 0.0
  %1464 = vmatprep.mubr.f32.mxu0 0.0
  %1465 = vmatmul.mubr.f32.gmra.mrb[0].mxu0 %v1318
  %v1466 = vpop.f32.mrb[0].mxu0
  %v1467 = vadd.f32 0.0, %v1466
  %v1468 = vpop.f32.mrb[0].mxu0
  %v1469 = vadd.f32 0.0, %v1468
  %1470 = vmatprep.mubr.f32.mxu0 0.0
  %1471 = vmatmul.mubr.f32.gmra.mrb[0].mxu0 %v1321
  %v1472 = vpop.f32.mrb[0].mxu0
  %v1473 = vadd.f32 0.0, %v1472
  %v1474 = vpop.f32.mrb[0].mxu0
  %v1475 = vadd.f32 0.0, %v1474
  %1476 = vdwg.mxu0
  %v1477 = vadd.f32 %v1202, %v1390
  %v1478 = vadd.f32 %v1204, %v1392
  %v1479 = vadd.f32 %v1279, %v1467
  %v1480 = vadd.f32 %v1281, %v1469
  %v1481 = vadd.f32 %v1208, %v1396
  %v1482 = vadd.f32 %v1210, %v1398
  %v1483 = vadd.f32 %v1285, %v1473
  %v1484 = vadd.f32 %v1287, %v1475
  %1485 = vrot.lane.b32.xlu0 %v906, 1
  %v1486 = vpop.permute.xlu0 %1485
  %1487 = vrot.lane.b32.xlu0 %v910, 1
  %v1488 = vpop.permute.xlu0 %1487
  %1489 = vrot.lane.b32.xlu0 %v907, 1
  %v1490 = vpop.permute.xlu0 %1489
  %1491 = vrot.lane.b32.xlu0 %v911, 1
  %v1492 = vpop.permute.xlu0 %1491
  %1493 = vrot.lane.b32.xlu0 %v908, 1
  %v1494 = vpop.permute.xlu0 %1493
  %1495 = vrot.lane.b32.xlu0 %v912, 1
  %v1496 = vpop.permute.xlu0 %1495
  %1497 = vrot.lane.b32.xlu0 %v909, 1
  %v1498 = vpop.permute.xlu0 %1497
  %1499 = vrot.lane.b32.xlu0 %v913, 1
  %v1500 = vpop.permute.xlu0 %1499
  %vm1501 = vcmp.lt.s32.totalorder %v30, 1
  %v1502 = vsel %vm1501, %v1494, %v1498
  %v1503 = vsel %vm1501, %v1496, %v1500
  %v1504 = vsel %vm1501, %v1490, %v1494
  %v1505 = vsel %vm1501, %v1492, %v1496
  %v1506 = vsel %vm1501, %v1486, %v1490
  %v1507 = vsel %vm1501, %v1488, %v1492
  %v1508 = vsel %vm1501, %v1498, %v1486
  %v1509 = vsel %vm1501, %v1500, %v1488
  %s1510 = scalar_lea.vmem %s6, 48
  %v1511 = vld [vmem:[%s1510] sm:$0xff]
  %v1512 = vld [vmem:[%s1510 + $0x8] sm:$0xff]
  %v1514 = vsel %vm144, %v1511, 0
  %v1517 = vsel %vm144, %v1512, 0
  %1519 = vmatprep.subr.mxu0 %v1506
  %1520 = vmatpush1.msra.mxu0 %v1508
  %1521 = vmatprep.subr.mxu0 %v1507
  %1522 = vmatpush1.msra.mxu0 %v1509
  %1523 = vmatprep.subr.mxu0 0.0
  %1524 = vmatpush1.msra.mxu0 0.0
  %1525 = vmatprep.subr.mxu0 0.0
  %1526 = vmatpush1.msra.mxu0 0.0
  %1527 = vmatprep.subr.mxu0 0.0
  %1528 = vmatpush1.msra.mxu0 0.0
  %1529 = vmatprep.subr.mxu0 0.0
  %1530 = vmatpush1.msra.mxu0 0.0
  %1531 = vmatprep.subr.mxu0 0.0
  %1532 = vmatpush1.msra.mxu0 0.0
  %1533 = vmatprep.subr.mxu0 0.0
  %1534 = vmatpush1.msra.mxu0 0.0
  %1535 = vmatprep.subr.mxu0 0.0
  %1536 = vmatpush1.msra.mxu0 0.0
  %1537 = vmatprep.subr.mxu0 0.0
  %1538 = vmatpush1.msra.mxu0 0.0
  %1539 = vmatprep.subr.mxu0 0.0
  %1540 = vmatpush1.msra.mxu0 0.0
  %1541 = vmatprep.subr.mxu0 0.0
  %1542 = vmatpush1.msra.mxu0 0.0
  %1543 = vmatprep.subr.mxu0 0.0
  %1544 = vmatpush1.msra.mxu0 0.0
  %1545 = vmatprep.subr.mxu0 0.0
  %1546 = vmatpush1.msra.mxu0 0.0
  %1547 = vmatprep.subr.mxu0 0.0
  %1548 = vmatpush1.msra.mxu0 0.0
  %1549 = vmatprep.subr.mxu0 0.0
  %1550 = vmatpush1.msra.mxu0 0.0
  %1551 = vmatprep.subr.mxu0 0.0
  %1552 = vmatpush1.msra.mxu0 0.0
  %1553 = vmatprep.subr.mxu0 0.0
  %1554 = vmatpush1.msra.mxu0 0.0
  %1555 = vmatprep.subr.mxu0 0.0
  %1556 = vmatpush1.msra.mxu0 0.0
  %1557 = vmatprep.subr.mxu0 0.0
  %1558 = vmatpush1.msra.mxu0 0.0
  %1559 = vmatprep.subr.mxu0 0.0
  %1560 = vmatpush1.msra.mxu0 0.0
  %1561 = vmatprep.subr.mxu0 0.0
  %1562 = vmatpush1.msra.mxu0 0.0
  %1563 = vmatprep.subr.mxu0 0.0
  %1564 = vmatpush1.msra.mxu0 0.0
  %1565 = vmatprep.subr.mxu0 0.0
  %1566 = vmatpush1.msra.mxu0 0.0
  %1567 = vmatprep.subr.mxu0 0.0
  %1568 = vmatpush1.msra.mxu0 0.0
  %1569 = vmatprep.subr.mxu0 0.0
  %1570 = vmatpush1.msra.mxu0 0.0
  %1571 = vmatprep.subr.mxu0 0.0
  %1572 = vmatpush1.msra.mxu0 0.0
  %1573 = vmatprep.subr.mxu0 0.0
  %1574 = vmatpush1.msra.mxu0 0.0
  %1575 = vmatprep.subr.mxu0 0.0
  %1576 = vmatpush1.msra.mxu0 0.0
  %1577 = vmatprep.subr.mxu0 0.0
  %1578 = vmatpush1.msra.mxu0 0.0
  %1579 = vmatprep.subr.mxu0 0.0
  %1580 = vmatpush1.msra.mxu0 0.0
  %1581 = vmatprep.subr.mxu0 0.0
  %1582 = vmatpush1.msra.mxu0 0.0
  %1583 = vmatprep.mubr.f32.mxu0 0.0
  %1584 = vmatmul.mubr.f32.gmra.mrb[0].mxu0 %v1514
  %v1585 = vpop.f32.mrb[0].mxu0
  %v1586 = vadd.f32 0.0, %v1585
  %v1587 = vpop.f32.mrb[0].mxu0
  %v1588 = vadd.f32 0.0, %v1587
  %1589 = vmatprep.mubr.f32.mxu0 0.0
  %1590 = vmatmul.mubr.f32.gmra.mrb[0].mxu0 %v1517
  %v1591 = vpop.f32.mrb[0].mxu0
  %v1592 = vadd.f32 0.0, %v1591
  %v1593 = vpop.f32.mrb[0].mxu0
  %v1594 = vadd.f32 0.0, %v1593
  %1595 = vdwg.mxu0
  %1596 = vmatprep.subr.mxu0 %v1502
  %1597 = vmatpush1.msra.mxu0 %v1504
  %1598 = vmatprep.subr.mxu0 %v1503
  %1599 = vmatpush1.msra.mxu0 %v1505
  %1600 = vmatprep.subr.mxu0 0.0
  %1601 = vmatpush1.msra.mxu0 0.0
  %1602 = vmatprep.subr.mxu0 0.0
  %1603 = vmatpush1.msra.mxu0 0.0
  %1604 = vmatprep.subr.mxu0 0.0
  %1605 = vmatpush1.msra.mxu0 0.0
  %1606 = vmatprep.subr.mxu0 0.0
  %1607 = vmatpush1.msra.mxu0 0.0
  %1608 = vmatprep.subr.mxu0 0.0
  %1609 = vmatpush1.msra.mxu0 0.0
  %1610 = vmatprep.subr.mxu0 0.0
  %1611 = vmatpush1.msra.mxu0 0.0
  %1612 = vmatprep.subr.mxu0 0.0
  %1613 = vmatpush1.msra.mxu0 0.0
  %1614 = vmatprep.subr.mxu0 0.0
  %1615 = vmatpush1.msra.mxu0 0.0
  %1616 = vmatprep.subr.mxu0 0.0
  %1617 = vmatpush1.msra.mxu0 0.0
  %1618 = vmatprep.subr.mxu0 0.0
  %1619 = vmatpush1.msra.mxu0 0.0
  %1620 = vmatprep.subr.mxu0 0.0
  %1621 = vmatpush1.msra.mxu0 0.0
  %1622 = vmatprep.subr.mxu0 0.0
  %1623 = vmatpush1.msra.mxu0 0.0
  %1624 = vmatprep.subr.mxu0 0.0
  %1625 = vmatpush1.msra.mxu0 0.0
  %1626 = vmatprep.subr.mxu0 0.0
  %1627 = vmatpush1.msra.mxu0 0.0
  %1628 = vmatprep.subr.mxu0 0.0
  %1629 = vmatpush1.msra.mxu0 0.0
  %1630 = vmatprep.subr.mxu0 0.0
  %1631 = vmatpush1.msra.mxu0 0.0
  %1632 = vmatprep.subr.mxu0 0.0
  %1633 = vmatpush1.msra.mxu0 0.0
  %1634 = vmatprep.subr.mxu0 0.0
  %1635 = vmatpush1.msra.mxu0 0.0
  %1636 = vmatprep.subr.mxu0 0.0
  %1637 = vmatpush1.msra.mxu0 0.0
  %1638 = vmatprep.subr.mxu0 0.0
  %1639 = vmatpush1.msra.mxu0 0.0
  %1640 = vmatprep.subr.mxu0 0.0
  %1641 = vmatpush1.msra.mxu0 0.0
  %1642 = vmatprep.subr.mxu0 0.0
  %1643 = vmatpush1.msra.mxu0 0.0
  %1644 = vmatprep.subr.mxu0 0.0
  %1645 = vmatpush1.msra.mxu0 0.0
  %1646 = vmatprep.subr.mxu0 0.0
  %1647 = vmatpush1.msra.mxu0 0.0
  %1648 = vmatprep.subr.mxu0 0.0
  %1649 = vmatpush1.msra.mxu0 0.0
  %1650 = vmatprep.subr.mxu0 0.0
  %1651 = vmatpush1.msra.mxu0 0.0
  %1652 = vmatprep.subr.mxu0 0.0
  %1653 = vmatpush1.msra.mxu0 0.0
  %1654 = vmatprep.subr.mxu0 0.0
  %1655 = vmatpush1.msra.mxu0 0.0
  %1656 = vmatprep.subr.mxu0 0.0
  %1657 = vmatpush1.msra.mxu0 0.0
  %1658 = vmatprep.subr.mxu0 0.0
  %1659 = vmatpush1.msra.mxu0 0.0
  %1660 = vmatprep.mubr.f32.mxu0 0.0
  %1661 = vmatmul.mubr.f32.gmra.mrb[0].mxu0 %v1514
  %v1662 = vpop.f32.mrb[0].mxu0
  %v1663 = vadd.f32 0.0, %v1662
  %v1664 = vpop.f32.mrb[0].mxu0
  %v1665 = vadd.f32 0.0, %v1664
  %1666 = vmatprep.mubr.f32.mxu0 0.0
  %1667 = vmatmul.mubr.f32.gmra.mrb[0].mxu0 %v1517
  %v1668 = vpop.f32.mrb[0].mxu0
  %v1669 = vadd.f32 0.0, %v1668
  %v1670 = vpop.f32.mrb[0].mxu0
  %v1671 = vadd.f32 0.0, %v1670
  %1672 = vdwg.mxu0
  %v1673 = vadd.f32 %v1477, %v1586
  %v1674 = vadd.f32 %v1478, %v1588
  %v1675 = vadd.f32 %v1479, %v1663
  %v1676 = vadd.f32 %v1480, %v1665
  %v1677 = vadd.f32 %v1481, %v1592
  %v1678 = vadd.f32 %v1482, %v1594
  %v1679 = vadd.f32 %v1483, %v1669
  %v1680 = vadd.f32 %v1484, %v1671
  %s1681 = scalar_lea.vmem %s6, 64
  %v1682 = vld [vmem:[%s1681] sm:$0xff]
  %v1683 = vld [vmem:[%s1681 + $0x8] sm:$0xff]
  %v1685 = vsel %vm144, %v1682, 0
  %v1688 = vsel %vm144, %v1683, 0
  %1690 = vmatprep.subr.mxu0 %v907
  %1691 = vmatpush1.msra.mxu0 %v906
  %1692 = vmatprep.subr.mxu0 %v911
  %1693 = vmatpush1.msra.mxu0 %v910
  %1694 = vmatprep.subr.mxu0 0.0
  %1695 = vmatpush1.msra.mxu0 0.0
  %1696 = vmatprep.subr.mxu0 0.0
  %1697 = vmatpush1.msra.mxu0 0.0
  %1698 = vmatprep.subr.mxu0 0.0
  %1699 = vmatpush1.msra.mxu0 0.0
  %1700 = vmatprep.subr.mxu0 0.0
  %1701 = vmatpush1.msra.mxu0 0.0
  %1702 = vmatprep.subr.mxu0 0.0
  %1703 = vmatpush1.msra.mxu0 0.0
  %1704 = vmatprep.subr.mxu0 0.0
  %1705 = vmatpush1.msra.mxu0 0.0
  %1706 = vmatprep.subr.mxu0 0.0
  %1707 = vmatpush1.msra.mxu0 0.0
  %1708 = vmatprep.subr.mxu0 0.0
  %1709 = vmatpush1.msra.mxu0 0.0
  %1710 = vmatprep.subr.mxu0 0.0
  %1711 = vmatpush1.msra.mxu0 0.0
  %1712 = vmatprep.subr.mxu0 0.0
  %1713 = vmatpush1.msra.mxu0 0.0
  %1714 = vmatprep.subr.mxu0 0.0
  %1715 = vmatpush1.msra.mxu0 0.0
  %1716 = vmatprep.subr.mxu0 0.0
  %1717 = vmatpush1.msra.mxu0 0.0
  %1718 = vmatprep.subr.mxu0 0.0
  %1719 = vmatpush1.msra.mxu0 0.0
  %1720 = vmatprep.subr.mxu0 0.0
  %1721 = vmatpush1.msra.mxu0 0.0
  %1722 = vmatprep.subr.mxu0 0.0
  %1723 = vmatpush1.msra.mxu0 0.0
  %1724 = vmatprep.subr.mxu0 0.0
  %1725 = vmatpush1.msra.mxu0 0.0
  %1726 = vmatprep.subr.mxu0 0.0
  %1727 = vmatpush1.msra.mxu0 0.0
  %1728 = vmatprep.subr.mxu0 0.0
  %1729 = vmatpush1.msra.mxu0 0.0
  %1730 = vmatprep.subr.mxu0 0.0
  %1731 = vmatpush1.msra.mxu0 0.0
  %1732 = vmatprep.subr.mxu0 0.0
  %1733 = vmatpush1.msra.mxu0 0.0
  %1734 = vmatprep.subr.mxu0 0.0
  %1735 = vmatpush1.msra.mxu0 0.0
  %1736 = vmatprep.subr.mxu0 0.0
  %1737 = vmatpush1.msra.mxu0 0.0
  %1738 = vmatprep.subr.mxu0 0.0
  %1739 = vmatpush1.msra.mxu0 0.0
  %1740 = vmatprep.subr.mxu0 0.0
  %1741 = vmatpush1.msra.mxu0 0.0
  %1742 = vmatprep.subr.mxu0 0.0
  %1743 = vmatpush1.msra.mxu0 0.0
  %1744 = vmatprep.subr.mxu0 0.0
  %1745 = vmatpush1.msra.mxu0 0.0
  %1746 = vmatprep.subr.mxu0 0.0
  %1747 = vmatpush1.msra.mxu0 0.0
  %1748 = vmatprep.subr.mxu0 0.0
  %1749 = vmatpush1.msra.mxu0 0.0
  %1750 = vmatprep.subr.mxu0 0.0
  %1751 = vmatpush1.msra.mxu0 0.0
  %1752 = vmatprep.subr.mxu0 0.0
  %1753 = vmatpush1.msra.mxu0 0.0
  %1754 = vmatprep.mubr.f32.mxu0 0.0
  %1755 = vmatmul.mubr.f32.gmra.mrb[0].mxu0 %v1685
  %v1756 = vpop.f32.mrb[0].mxu0
  %v1757 = vadd.f32 0.0, %v1756
  %v1758 = vpop.f32.mrb[0].mxu0
  %v1759 = vadd.f32 0.0, %v1758
  %1760 = vmatprep.mubr.f32.mxu0 0.0
  %1761 = vmatmul.mubr.f32.gmra.mrb[0].mxu0 %v1688
  %v1762 = vpop.f32.mrb[0].mxu0
  %v1763 = vadd.f32 0.0, %v1762
  %v1764 = vpop.f32.mrb[0].mxu0
  %v1765 = vadd.f32 0.0, %v1764
  %1766 = vdwg.mxu0
  %1767 = vmatprep.subr.mxu0 %v909
  %1768 = vmatpush1.msra.mxu0 %v908
  %1769 = vmatprep.subr.mxu0 %v913
  %1770 = vmatpush1.msra.mxu0 %v912
  %1771 = vmatprep.subr.mxu0 0.0
  %1772 = vmatpush1.msra.mxu0 0.0
  %1773 = vmatprep.subr.mxu0 0.0
  %1774 = vmatpush1.msra.mxu0 0.0
  %1775 = vmatprep.subr.mxu0 0.0
  %1776 = vmatpush1.msra.mxu0 0.0
  %1777 = vmatprep.subr.mxu0 0.0
  %1778 = vmatpush1.msra.mxu0 0.0
  %1779 = vmatprep.subr.mxu0 0.0
  %1780 = vmatpush1.msra.mxu0 0.0
  %1781 = vmatprep.subr.mxu0 0.0
  %1782 = vmatpush1.msra.mxu0 0.0
  %1783 = vmatprep.subr.mxu0 0.0
  %1784 = vmatpush1.msra.mxu0 0.0
  %1785 = vmatprep.subr.mxu0 0.0
  %1786 = vmatpush1.msra.mxu0 0.0
  %1787 = vmatprep.subr.mxu0 0.0
  %1788 = vmatpush1.msra.mxu0 0.0
  %1789 = vmatprep.subr.mxu0 0.0
  %1790 = vmatpush1.msra.mxu0 0.0
  %1791 = vmatprep.subr.mxu0 0.0
  %1792 = vmatpush1.msra.mxu0 0.0
  %1793 = vmatprep.subr.mxu0 0.0
  %1794 = vmatpush1.msra.mxu0 0.0
  %1795 = vmatprep.subr.mxu0 0.0
  %1796 = vmatpush1.msra.mxu0 0.0
  %1797 = vmatprep.subr.mxu0 0.0
  %1798 = vmatpush1.msra.mxu0 0.0
  %1799 = vmatprep.subr.mxu0 0.0
  %1800 = vmatpush1.msra.mxu0 0.0
  %1801 = vmatprep.subr.mxu0 0.0
  %1802 = vmatpush1.msra.mxu0 0.0
  %1803 = vmatprep.subr.mxu0 0.0
  %1804 = vmatpush1.msra.mxu0 0.0
  %1805 = vmatprep.subr.mxu0 0.0
  %1806 = vmatpush1.msra.mxu0 0.0
  %1807 = vmatprep.subr.mxu0 0.0
  %1808 = vmatpush1.msra.mxu0 0.0
  %1809 = vmatprep.subr.mxu0 0.0
  %1810 = vmatpush1.msra.mxu0 0.0
  %1811 = vmatprep.subr.mxu0 0.0
  %1812 = vmatpush1.msra.mxu0 0.0
  %1813 = vmatprep.subr.mxu0 0.0
  %1814 = vmatpush1.msra.mxu0 0.0
  %1815 = vmatprep.subr.mxu0 0.0
  %1816 = vmatpush1.msra.mxu0 0.0
  %1817 = vmatprep.subr.mxu0 0.0
  %1818 = vmatpush1.msra.mxu0 0.0
  %1819 = vmatprep.subr.mxu0 0.0
  %1820 = vmatpush1.msra.mxu0 0.0
  %1821 = vmatprep.subr.mxu0 0.0
  %1822 = vmatpush1.msra.mxu0 0.0
  %1823 = vmatprep.subr.mxu0 0.0
  %1824 = vmatpush1.msra.mxu0 0.0
  %1825 = vmatprep.subr.mxu0 0.0
  %1826 = vmatpush1.msra.mxu0 0.0
  %1827 = vmatprep.subr.mxu0 0.0
  %1828 = vmatpush1.msra.mxu0 0.0
  %1829 = vmatprep.subr.mxu0 0.0
  %1830 = vmatpush1.msra.mxu0 0.0
  %1831 = vmatprep.mubr.f32.mxu0 0.0
  %1832 = vmatmul.mubr.f32.gmra.mrb[0].mxu0 %v1685
  %v1833 = vpop.f32.mrb[0].mxu0
  %v1834 = vadd.f32 0.0, %v1833
  %v1835 = vpop.f32.mrb[0].mxu0
  %v1836 = vadd.f32 0.0, %v1835
  %1837 = vmatprep.mubr.f32.mxu0 0.0
  %1838 = vmatmul.mubr.f32.gmra.mrb[0].mxu0 %v1688
  %v1839 = vpop.f32.mrb[0].mxu0
  %v1840 = vadd.f32 0.0, %v1839
  %v1841 = vpop.f32.mrb[0].mxu0
  %v1842 = vadd.f32 0.0, %v1841
  %1843 = vdwg.mxu0
  %v1844 = vadd.f32 %v1673, %v1757
  %v1845 = vadd.f32 %v1674, %v1759
  %v1846 = vadd.f32 %v1675, %v1834
  %v1847 = vadd.f32 %v1676, %v1836
  %v1848 = vadd.f32 %v1677, %v1763
  %v1849 = vadd.f32 %v1678, %v1765
  %v1850 = vadd.f32 %v1679, %v1840
  %v1851 = vadd.f32 %v1680, %v1842
  %1852 = vrot.lane.b32.xlu0 %v906, 127
  %v1853 = vpop.permute.xlu0 %1852
  %1854 = vrot.lane.b32.xlu0 %v910, 127
  %v1855 = vpop.permute.xlu0 %1854
  %1856 = vrot.lane.b32.xlu0 %v907, 127
  %v1857 = vpop.permute.xlu0 %1856
  %1858 = vrot.lane.b32.xlu0 %v911, 127
  %v1859 = vpop.permute.xlu0 %1858
  %1860 = vrot.lane.b32.xlu0 %v908, 127
  %v1861 = vpop.permute.xlu0 %1860
  %1862 = vrot.lane.b32.xlu0 %v912, 127
  %v1863 = vpop.permute.xlu0 %1862
  %1864 = vrot.lane.b32.xlu0 %v909, 127
  %v1865 = vpop.permute.xlu0 %1864
  %1866 = vrot.lane.b32.xlu0 %v913, 127
  %v1867 = vpop.permute.xlu0 %1866
  %vm1868 = vcmp.lt.s32.totalorder %v30, 127
  %v1869 = vsel %vm1868, %v1861, %v1865
  %v1870 = vsel %vm1868, %v1863, %v1867
  %v1871 = vsel %vm1868, %v1857, %v1861
  %v1872 = vsel %vm1868, %v1859, %v1863
  %v1873 = vsel %vm1868, %v1853, %v1857
  %v1874 = vsel %vm1868, %v1855, %v1859
  %v1875 = vsel %vm1868, %v1865, %v1853
  %v1876 = vsel %vm1868, %v1867, %v1855
  %s1877 = scalar_lea.vmem %s6, 80
  %v1878 = vld [vmem:[%s1877] sm:$0xff]
  %v1879 = vld [vmem:[%s1877 + $0x8] sm:$0xff]
  %v1881 = vsel %vm144, %v1878, 0
  %v1884 = vsel %vm144, %v1879, 0
  %1886 = vmatprep.subr.mxu0 %v1871
  %1887 = vmatpush1.msra.mxu0 %v1873
  %1888 = vmatprep.subr.mxu0 %v1872
  %1889 = vmatpush1.msra.mxu0 %v1874
  %1890 = vmatprep.subr.mxu0 0.0
  %1891 = vmatpush1.msra.mxu0 0.0
  %1892 = vmatprep.subr.mxu0 0.0
  %1893 = vmatpush1.msra.mxu0 0.0
  %1894 = vmatprep.subr.mxu0 0.0
  %1895 = vmatpush1.msra.mxu0 0.0
  %1896 = vmatprep.subr.mxu0 0.0
  %1897 = vmatpush1.msra.mxu0 0.0
  %1898 = vmatprep.subr.mxu0 0.0
  %1899 = vmatpush1.msra.mxu0 0.0
  %1900 = vmatprep.subr.mxu0 0.0
  %1901 = vmatpush1.msra.mxu0 0.0
  %1902 = vmatprep.subr.mxu0 0.0
  %1903 = vmatpush1.msra.mxu0 0.0
  %1904 = vmatprep.subr.mxu0 0.0
  %1905 = vmatpush1.msra.mxu0 0.0
  %1906 = vmatprep.subr.mxu0 0.0
  %1907 = vmatpush1.msra.mxu0 0.0
  %1908 = vmatprep.subr.mxu0 0.0
  %1909 = vmatpush1.msra.mxu0 0.0
  %1910 = vmatprep.subr.mxu0 0.0
  %1911 = vmatpush1.msra.mxu0 0.0
  %1912 = vmatprep.subr.mxu0 0.0
  %1913 = vmatpush1.msra.mxu0 0.0
  %1914 = vmatprep.subr.mxu0 0.0
  %1915 = vmatpush1.msra.mxu0 0.0
  %1916 = vmatprep.subr.mxu0 0.0
  %1917 = vmatpush1.msra.mxu0 0.0
  %1918 = vmatprep.subr.mxu0 0.0
  %1919 = vmatpush1.msra.mxu0 0.0
  %1920 = vmatprep.subr.mxu0 0.0
  %1921 = vmatpush1.msra.mxu0 0.0
  %1922 = vmatprep.subr.mxu0 0.0
  %1923 = vmatpush1.msra.mxu0 0.0
  %1924 = vmatprep.subr.mxu0 0.0
  %1925 = vmatpush1.msra.mxu0 0.0
  %1926 = vmatprep.subr.mxu0 0.0
  %1927 = vmatpush1.msra.mxu0 0.0
  %1928 = vmatprep.subr.mxu0 0.0
  %1929 = vmatpush1.msra.mxu0 0.0
  %1930 = vmatprep.subr.mxu0 0.0
  %1931 = vmatpush1.msra.mxu0 0.0
  %1932 = vmatprep.subr.mxu0 0.0
  %1933 = vmatpush1.msra.mxu0 0.0
  %1934 = vmatprep.subr.mxu0 0.0
  %1935 = vmatpush1.msra.mxu0 0.0
  %1936 = vmatprep.subr.mxu0 0.0
  %1937 = vmatpush1.msra.mxu0 0.0
  %1938 = vmatprep.subr.mxu0 0.0
  %1939 = vmatpush1.msra.mxu0 0.0
  %1940 = vmatprep.subr.mxu0 0.0
  %1941 = vmatpush1.msra.mxu0 0.0
  %1942 = vmatprep.subr.mxu0 0.0
  %1943 = vmatpush1.msra.mxu0 0.0
  %1944 = vmatprep.subr.mxu0 0.0
  %1945 = vmatpush1.msra.mxu0 0.0
  %1946 = vmatprep.subr.mxu0 0.0
  %1947 = vmatpush1.msra.mxu0 0.0
  %1948 = vmatprep.subr.mxu0 0.0
  %1949 = vmatpush1.msra.mxu0 0.0
  %1950 = vmatprep.mubr.f32.mxu0 0.0
  %1951 = vmatmul.mubr.f32.gmra.mrb[0].mxu0 %v1881
  %v1952 = vpop.f32.mrb[0].mxu0
  %v1953 = vadd.f32 0.0, %v1952
  %v1954 = vpop.f32.mrb[0].mxu0
  %v1955 = vadd.f32 0.0, %v1954
  %1956 = vmatprep.mubr.f32.mxu0 0.0
  %1957 = vmatmul.mubr.f32.gmra.mrb[0].mxu0 %v1884
  %v1958 = vpop.f32.mrb[0].mxu0
  %v1959 = vadd.f32 0.0, %v1958
  %v1960 = vpop.f32.mrb[0].mxu0
  %v1961 = vadd.f32 0.0, %v1960
  %1962 = vdwg.mxu0
  %1963 = vmatprep.subr.mxu0 %v1875
  %1964 = vmatpush1.msra.mxu0 %v1869
  %1965 = vmatprep.subr.mxu0 %v1876
  %1966 = vmatpush1.msra.mxu0 %v1870
  %1967 = vmatprep.subr.mxu0 0.0
  %1968 = vmatpush1.msra.mxu0 0.0
  %1969 = vmatprep.subr.mxu0 0.0
  %1970 = vmatpush1.msra.mxu0 0.0
  %1971 = vmatprep.subr.mxu0 0.0
  %1972 = vmatpush1.msra.mxu0 0.0
  %1973 = vmatprep.subr.mxu0 0.0
  %1974 = vmatpush1.msra.mxu0 0.0
  %1975 = vmatprep.subr.mxu0 0.0
  %1976 = vmatpush1.msra.mxu0 0.0
  %1977 = vmatprep.subr.mxu0 0.0
  %1978 = vmatpush1.msra.mxu0 0.0
  %1979 = vmatprep.subr.mxu0 0.0
  %1980 = vmatpush1.msra.mxu0 0.0
  %1981 = vmatprep.subr.mxu0 0.0
  %1982 = vmatpush1.msra.mxu0 0.0
  %1983 = vmatprep.subr.mxu0 0.0
  %1984 = vmatpush1.msra.mxu0 0.0
  %1985 = vmatprep.subr.mxu0 0.0
  %1986 = vmatpush1.msra.mxu0 0.0
  %1987 = vmatprep.subr.mxu0 0.0
  %1988 = vmatpush1.msra.mxu0 0.0
  %1989 = vmatprep.subr.mxu0 0.0
  %1990 = vmatpush1.msra.mxu0 0.0
  %1991 = vmatprep.subr.mxu0 0.0
  %1992 = vmatpush1.msra.mxu0 0.0
  %1993 = vmatprep.subr.mxu0 0.0
  %1994 = vmatpush1.msra.mxu0 0.0
  %1995 = vmatprep.subr.mxu0 0.0
  %1996 = vmatpush1.msra.mxu0 0.0
  %1997 = vmatprep.subr.mxu0 0.0
  %1998 = vmatpush1.msra.mxu0 0.0
  %1999 = vmatprep.subr.mxu0 0.0
  %2000 = vmatpush1.msra.mxu0 0.0
  %2001 = vmatprep.subr.mxu0 0.0
  %2002 = vmatpush1.msra.mxu0 0.0
  %2003 = vmatprep.subr.mxu0 0.0
  %2004 = vmatpush1.msra.mxu0 0.0
  %2005 = vmatprep.subr.mxu0 0.0
  %2006 = vmatpush1.msra.mxu0 0.0
  %2007 = vmatprep.subr.mxu0 0.0
  %2008 = vmatpush1.msra.mxu0 0.0
  %2009 = vmatprep.subr.mxu0 0.0
  %2010 = vmatpush1.msra.mxu0 0.0
  %2011 = vmatprep.subr.mxu0 0.0
  %2012 = vmatpush1.msra.mxu0 0.0
  %2013 = vmatprep.subr.mxu0 0.0
  %2014 = vmatpush1.msra.mxu0 0.0
  %2015 = vmatprep.subr.mxu0 0.0
  %2016 = vmatpush1.msra.mxu0 0.0
  %2017 = vmatprep.subr.mxu0 0.0
  %2018 = vmatpush1.msra.mxu0 0.0
  %2019 = vmatprep.subr.mxu0 0.0
  %2020 = vmatpush1.msra.mxu0 0.0
  %2021 = vmatprep.subr.mxu0 0.0
  %2022 = vmatpush1.msra.mxu0 0.0
  %2023 = vmatprep.subr.mxu0 0.0
  %2024 = vmatpush1.msra.mxu0 0.0
  %2025 = vmatprep.subr.mxu0 0.0
  %2026 = vmatpush1.msra.mxu0 0.0
  %2027 = vmatprep.mubr.f32.mxu0 0.0
  %2028 = vmatmul.mubr.f32.gmra.mrb[0].mxu0 %v1881
  %v2029 = vpop.f32.mrb[0].mxu0
  %v2030 = vadd.f32 0.0, %v2029
  %v2031 = vpop.f32.mrb[0].mxu0
  %v2032 = vadd.f32 0.0, %v2031
  %2033 = vmatprep.mubr.f32.mxu0 0.0
  %2034 = vmatmul.mubr.f32.gmra.mrb[0].mxu0 %v1884
  %v2035 = vpop.f32.mrb[0].mxu0
  %v2036 = vadd.f32 0.0, %v2035
  %v2037 = vpop.f32.mrb[0].mxu0
  %v2038 = vadd.f32 0.0, %v2037
  %2039 = vdwg.mxu0
  %v2040 = vadd.f32 %v1844, %v1953
  %v2041 = vadd.f32 %v1845, %v1955
  %v2042 = vadd.f32 %v1846, %v2030
  %v2043 = vadd.f32 %v1847, %v2032
  %v2044 = vadd.f32 %v1848, %v1959
  %v2045 = vadd.f32 %v1849, %v1961
  %v2046 = vadd.f32 %v1850, %v2036
  %v2047 = vadd.f32 %v1851, %v2038
  %2048 = vrot.lane.b32.xlu0 %v906, 113
  %v2049 = vpop.permute.xlu0 %2048
  %2050 = vrot.lane.b32.xlu0 %v910, 113
  %v2051 = vpop.permute.xlu0 %2050
  %2052 = vrot.lane.b32.xlu0 %v907, 113
  %v2053 = vpop.permute.xlu0 %2052
  %2054 = vrot.lane.b32.xlu0 %v911, 113
  %v2055 = vpop.permute.xlu0 %2054
  %2056 = vrot.lane.b32.xlu0 %v908, 113
  %v2057 = vpop.permute.xlu0 %2056
  %2058 = vrot.lane.b32.xlu0 %v912, 113
  %v2059 = vpop.permute.xlu0 %2058
  %2060 = vrot.lane.b32.xlu0 %v909, 113
  %v2061 = vpop.permute.xlu0 %2060
  %2062 = vrot.lane.b32.xlu0 %v913, 113
  %v2063 = vpop.permute.xlu0 %2062
  %vm2064 = vcmp.lt.s32.totalorder %v30, 113
  %v2065 = vsel %vm2064, %v2057, %v2061
  %v2066 = vsel %vm2064, %v2059, %v2063
  %v2067 = vsel %vm2064, %v2053, %v2057
  %v2068 = vsel %vm2064, %v2055, %v2059
  %v2069 = vsel %vm2064, %v2049, %v2053
  %v2070 = vsel %vm2064, %v2051, %v2055
  %v2071 = vsel %vm2064, %v2061, %v2049
  %v2072 = vsel %vm2064, %v2063, %v2051
  %s2073 = scalar_lea.vmem %s6, 96
  %v2074 = vld [vmem:[%s2073] sm:$0xff]
  %v2075 = vld [vmem:[%s2073 + $0x8] sm:$0xff]
  %v2077 = vsel %vm144, %v2074, 0
  %v2080 = vsel %vm144, %v2075, 0
  %2082 = vmatprep.subr.mxu0 %v2067
  %2083 = vmatpush1.msra.mxu0 %v2069
  %2084 = vmatprep.subr.mxu0 %v2068
  %2085 = vmatpush1.msra.mxu0 %v2070
  %2086 = vmatprep.subr.mxu0 0.0
  %2087 = vmatpush1.msra.mxu0 0.0
  %2088 = vmatprep.subr.mxu0 0.0
  %2089 = vmatpush1.msra.mxu0 0.0
  %2090 = vmatprep.subr.mxu0 0.0
  %2091 = vmatpush1.msra.mxu0 0.0
  %2092 = vmatprep.subr.mxu0 0.0
  %2093 = vmatpush1.msra.mxu0 0.0
  %2094 = vmatprep.subr.mxu0 0.0
  %2095 = vmatpush1.msra.mxu0 0.0
  %2096 = vmatprep.subr.mxu0 0.0
  %2097 = vmatpush1.msra.mxu0 0.0
  %2098 = vmatprep.subr.mxu0 0.0
  %2099 = vmatpush1.msra.mxu0 0.0
  %2100 = vmatprep.subr.mxu0 0.0
  %2101 = vmatpush1.msra.mxu0 0.0
  %2102 = vmatprep.subr.mxu0 0.0
  %2103 = vmatpush1.msra.mxu0 0.0
  %2104 = vmatprep.subr.mxu0 0.0
  %2105 = vmatpush1.msra.mxu0 0.0
  %2106 = vmatprep.subr.mxu0 0.0
  %2107 = vmatpush1.msra.mxu0 0.0
  %2108 = vmatprep.subr.mxu0 0.0
  %2109 = vmatpush1.msra.mxu0 0.0
  %2110 = vmatprep.subr.mxu0 0.0
  %2111 = vmatpush1.msra.mxu0 0.0
  %2112 = vmatprep.subr.mxu0 0.0
  %2113 = vmatpush1.msra.mxu0 0.0
  %2114 = vmatprep.subr.mxu0 0.0
  %2115 = vmatpush1.msra.mxu0 0.0
  %2116 = vmatprep.subr.mxu0 0.0
  %2117 = vmatpush1.msra.mxu0 0.0
  %2118 = vmatprep.subr.mxu0 0.0
  %2119 = vmatpush1.msra.mxu0 0.0
  %2120 = vmatprep.subr.mxu0 0.0
  %2121 = vmatpush1.msra.mxu0 0.0
  %2122 = vmatprep.subr.mxu0 0.0
  %2123 = vmatpush1.msra.mxu0 0.0
  %2124 = vmatprep.subr.mxu0 0.0
  %2125 = vmatpush1.msra.mxu0 0.0
  %2126 = vmatprep.subr.mxu0 0.0
  %2127 = vmatpush1.msra.mxu0 0.0
  %2128 = vmatprep.subr.mxu0 0.0
  %2129 = vmatpush1.msra.mxu0 0.0
  %2130 = vmatprep.subr.mxu0 0.0
  %2131 = vmatpush1.msra.mxu0 0.0
  %2132 = vmatprep.subr.mxu0 0.0
  %2133 = vmatpush1.msra.mxu0 0.0
  %2134 = vmatprep.subr.mxu0 0.0
  %2135 = vmatpush1.msra.mxu0 0.0
  %2136 = vmatprep.subr.mxu0 0.0
  %2137 = vmatpush1.msra.mxu0 0.0
  %2138 = vmatprep.subr.mxu0 0.0
  %2139 = vmatpush1.msra.mxu0 0.0
  %2140 = vmatprep.subr.mxu0 0.0
  %2141 = vmatpush1.msra.mxu0 0.0
  %2142 = vmatprep.subr.mxu0 0.0
  %2143 = vmatpush1.msra.mxu0 0.0
  %2144 = vmatprep.subr.mxu0 0.0
  %2145 = vmatpush1.msra.mxu0 0.0
  %2146 = vmatprep.mubr.f32.mxu0 0.0
  %2147 = vmatmul.mubr.f32.gmra.mrb[0].mxu0 %v2077
  %v2148 = vpop.f32.mrb[0].mxu0
  %v2149 = vadd.f32 0.0, %v2148
  %v2150 = vpop.f32.mrb[0].mxu0
  %v2151 = vadd.f32 0.0, %v2150
  %2152 = vmatprep.mubr.f32.mxu0 0.0
  %2153 = vmatmul.mubr.f32.gmra.mrb[0].mxu0 %v2080
  %v2154 = vpop.f32.mrb[0].mxu0
  %v2155 = vadd.f32 0.0, %v2154
  %v2156 = vpop.f32.mrb[0].mxu0
  %v2157 = vadd.f32 0.0, %v2156
  %2158 = vdwg.mxu0
  %2159 = vmatprep.subr.mxu0 %v2071
  %2160 = vmatpush1.msra.mxu0 %v2065
  %2161 = vmatprep.subr.mxu0 %v2072
  %2162 = vmatpush1.msra.mxu0 %v2066
  %2163 = vmatprep.subr.mxu0 0.0
  %2164 = vmatpush1.msra.mxu0 0.0
  %2165 = vmatprep.subr.mxu0 0.0
  %2166 = vmatpush1.msra.mxu0 0.0
  %2167 = vmatprep.subr.mxu0 0.0
  %2168 = vmatpush1.msra.mxu0 0.0
  %2169 = vmatprep.subr.mxu0 0.0
  %2170 = vmatpush1.msra.mxu0 0.0
  %2171 = vmatprep.subr.mxu0 0.0
  %2172 = vmatpush1.msra.mxu0 0.0
  %2173 = vmatprep.subr.mxu0 0.0
  %2174 = vmatpush1.msra.mxu0 0.0
  %2175 = vmatprep.subr.mxu0 0.0
  %2176 = vmatpush1.msra.mxu0 0.0
  %2177 = vmatprep.subr.mxu0 0.0
  %2178 = vmatpush1.msra.mxu0 0.0
  %2179 = vmatprep.subr.mxu0 0.0
  %2180 = vmatpush1.msra.mxu0 0.0
  %2181 = vmatprep.subr.mxu0 0.0
  %2182 = vmatpush1.msra.mxu0 0.0
  %2183 = vmatprep.subr.mxu0 0.0
  %2184 = vmatpush1.msra.mxu0 0.0
  %2185 = vmatprep.subr.mxu0 0.0
  %2186 = vmatpush1.msra.mxu0 0.0
  %2187 = vmatprep.subr.mxu0 0.0
  %2188 = vmatpush1.msra.mxu0 0.0
  %2189 = vmatprep.subr.mxu0 0.0
  %2190 = vmatpush1.msra.mxu0 0.0
  %2191 = vmatprep.subr.mxu0 0.0
  %2192 = vmatpush1.msra.mxu0 0.0
  %2193 = vmatprep.subr.mxu0 0.0
  %2194 = vmatpush1.msra.mxu0 0.0
  %2195 = vmatprep.subr.mxu0 0.0
  %2196 = vmatpush1.msra.mxu0 0.0
  %2197 = vmatprep.subr.mxu0 0.0
  %2198 = vmatpush1.msra.mxu0 0.0
  %2199 = vmatprep.subr.mxu0 0.0
  %2200 = vmatpush1.msra.mxu0 0.0
  %2201 = vmatprep.subr.mxu0 0.0
  %2202 = vmatpush1.msra.mxu0 0.0
  %2203 = vmatprep.subr.mxu0 0.0
  %2204 = vmatpush1.msra.mxu0 0.0
  %2205 = vmatprep.subr.mxu0 0.0
  %2206 = vmatpush1.msra.mxu0 0.0
  %2207 = vmatprep.subr.mxu0 0.0
  %2208 = vmatpush1.msra.mxu0 0.0
  %2209 = vmatprep.subr.mxu0 0.0
  %2210 = vmatpush1.msra.mxu0 0.0
  %2211 = vmatprep.subr.mxu0 0.0
  %2212 = vmatpush1.msra.mxu0 0.0
  %2213 = vmatprep.subr.mxu0 0.0
  %2214 = vmatpush1.msra.mxu0 0.0
  %2215 = vmatprep.subr.mxu0 0.0
  %2216 = vmatpush1.msra.mxu0 0.0
  %2217 = vmatprep.subr.mxu0 0.0
  %2218 = vmatpush1.msra.mxu0 0.0
  %2219 = vmatprep.subr.mxu0 0.0
  %2220 = vmatpush1.msra.mxu0 0.0
  %2221 = vmatprep.subr.mxu0 0.0
  %2222 = vmatpush1.msra.mxu0 0.0
  %2223 = vmatprep.mubr.f32.mxu0 0.0
  %2224 = vmatmul.mubr.f32.gmra.mrb[0].mxu0 %v2077
  %v2225 = vpop.f32.mrb[0].mxu0
  %v2226 = vadd.f32 0.0, %v2225
  %v2227 = vpop.f32.mrb[0].mxu0
  %v2228 = vadd.f32 0.0, %v2227
  %2229 = vmatprep.mubr.f32.mxu0 0.0
  %2230 = vmatmul.mubr.f32.gmra.mrb[0].mxu0 %v2080
  %v2231 = vpop.f32.mrb[0].mxu0
  %v2232 = vadd.f32 0.0, %v2231
  %v2233 = vpop.f32.mrb[0].mxu0
  %v2234 = vadd.f32 0.0, %v2233
  %2235 = vdwg.mxu0
  %v2236 = vadd.f32 %v2040, %v2149
  %v2237 = vadd.f32 %v2041, %v2151
  %v2238 = vadd.f32 %v2042, %v2226
  %v2239 = vadd.f32 %v2043, %v2228
  %v2240 = vadd.f32 %v2044, %v2155
  %v2241 = vadd.f32 %v2045, %v2157
  %v2242 = vadd.f32 %v2046, %v2232
  %v2243 = vadd.f32 %v2047, %v2234
  %2244 = vrot.lane.b32.xlu0 %v906, 112
  %v2245 = vpop.permute.xlu0 %2244
  %2246 = vrot.lane.b32.xlu0 %v910, 112
  %v2247 = vpop.permute.xlu0 %2246
  %2248 = vrot.lane.b32.xlu0 %v907, 112
  %v2249 = vpop.permute.xlu0 %2248
  %2250 = vrot.lane.b32.xlu0 %v911, 112
  %v2251 = vpop.permute.xlu0 %2250
  %2252 = vrot.lane.b32.xlu0 %v908, 112
  %v2253 = vpop.permute.xlu0 %2252
  %2254 = vrot.lane.b32.xlu0 %v912, 112
  %v2255 = vpop.permute.xlu0 %2254
  %2256 = vrot.lane.b32.xlu0 %v909, 112
  %v2257 = vpop.permute.xlu0 %2256
  %2258 = vrot.lane.b32.xlu0 %v913, 112
  %v2259 = vpop.permute.xlu0 %2258
  %vm2260 = vcmp.lt.s32.totalorder %v30, 112
  %v2261 = vsel %vm2260, %v2253, %v2257
  %v2262 = vsel %vm2260, %v2255, %v2259
  %v2263 = vsel %vm2260, %v2249, %v2253
  %v2264 = vsel %vm2260, %v2251, %v2255
  %v2265 = vsel %vm2260, %v2245, %v2249
  %v2266 = vsel %vm2260, %v2247, %v2251
  %v2267 = vsel %vm2260, %v2257, %v2245
  %v2268 = vsel %vm2260, %v2259, %v2247
  %s2269 = scalar_lea.vmem %s6, 112
  %v2270 = vld [vmem:[%s2269] sm:$0xff]
  %v2271 = vld [vmem:[%s2269 + $0x8] sm:$0xff]
  %v2273 = vsel %vm144, %v2270, 0
  %v2276 = vsel %vm144, %v2271, 0
  %2278 = vmatprep.subr.mxu0 %v2263
  %2279 = vmatpush1.msra.mxu0 %v2265
  %2280 = vmatprep.subr.mxu0 %v2264
  %2281 = vmatpush1.msra.mxu0 %v2266
  %2282 = vmatprep.subr.mxu0 0.0
  %2283 = vmatpush1.msra.mxu0 0.0
  %2284 = vmatprep.subr.mxu0 0.0
  %2285 = vmatpush1.msra.mxu0 0.0
  %2286 = vmatprep.subr.mxu0 0.0
  %2287 = vmatpush1.msra.mxu0 0.0
  %2288 = vmatprep.subr.mxu0 0.0
  %2289 = vmatpush1.msra.mxu0 0.0
  %2290 = vmatprep.subr.mxu0 0.0
  %2291 = vmatpush1.msra.mxu0 0.0
  %2292 = vmatprep.subr.mxu0 0.0
  %2293 = vmatpush1.msra.mxu0 0.0
  %2294 = vmatprep.subr.mxu0 0.0
  %2295 = vmatpush1.msra.mxu0 0.0
  %2296 = vmatprep.subr.mxu0 0.0
  %2297 = vmatpush1.msra.mxu0 0.0
  %2298 = vmatprep.subr.mxu0 0.0
  %2299 = vmatpush1.msra.mxu0 0.0
  %2300 = vmatprep.subr.mxu0 0.0
  %2301 = vmatpush1.msra.mxu0 0.0
  %2302 = vmatprep.subr.mxu0 0.0
  %2303 = vmatpush1.msra.mxu0 0.0
  %2304 = vmatprep.subr.mxu0 0.0
  %2305 = vmatpush1.msra.mxu0 0.0
  %2306 = vmatprep.subr.mxu0 0.0
  %2307 = vmatpush1.msra.mxu0 0.0
  %2308 = vmatprep.subr.mxu0 0.0
  %2309 = vmatpush1.msra.mxu0 0.0
  %2310 = vmatprep.subr.mxu0 0.0
  %2311 = vmatpush1.msra.mxu0 0.0
  %2312 = vmatprep.subr.mxu0 0.0
  %2313 = vmatpush1.msra.mxu0 0.0
  %2314 = vmatprep.subr.mxu0 0.0
  %2315 = vmatpush1.msra.mxu0 0.0
  %2316 = vmatprep.subr.mxu0 0.0
  %2317 = vmatpush1.msra.mxu0 0.0
  %2318 = vmatprep.subr.mxu0 0.0
  %2319 = vmatpush1.msra.mxu0 0.0
  %2320 = vmatprep.subr.mxu0 0.0
  %2321 = vmatpush1.msra.mxu0 0.0
  %2322 = vmatprep.subr.mxu0 0.0
  %2323 = vmatpush1.msra.mxu0 0.0
  %2324 = vmatprep.subr.mxu0 0.0
  %2325 = vmatpush1.msra.mxu0 0.0
  %2326 = vmatprep.subr.mxu0 0.0
  %2327 = vmatpush1.msra.mxu0 0.0
  %2328 = vmatprep.subr.mxu0 0.0
  %2329 = vmatpush1.msra.mxu0 0.0
  %2330 = vmatprep.subr.mxu0 0.0
  %2331 = vmatpush1.msra.mxu0 0.0
  %2332 = vmatprep.subr.mxu0 0.0
  %2333 = vmatpush1.msra.mxu0 0.0
  %2334 = vmatprep.subr.mxu0 0.0
  %2335 = vmatpush1.msra.mxu0 0.0
  %2336 = vmatprep.subr.mxu0 0.0
  %2337 = vmatpush1.msra.mxu0 0.0
  %2338 = vmatprep.subr.mxu0 0.0
  %2339 = vmatpush1.msra.mxu0 0.0
  %2340 = vmatprep.subr.mxu0 0.0
  %2341 = vmatpush1.msra.mxu0 0.0
  %2342 = vmatprep.mubr.f32.mxu0 0.0
  %2343 = vmatmul.mubr.f32.gmra.mrb[0].mxu0 %v2273
  %v2344 = vpop.f32.mrb[0].mxu0
  %v2345 = vadd.f32 0.0, %v2344
  %v2346 = vpop.f32.mrb[0].mxu0
  %v2347 = vadd.f32 0.0, %v2346
  %2348 = vmatprep.mubr.f32.mxu0 0.0
  %2349 = vmatmul.mubr.f32.gmra.mrb[0].mxu0 %v2276
  %v2350 = vpop.f32.mrb[0].mxu0
  %v2351 = vadd.f32 0.0, %v2350
  %v2352 = vpop.f32.mrb[0].mxu0
  %v2353 = vadd.f32 0.0, %v2352
  %2354 = vdwg.mxu0
  %2355 = vmatprep.subr.mxu0 %v2267
  %2356 = vmatpush1.msra.mxu0 %v2261
  %2357 = vmatprep.subr.mxu0 %v2268
  %2358 = vmatpush1.msra.mxu0 %v2262
  %2359 = vmatprep.subr.mxu0 0.0
  %2360 = vmatpush1.msra.mxu0 0.0
  %2361 = vmatprep.subr.mxu0 0.0
  %2362 = vmatpush1.msra.mxu0 0.0
  %2363 = vmatprep.subr.mxu0 0.0
  %2364 = vmatpush1.msra.mxu0 0.0
  %2365 = vmatprep.subr.mxu0 0.0
  %2366 = vmatpush1.msra.mxu0 0.0
  %2367 = vmatprep.subr.mxu0 0.0
  %2368 = vmatpush1.msra.mxu0 0.0
  %2369 = vmatprep.subr.mxu0 0.0
  %2370 = vmatpush1.msra.mxu0 0.0
  %2371 = vmatprep.subr.mxu0 0.0
  %2372 = vmatpush1.msra.mxu0 0.0
  %2373 = vmatprep.subr.mxu0 0.0
  %2374 = vmatpush1.msra.mxu0 0.0
  %2375 = vmatprep.subr.mxu0 0.0
  %2376 = vmatpush1.msra.mxu0 0.0
  %2377 = vmatprep.subr.mxu0 0.0
  %2378 = vmatpush1.msra.mxu0 0.0
  %2379 = vmatprep.subr.mxu0 0.0
  %2380 = vmatpush1.msra.mxu0 0.0
  %2381 = vmatprep.subr.mxu0 0.0
  %2382 = vmatpush1.msra.mxu0 0.0
  %2383 = vmatprep.subr.mxu0 0.0
  %2384 = vmatpush1.msra.mxu0 0.0
  %2385 = vmatprep.subr.mxu0 0.0
  %2386 = vmatpush1.msra.mxu0 0.0
  %2387 = vmatprep.subr.mxu0 0.0
  %2388 = vmatpush1.msra.mxu0 0.0
  %2389 = vmatprep.subr.mxu0 0.0
  %2390 = vmatpush1.msra.mxu0 0.0
  %2391 = vmatprep.subr.mxu0 0.0
  %2392 = vmatpush1.msra.mxu0 0.0
  %2393 = vmatprep.subr.mxu0 0.0
  %2394 = vmatpush1.msra.mxu0 0.0
  %2395 = vmatprep.subr.mxu0 0.0
  %2396 = vmatpush1.msra.mxu0 0.0
  %2397 = vmatprep.subr.mxu0 0.0
  %2398 = vmatpush1.msra.mxu0 0.0
  %2399 = vmatprep.subr.mxu0 0.0
  %2400 = vmatpush1.msra.mxu0 0.0
  %2401 = vmatprep.subr.mxu0 0.0
  %2402 = vmatpush1.msra.mxu0 0.0
  %2403 = vmatprep.subr.mxu0 0.0
  %2404 = vmatpush1.msra.mxu0 0.0
  %2405 = vmatprep.subr.mxu0 0.0
  %2406 = vmatpush1.msra.mxu0 0.0
  %2407 = vmatprep.subr.mxu0 0.0
  %2408 = vmatpush1.msra.mxu0 0.0
  %2409 = vmatprep.subr.mxu0 0.0
  %2410 = vmatpush1.msra.mxu0 0.0
  %2411 = vmatprep.subr.mxu0 0.0
  %2412 = vmatpush1.msra.mxu0 0.0
  %2413 = vmatprep.subr.mxu0 0.0
  %2414 = vmatpush1.msra.mxu0 0.0
  %2415 = vmatprep.subr.mxu0 0.0
  %2416 = vmatpush1.msra.mxu0 0.0
  %2417 = vmatprep.subr.mxu0 0.0
  %2418 = vmatpush1.msra.mxu0 0.0
  %2419 = vmatprep.mubr.f32.mxu0 0.0
  %2420 = vmatmul.mubr.f32.gmra.mrb[0].mxu0 %v2273
  %v2421 = vpop.f32.mrb[0].mxu0
  %v2422 = vadd.f32 0.0, %v2421
  %v2423 = vpop.f32.mrb[0].mxu0
  %v2424 = vadd.f32 0.0, %v2423
  %2425 = vmatprep.mubr.f32.mxu0 0.0
  %2426 = vmatmul.mubr.f32.gmra.mrb[0].mxu0 %v2276
  %v2427 = vpop.f32.mrb[0].mxu0
  %v2428 = vadd.f32 0.0, %v2427
  %v2429 = vpop.f32.mrb[0].mxu0
  %v2430 = vadd.f32 0.0, %v2429
  %2431 = vdwg.mxu0
  %v2432 = vadd.f32 %v2236, %v2345
  %v2433 = vadd.f32 %v2237, %v2347
  %v2434 = vadd.f32 %v2238, %v2422
  %v2435 = vadd.f32 %v2239, %v2424
  %v2436 = vadd.f32 %v2240, %v2351
  %v2437 = vadd.f32 %v2241, %v2353
  %v2438 = vadd.f32 %v2242, %v2428
  %v2439 = vadd.f32 %v2243, %v2430
  %2440 = vrot.lane.b32.xlu0 %v906, 111
  %v2441 = vpop.permute.xlu0 %2440
  %2442 = vrot.lane.b32.xlu0 %v910, 111
  %v2443 = vpop.permute.xlu0 %2442
  %2444 = vrot.lane.b32.xlu0 %v907, 111
  %v2445 = vpop.permute.xlu0 %2444
  %2446 = vrot.lane.b32.xlu0 %v911, 111
  %v2447 = vpop.permute.xlu0 %2446
  %2448 = vrot.lane.b32.xlu0 %v908, 111
  %v2449 = vpop.permute.xlu0 %2448
  %2450 = vrot.lane.b32.xlu0 %v912, 111
  %v2451 = vpop.permute.xlu0 %2450
  %2452 = vrot.lane.b32.xlu0 %v909, 111
  %v2453 = vpop.permute.xlu0 %2452
  %2454 = vrot.lane.b32.xlu0 %v913, 111
  %v2455 = vpop.permute.xlu0 %2454
  %vm2456 = vcmp.lt.s32.totalorder %v30, 111
  %v2457 = vsel %vm2456, %v2449, %v2453
  %v2458 = vsel %vm2456, %v2451, %v2455
  %v2459 = vsel %vm2456, %v2445, %v2449
  %v2460 = vsel %vm2456, %v2447, %v2451
  %v2461 = vsel %vm2456, %v2441, %v2445
  %v2462 = vsel %vm2456, %v2443, %v2447
  %v2463 = vsel %vm2456, %v2453, %v2441
  %v2464 = vsel %vm2456, %v2455, %v2443
  %s2465 = scalar_lea.vmem %s6, 128
  %v2466 = vld [vmem:[%s2465] sm:$0xff]
  %v2467 = vld [vmem:[%s2465 + $0x8] sm:$0xff]
  %v2469 = vsel %vm144, %v2466, 0
  %v2472 = vsel %vm144, %v2467, 0
  %2474 = vmatprep.subr.mxu0 %v2459
  %2475 = vmatpush1.msra.mxu0 %v2461
  %2476 = vmatprep.subr.mxu0 %v2460
  %2477 = vmatpush1.msra.mxu0 %v2462
  %2478 = vmatprep.subr.mxu0 0.0
  %2479 = vmatpush1.msra.mxu0 0.0
  %2480 = vmatprep.subr.mxu0 0.0
  %2481 = vmatpush1.msra.mxu0 0.0
  %2482 = vmatprep.subr.mxu0 0.0
  %2483 = vmatpush1.msra.mxu0 0.0
  %2484 = vmatprep.subr.mxu0 0.0
  %2485 = vmatpush1.msra.mxu0 0.0
  %2486 = vmatprep.subr.mxu0 0.0
  %2487 = vmatpush1.msra.mxu0 0.0
  %2488 = vmatprep.subr.mxu0 0.0
  %2489 = vmatpush1.msra.mxu0 0.0
  %2490 = vmatprep.subr.mxu0 0.0
  %2491 = vmatpush1.msra.mxu0 0.0
  %2492 = vmatprep.subr.mxu0 0.0
  %2493 = vmatpush1.msra.mxu0 0.0
  %2494 = vmatprep.subr.mxu0 0.0
  %2495 = vmatpush1.msra.mxu0 0.0
  %2496 = vmatprep.subr.mxu0 0.0
  %2497 = vmatpush1.msra.mxu0 0.0
  %2498 = vmatprep.subr.mxu0 0.0
  %2499 = vmatpush1.msra.mxu0 0.0
  %2500 = vmatprep.subr.mxu0 0.0
  %2501 = vmatpush1.msra.mxu0 0.0
  %2502 = vmatprep.subr.mxu0 0.0
  %2503 = vmatpush1.msra.mxu0 0.0
  %2504 = vmatprep.subr.mxu0 0.0
  %2505 = vmatpush1.msra.mxu0 0.0
  %2506 = vmatprep.subr.mxu0 0.0
  %2507 = vmatpush1.msra.mxu0 0.0
  %2508 = vmatprep.subr.mxu0 0.0
  %2509 = vmatpush1.msra.mxu0 0.0
  %2510 = vmatprep.subr.mxu0 0.0
  %2511 = vmatpush1.msra.mxu0 0.0
  %2512 = vmatprep.subr.mxu0 0.0
  %2513 = vmatpush1.msra.mxu0 0.0
  %2514 = vmatprep.subr.mxu0 0.0
  %2515 = vmatpush1.msra.mxu0 0.0
  %2516 = vmatprep.subr.mxu0 0.0
  %2517 = vmatpush1.msra.mxu0 0.0
  %2518 = vmatprep.subr.mxu0 0.0
  %2519 = vmatpush1.msra.mxu0 0.0
  %2520 = vmatprep.subr.mxu0 0.0
  %2521 = vmatpush1.msra.mxu0 0.0
  %2522 = vmatprep.subr.mxu0 0.0
  %2523 = vmatpush1.msra.mxu0 0.0
  %2524 = vmatprep.subr.mxu0 0.0
  %2525 = vmatpush1.msra.mxu0 0.0
  %2526 = vmatprep.subr.mxu0 0.0
  %2527 = vmatpush1.msra.mxu0 0.0
  %2528 = vmatprep.subr.mxu0 0.0
  %2529 = vmatpush1.msra.mxu0 0.0
  %2530 = vmatprep.subr.mxu0 0.0
  %2531 = vmatpush1.msra.mxu0 0.0
  %2532 = vmatprep.subr.mxu0 0.0
  %2533 = vmatpush1.msra.mxu0 0.0
  %2534 = vmatprep.subr.mxu0 0.0
  %2535 = vmatpush1.msra.mxu0 0.0
  %2536 = vmatprep.subr.mxu0 0.0
  %2537 = vmatpush1.msra.mxu0 0.0
  %2538 = vmatprep.mubr.f32.mxu0 0.0
  %2539 = vmatmul.mubr.f32.gmra.mrb[0].mxu0 %v2469
  %v2540 = vpop.f32.mrb[0].mxu0
  %v2541 = vadd.f32 0.0, %v2540
  %v2542 = vpop.f32.mrb[0].mxu0
  %v2543 = vadd.f32 0.0, %v2542
  %2544 = vmatprep.mubr.f32.mxu0 0.0
  %2545 = vmatmul.mubr.f32.gmra.mrb[0].mxu0 %v2472
  %v2546 = vpop.f32.mrb[0].mxu0
  %v2547 = vadd.f32 0.0, %v2546
  %v2548 = vpop.f32.mrb[0].mxu0
  %v2549 = vadd.f32 0.0, %v2548
  %2550 = vdwg.mxu0
  %2551 = vmatprep.subr.mxu0 %v2463
  %2552 = vmatpush1.msra.mxu0 %v2457
  %2553 = vmatprep.subr.mxu0 %v2464
  %2554 = vmatpush1.msra.mxu0 %v2458
  %2555 = vmatprep.subr.mxu0 0.0
  %2556 = vmatpush1.msra.mxu0 0.0
  %2557 = vmatprep.subr.mxu0 0.0
  %2558 = vmatpush1.msra.mxu0 0.0
  %2559 = vmatprep.subr.mxu0 0.0
  %2560 = vmatpush1.msra.mxu0 0.0
  %2561 = vmatprep.subr.mxu0 0.0
  %2562 = vmatpush1.msra.mxu0 0.0
  %2563 = vmatprep.subr.mxu0 0.0
  %2564 = vmatpush1.msra.mxu0 0.0
  %2565 = vmatprep.subr.mxu0 0.0
  %2566 = vmatpush1.msra.mxu0 0.0
  %2567 = vmatprep.subr.mxu0 0.0
  %2568 = vmatpush1.msra.mxu0 0.0
  %2569 = vmatprep.subr.mxu0 0.0
  %2570 = vmatpush1.msra.mxu0 0.0
  %2571 = vmatprep.subr.mxu0 0.0
  %2572 = vmatpush1.msra.mxu0 0.0
  %2573 = vmatprep.subr.mxu0 0.0
  %2574 = vmatpush1.msra.mxu0 0.0
  %2575 = vmatprep.subr.mxu0 0.0
  %2576 = vmatpush1.msra.mxu0 0.0
  %2577 = vmatprep.subr.mxu0 0.0
  %2578 = vmatpush1.msra.mxu0 0.0
  %2579 = vmatprep.subr.mxu0 0.0
  %2580 = vmatpush1.msra.mxu0 0.0
  %2581 = vmatprep.subr.mxu0 0.0
  %2582 = vmatpush1.msra.mxu0 0.0
  %2583 = vmatprep.subr.mxu0 0.0
  %2584 = vmatpush1.msra.mxu0 0.0
  %2585 = vmatprep.subr.mxu0 0.0
  %2586 = vmatpush1.msra.mxu0 0.0
  %2587 = vmatprep.subr.mxu0 0.0
  %2588 = vmatpush1.msra.mxu0 0.0
  %2589 = vmatprep.subr.mxu0 0.0
  %2590 = vmatpush1.msra.mxu0 0.0
  %2591 = vmatprep.subr.mxu0 0.0
  %2592 = vmatpush1.msra.mxu0 0.0
  %2593 = vmatprep.subr.mxu0 0.0
  %2594 = vmatpush1.msra.mxu0 0.0
  %2595 = vmatprep.subr.mxu0 0.0
  %2596 = vmatpush1.msra.mxu0 0.0
  %2597 = vmatprep.subr.mxu0 0.0
  %2598 = vmatpush1.msra.mxu0 0.0
  %2599 = vmatprep.subr.mxu0 0.0
  %2600 = vmatpush1.msra.mxu0 0.0
  %2601 = vmatprep.subr.mxu0 0.0
  %2602 = vmatpush1.msra.mxu0 0.0
  %2603 = vmatprep.subr.mxu0 0.0
  %2604 = vmatpush1.msra.mxu0 0.0
  %2605 = vmatprep.subr.mxu0 0.0
  %2606 = vmatpush1.msra.mxu0 0.0
  %2607 = vmatprep.subr.mxu0 0.0
  %2608 = vmatpush1.msra.mxu0 0.0
  %2609 = vmatprep.subr.mxu0 0.0
  %2610 = vmatpush1.msra.mxu0 0.0
  %2611 = vmatprep.subr.mxu0 0.0
  %2612 = vmatpush1.msra.mxu0 0.0
  %2613 = vmatprep.subr.mxu0 0.0
  %2614 = vmatpush1.msra.mxu0 0.0
  %2615 = vmatprep.mubr.f32.mxu0 0.0
  %2616 = vmatmul.mubr.f32.gmra.mrb[0].mxu0 %v2469
  %v2617 = vpop.f32.mrb[0].mxu0
  %v2618 = vadd.f32 0.0, %v2617
  %v2619 = vpop.f32.mrb[0].mxu0
  %v2620 = vadd.f32 0.0, %v2619
  %2621 = vmatprep.mubr.f32.mxu0 0.0
  %2622 = vmatmul.mubr.f32.gmra.mrb[0].mxu0 %v2472
  %v2623 = vpop.f32.mrb[0].mxu0
  %v2624 = vadd.f32 0.0, %v2623
  %v2625 = vpop.f32.mrb[0].mxu0
  %v2626 = vadd.f32 0.0, %v2625
  %2627 = vdwg.mxu0
  %v2628 = vadd.f32 %v2432, %v2541
  %v2629 = vadd.f32 %v2433, %v2543
  %v2630 = vadd.f32 %v2434, %v2618
  %v2631 = vadd.f32 %v2435, %v2620
  %v2632 = vadd.f32 %v2436, %v2547
  %v2633 = vadd.f32 %v2437, %v2549
  %v2634 = vadd.f32 %v2438, %v2624
  %v2635 = vadd.f32 %v2439, %v2626
  %v2636 = vadd.f32 %v530, 1.0
  %v2637 = vadd.f32 %v535, 1.0
  %2639 = vset.pattern.permute.xlu0 0
  %2640 = vperm.xlu0 %2639, %v604
  %v2641 = vpop.permute.xlu0 %2640
  %2644 = vset.pattern.permute.xlu0 0
  %2645 = vperm.xlu0 %2644, %v605
  %v2646 = vpop.permute.xlu0 %2645
  %v2648 = vmul.f32 %v2641, %v2636
  %v2649 = vmul.f32 %v2646, %v2637
  %2651 = vset.pattern.permute.xlu0 0
  %2652 = vperm.xlu0 %2651, %v2648
  %v2653 = vpop.permute.xlu0 %2652
  %2656 = vset.pattern.permute.xlu0 0
  %2657 = vperm.xlu0 %2656, %v2649
  %v2658 = vpop.permute.xlu0 %2657
  %2660 = vset.pattern.permute.xlu0 1
  %2661 = vperm.xlu0 %2660, %v2648
  %v2662 = vpop.permute.xlu0 %2661
  %2664 = vset.pattern.permute.xlu0 1
  %2665 = vperm.xlu0 %2664, %v2649
  %v2666 = vpop.permute.xlu0 %2665
  %v2668 = vsel %vm814, %v2662, %v2653
  %v2669 = vsel %vm815, %v2662, %v2653
  %v2670 = vsel %vm816, %v2662, %v2653
  %v2671 = vsel %vm817, %v2662, %v2653
  %v2672 = vsel %vm814, %v2666, %v2658
  %v2673 = vsel %vm815, %v2666, %v2658
  %v2674 = vsel %vm816, %v2666, %v2658
  %v2675 = vsel %vm817, %v2666, %v2658
  %v2676 = vmul.f32 %v2628, %v2668
  %v2677 = vmul.f32 %v2629, %v2669
  %v2678 = vmul.f32 %v2630, %v2670
  %v2679 = vmul.f32 %v2631, %v2671
  %v2680 = vmul.f32 %v2632, %v2672
  %v2681 = vmul.f32 %v2633, %v2673
  %v2682 = vmul.f32 %v2634, %v2674
  %v2683 = vmul.f32 %v2635, %v2675
  %2685 = vset.pattern.permute.xlu0 0
  %2686 = vperm.xlu0 %2685, %v602
  %v2687 = vpop.permute.xlu0 %2686
  %2690 = vset.pattern.permute.xlu0 0
  %2691 = vperm.xlu0 %2690, %v603
  %v2692 = vpop.permute.xlu0 %2691
  %v2694 = vmul.f32 %v2687, %v2648
  %v2695 = vmul.f32 %v2692, %v2649
  %v2696 = vadd.f32 %v540, %v2694
  %v2697 = vadd.f32 %v545, %v2695
  %2699 = vset.pattern.permute.xlu0 0
  %2700 = vperm.xlu0 %2699, %v2696
  %v2701 = vpop.permute.xlu0 %2700
  %2704 = vset.pattern.permute.xlu0 0
  %2705 = vperm.xlu0 %2704, %v2697
  %v2706 = vpop.permute.xlu0 %2705
  %2708 = vset.pattern.permute.xlu0 1
  %2709 = vperm.xlu0 %2708, %v2696
  %v2710 = vpop.permute.xlu0 %2709
  %2712 = vset.pattern.permute.xlu0 1
  %2713 = vperm.xlu0 %2712, %v2697
  %v2714 = vpop.permute.xlu0 %2713
  %v2716 = vsel %vm814, %v2710, %v2701
  %v2717 = vsel %vm815, %v2710, %v2701
  %v2718 = vsel %vm816, %v2710, %v2701
  %v2719 = vsel %vm817, %v2710, %v2701
  %v2720 = vsel %vm814, %v2714, %v2706
  %v2721 = vsel %vm815, %v2714, %v2706
  %v2722 = vsel %vm816, %v2714, %v2706
  %v2723 = vsel %vm817, %v2714, %v2706
  %v2724 = vadd.f32 %v2676, %v2716
  %v2725 = vadd.f32 %v2677, %v2717
  %v2726 = vadd.f32 %v2678, %v2718
  %v2727 = vadd.f32 %v2679, %v2719
  %v2728 = vadd.f32 %v2680, %v2720
  %v2729 = vadd.f32 %v2681, %v2721
  %v2730 = vadd.f32 %v2682, %v2722
  %v2731 = vadd.f32 %v2683, %v2723
  %v2732 = vadd.f32 %v2724, %v778
  %v2733 = vadd.f32 %v2725, %v779
  %v2734 = vadd.f32 %v2726, %v780
  %v2735 = vadd.f32 %v2727, %v781
  %v2736 = vadd.f32 %v2728, %v782
  %v2737 = vadd.f32 %v2729, %v783
  %v2738 = vadd.f32 %v2730, %v784
  %v2739 = vadd.f32 %v2731, %v785
  %v2740 = vmax.f32 %v2732, 0.0
  %v2741 = vmax.f32 %v2733, 0.0
  %v2742 = vmax.f32 %v2734, 0.0
  %v2743 = vmax.f32 %v2735, 0.0
  %v2744 = vmax.f32 %v2736, 0.0
  %v2745 = vmax.f32 %v2737, 0.0
  %v2746 = vmax.f32 %v2738, 0.0
  %v2747 = vmax.f32 %v2739, 0.0
  %v2748 = vld [vmem:[%s2 + $0x150] sm:$0xff]
  %v2749 = vld [vmem:[%s2 + $0x158] sm:$0xff]
  %v2750 = vld [vmem:[%s2 + $0x160] sm:$0xff]
  %v2751 = vld [vmem:[%s2 + $0x168] sm:$0xff]
  %v2752 = vld [vmem:[%s2 + $0x170] sm:$0xff]
  %v2753 = vld [vmem:[%s2 + $0x178] sm:$0xff]
  %v2754 = vld [vmem:[%s2 + $0x180] sm:$0xff]
  %v2755 = vld [vmem:[%s2 + $0x188] sm:$0xff]
  %v2756 = vld [vmem:[%s2 + $0x190] sm:$0xff]
  %v2757 = vld [vmem:[%s2 + $0x198] sm:$0xff]
  %s2758 = scalar_lea.vmem %s5, 16
  %v2759 = vld [vmem:[%s2758] sm:$0xff]
  %v2760 = vld [vmem:[%s2758 + $0x8] sm:$0xff]
  %2762 = vset.pattern.permute.xlu0 0
  %2763 = vperm.xlu0 %2762, %v2748
  %v2764 = vpop.permute.xlu0 %2763
  %2767 = vset.pattern.permute.xlu0 0
  %2768 = vperm.xlu0 %2767, %v2749
  %v2769 = vpop.permute.xlu0 %2768
  %v2772 = vsel %vm144, %v2759, 0
  %v2775 = vsel %vm144, %v2760, 0
  %2777 = vmatprep.subr.mxu0 %v2741
  %2778 = vmatpush1.msra.mxu0 %v2740
  %2779 = vmatprep.subr.mxu0 %v2745
  %2780 = vmatpush1.msra.mxu0 %v2744
  %2781 = vmatprep.subr.mxu0 0.0
  %2782 = vmatpush1.msra.mxu0 0.0
  %2783 = vmatprep.subr.mxu0 0.0
  %2784 = vmatpush1.msra.mxu0 0.0
  %2785 = vmatprep.subr.mxu0 0.0
  %2786 = vmatpush1.msra.mxu0 0.0
  %2787 = vmatprep.subr.mxu0 0.0
  %2788 = vmatpush1.msra.mxu0 0.0
  %2789 = vmatprep.subr.mxu0 0.0
  %2790 = vmatpush1.msra.mxu0 0.0
  %2791 = vmatprep.subr.mxu0 0.0
  %2792 = vmatpush1.msra.mxu0 0.0
  %2793 = vmatprep.subr.mxu0 0.0
  %2794 = vmatpush1.msra.mxu0 0.0
  %2795 = vmatprep.subr.mxu0 0.0
  %2796 = vmatpush1.msra.mxu0 0.0
  %2797 = vmatprep.subr.mxu0 0.0
  %2798 = vmatpush1.msra.mxu0 0.0
  %2799 = vmatprep.subr.mxu0 0.0
  %2800 = vmatpush1.msra.mxu0 0.0
  %2801 = vmatprep.subr.mxu0 0.0
  %2802 = vmatpush1.msra.mxu0 0.0
  %2803 = vmatprep.subr.mxu0 0.0
  %2804 = vmatpush1.msra.mxu0 0.0
  %2805 = vmatprep.subr.mxu0 0.0
  %2806 = vmatpush1.msra.mxu0 0.0
  %2807 = vmatprep.subr.mxu0 0.0
  %2808 = vmatpush1.msra.mxu0 0.0
  %2809 = vmatprep.subr.mxu0 0.0
  %2810 = vmatpush1.msra.mxu0 0.0
  %2811 = vmatprep.subr.mxu0 0.0
  %2812 = vmatpush1.msra.mxu0 0.0
  %2813 = vmatprep.subr.mxu0 0.0
  %2814 = vmatpush1.msra.mxu0 0.0
  %2815 = vmatprep.subr.mxu0 0.0
  %2816 = vmatpush1.msra.mxu0 0.0
  %2817 = vmatprep.subr.mxu0 0.0
  %2818 = vmatpush1.msra.mxu0 0.0
  %2819 = vmatprep.subr.mxu0 0.0
  %2820 = vmatpush1.msra.mxu0 0.0
  %2821 = vmatprep.subr.mxu0 0.0
  %2822 = vmatpush1.msra.mxu0 0.0
  %2823 = vmatprep.subr.mxu0 0.0
  %2824 = vmatpush1.msra.mxu0 0.0
  %2825 = vmatprep.subr.mxu0 0.0
  %2826 = vmatpush1.msra.mxu0 0.0
  %2827 = vmatprep.subr.mxu0 0.0
  %2828 = vmatpush1.msra.mxu0 0.0
  %2829 = vmatprep.subr.mxu0 0.0
  %2830 = vmatpush1.msra.mxu0 0.0
  %2831 = vmatprep.subr.mxu0 0.0
  %2832 = vmatpush1.msra.mxu0 0.0
  %2833 = vmatprep.subr.mxu0 0.0
  %2834 = vmatpush1.msra.mxu0 0.0
  %2835 = vmatprep.subr.mxu0 0.0
  %2836 = vmatpush1.msra.mxu0 0.0
  %2837 = vmatprep.subr.mxu0 0.0
  %2838 = vmatpush1.msra.mxu0 0.0
  %2839 = vmatprep.subr.mxu0 0.0
  %2840 = vmatpush1.msra.mxu0 0.0
  %2841 = vmatprep.mubr.f32.mxu0 0.0
  %2842 = vmatmul.mubr.f32.gmra.mrb[0].mxu0 %v2772
  %v2843 = vpop.f32.mrb[0].mxu0
  %v2844 = vadd.f32 %v2764, %v2843
  %v2845 = vpop.f32.mrb[0].mxu0
  %v2846 = vadd.f32 %v2764, %v2845
  %2847 = vmatprep.mubr.f32.mxu0 0.0
  %2848 = vmatmul.mubr.f32.gmra.mrb[0].mxu0 %v2775
  %v2849 = vpop.f32.mrb[0].mxu0
  %v2850 = vadd.f32 %v2769, %v2849
  %v2851 = vpop.f32.mrb[0].mxu0
  %v2852 = vadd.f32 %v2769, %v2851
  %2853 = vdwg.mxu0
  %2854 = vmatprep.subr.mxu0 %v2743
  %2855 = vmatpush1.msra.mxu0 %v2742
  %2856 = vmatprep.subr.mxu0 %v2747
  %2857 = vmatpush1.msra.mxu0 %v2746
  %2858 = vmatprep.subr.mxu0 0.0
  %2859 = vmatpush1.msra.mxu0 0.0
  %2860 = vmatprep.subr.mxu0 0.0
  %2861 = vmatpush1.msra.mxu0 0.0
  %2862 = vmatprep.subr.mxu0 0.0
  %2863 = vmatpush1.msra.mxu0 0.0
  %2864 = vmatprep.subr.mxu0 0.0
  %2865 = vmatpush1.msra.mxu0 0.0
  %2866 = vmatprep.subr.mxu0 0.0
  %2867 = vmatpush1.msra.mxu0 0.0
  %2868 = vmatprep.subr.mxu0 0.0
  %2869 = vmatpush1.msra.mxu0 0.0
  %2870 = vmatprep.subr.mxu0 0.0
  %2871 = vmatpush1.msra.mxu0 0.0
  %2872 = vmatprep.subr.mxu0 0.0
  %2873 = vmatpush1.msra.mxu0 0.0
  %2874 = vmatprep.subr.mxu0 0.0
  %2875 = vmatpush1.msra.mxu0 0.0
  %2876 = vmatprep.subr.mxu0 0.0
  %2877 = vmatpush1.msra.mxu0 0.0
  %2878 = vmatprep.subr.mxu0 0.0
  %2879 = vmatpush1.msra.mxu0 0.0
  %2880 = vmatprep.subr.mxu0 0.0
  %2881 = vmatpush1.msra.mxu0 0.0
  %2882 = vmatprep.subr.mxu0 0.0
  %2883 = vmatpush1.msra.mxu0 0.0
  %2884 = vmatprep.subr.mxu0 0.0
  %2885 = vmatpush1.msra.mxu0 0.0
  %2886 = vmatprep.subr.mxu0 0.0
  %2887 = vmatpush1.msra.mxu0 0.0
  %2888 = vmatprep.subr.mxu0 0.0
  %2889 = vmatpush1.msra.mxu0 0.0
  %2890 = vmatprep.subr.mxu0 0.0
  %2891 = vmatpush1.msra.mxu0 0.0
  %2892 = vmatprep.subr.mxu0 0.0
  %2893 = vmatpush1.msra.mxu0 0.0
  %2894 = vmatprep.subr.mxu0 0.0
  %2895 = vmatpush1.msra.mxu0 0.0
  %2896 = vmatprep.subr.mxu0 0.0
  %2897 = vmatpush1.msra.mxu0 0.0
  %2898 = vmatprep.subr.mxu0 0.0
  %2899 = vmatpush1.msra.mxu0 0.0
  %2900 = vmatprep.subr.mxu0 0.0
  %2901 = vmatpush1.msra.mxu0 0.0
  %2902 = vmatprep.subr.mxu0 0.0
  %2903 = vmatpush1.msra.mxu0 0.0
  %2904 = vmatprep.subr.mxu0 0.0
  %2905 = vmatpush1.msra.mxu0 0.0
  %2906 = vmatprep.subr.mxu0 0.0
  %2907 = vmatpush1.msra.mxu0 0.0
  %2908 = vmatprep.subr.mxu0 0.0
  %2909 = vmatpush1.msra.mxu0 0.0
  %2910 = vmatprep.subr.mxu0 0.0
  %2911 = vmatpush1.msra.mxu0 0.0
  %2912 = vmatprep.subr.mxu0 0.0
  %2913 = vmatpush1.msra.mxu0 0.0
  %2914 = vmatprep.subr.mxu0 0.0
  %2915 = vmatpush1.msra.mxu0 0.0
  %2916 = vmatprep.subr.mxu0 0.0
  %2917 = vmatpush1.msra.mxu0 0.0
  %2918 = vmatprep.mubr.f32.mxu0 0.0
  %2919 = vmatmul.mubr.f32.gmra.mrb[0].mxu0 %v2772
  %v2920 = vpop.f32.mrb[0].mxu0
  %v2921 = vadd.f32 %v2764, %v2920
  %v2922 = vpop.f32.mrb[0].mxu0
  %v2923 = vadd.f32 %v2764, %v2922
  %2924 = vmatprep.mubr.f32.mxu0 0.0
  %2925 = vmatmul.mubr.f32.gmra.mrb[0].mxu0 %v2775
  %v2926 = vpop.f32.mrb[0].mxu0
  %v2927 = vadd.f32 %v2769, %v2926
  %v2928 = vpop.f32.mrb[0].mxu0
  %v2929 = vadd.f32 %v2769, %v2928
  %2930 = vdwg.mxu0
  %v2931 = vmax.f32 %v2844, 0.0
  %v2932 = vmax.f32 %v2846, 0.0
  %v2933 = vmax.f32 %v2921, 0.0
  %v2934 = vmax.f32 %v2923, 0.0
  %v2935 = vmax.f32 %v2850, 0.0
  %v2936 = vmax.f32 %v2852, 0.0
  %v2937 = vmax.f32 %v2927, 0.0
  %v2938 = vmax.f32 %v2929, 0.0
  %v2939 = vadd.f32 %v550, 1.0
  %v2940 = vadd.f32 %v555, 1.0
  %2942 = vset.pattern.permute.xlu0 0
  %2943 = vperm.xlu0 %2942, %v2752
  %v2944 = vpop.permute.xlu0 %2943
  %2947 = vset.pattern.permute.xlu0 0
  %2948 = vperm.xlu0 %2947, %v2753
  %v2949 = vpop.permute.xlu0 %2948
  %v2951 = vmul.f32 %v2944, %v2939
  %v2952 = vmul.f32 %v2949, %v2940
  %2954 = vset.pattern.permute.xlu0 0
  %2955 = vperm.xlu0 %2954, %v2951
  %v2956 = vpop.permute.xlu0 %2955
  %2959 = vset.pattern.permute.xlu0 0
  %2960 = vperm.xlu0 %2959, %v2952
  %v2961 = vpop.permute.xlu0 %2960
  %2963 = vset.pattern.permute.xlu0 1
  %2964 = vperm.xlu0 %2963, %v2951
  %v2965 = vpop.permute.xlu0 %2964
  %2967 = vset.pattern.permute.xlu0 1
  %2968 = vperm.xlu0 %2967, %v2952
  %v2969 = vpop.permute.xlu0 %2968
  %v2971 = vsel %vm814, %v2965, %v2956
  %v2972 = vsel %vm815, %v2965, %v2956
  %v2973 = vsel %vm816, %v2965, %v2956
  %v2974 = vsel %vm817, %v2965, %v2956
  %v2975 = vsel %vm814, %v2969, %v2961
  %v2976 = vsel %vm815, %v2969, %v2961
  %v2977 = vsel %vm816, %v2969, %v2961
  %v2978 = vsel %vm817, %v2969, %v2961
  %v2979 = vmul.f32 %v2931, %v2971
  %v2980 = vmul.f32 %v2932, %v2972
  %v2981 = vmul.f32 %v2933, %v2973
  %v2982 = vmul.f32 %v2934, %v2974
  %v2983 = vmul.f32 %v2935, %v2975
  %v2984 = vmul.f32 %v2936, %v2976
  %v2985 = vmul.f32 %v2937, %v2977
  %v2986 = vmul.f32 %v2938, %v2978
  %2988 = vset.pattern.permute.xlu0 0
  %2989 = vperm.xlu0 %2988, %v2750
  %v2990 = vpop.permute.xlu0 %2989
  %2993 = vset.pattern.permute.xlu0 0
  %2994 = vperm.xlu0 %2993, %v2751
  %v2995 = vpop.permute.xlu0 %2994
  %v2997 = vmul.f32 %v2990, %v2951
  %v2998 = vmul.f32 %v2995, %v2952
  %v2999 = vsub.f32 %v560, %v2997
  %v3000 = vsub.f32 %v565, %v2998
  %3002 = vset.pattern.permute.xlu0 0
  %3003 = vperm.xlu0 %3002, %v2999
  %v3004 = vpop.permute.xlu0 %3003
  %3007 = vset.pattern.permute.xlu0 0
  %3008 = vperm.xlu0 %3007, %v3000
  %v3009 = vpop.permute.xlu0 %3008
  %3011 = vset.pattern.permute.xlu0 1
  %3012 = vperm.xlu0 %3011, %v2999
  %v3013 = vpop.permute.xlu0 %3012
  %3015 = vset.pattern.permute.xlu0 1
  %3016 = vperm.xlu0 %3015, %v3000
  %v3017 = vpop.permute.xlu0 %3016
  %v3019 = vsel %vm814, %v3013, %v3004
  %v3020 = vsel %vm815, %v3013, %v3004
  %v3021 = vsel %vm816, %v3013, %v3004
  %v3022 = vsel %vm817, %v3013, %v3004
  %v3023 = vsel %vm814, %v3017, %v3009
  %v3024 = vsel %vm815, %v3017, %v3009
  %v3025 = vsel %vm816, %v3017, %v3009
  %v3026 = vsel %vm817, %v3017, %v3009
  %v3027 = vadd.f32 %v2979, %v3019
  %v3028 = vadd.f32 %v2980, %v3020
  %v3029 = vadd.f32 %v2981, %v3021
  %v3030 = vadd.f32 %v2982, %v3022
  %v3031 = vadd.f32 %v2983, %v3023
  %v3032 = vadd.f32 %v2984, %v3024
  %v3033 = vadd.f32 %v2985, %v3025
  %v3034 = vadd.f32 %v2986, %v3026
  %v3035 = vmax.f32 %v3027, 0.0
  %v3036 = vmax.f32 %v3028, 0.0
  %v3037 = vmax.f32 %v3029, 0.0
  %v3038 = vmax.f32 %v3030, 0.0
  %v3039 = vmax.f32 %v3031, 0.0
  %v3040 = vmax.f32 %v3032, 0.0
  %v3041 = vmax.f32 %v3033, 0.0
  %v3042 = vmax.f32 %v3034, 0.0
  %v3043 = vsel %vm902, %v3035, 0.0
  %v3044 = vsel %vm903, %v3036, 0.0
  %v3045 = vsel %vm904, %v3037, 0.0
  %v3046 = vsel %vm905, %v3038, 0.0
  %v3047 = vsel %vm902, %v3039, 0.0
  %v3048 = vsel %vm903, %v3040, 0.0
  %v3049 = vsel %vm904, %v3041, 0.0
  %v3050 = vsel %vm905, %v3042, 0.0
  %3051 = vrot.lane.b32.xlu0 %v3043, 17
  %v3052 = vpop.permute.xlu0 %3051
  %3053 = vrot.lane.b32.xlu0 %v3047, 17
  %v3054 = vpop.permute.xlu0 %3053
  %3055 = vrot.lane.b32.xlu0 %v3044, 17
  %v3056 = vpop.permute.xlu0 %3055
  %3057 = vrot.lane.b32.xlu0 %v3048, 17
  %v3058 = vpop.permute.xlu0 %3057
  %3059 = vrot.lane.b32.xlu0 %v3045, 17
  %v3060 = vpop.permute.xlu0 %3059
  %3061 = vrot.lane.b32.xlu0 %v3049, 17
  %v3062 = vpop.permute.xlu0 %3061
  %3063 = vrot.lane.b32.xlu0 %v3046, 17
  %v3064 = vpop.permute.xlu0 %3063
  %3065 = vrot.lane.b32.xlu0 %v3050, 17
  %v3066 = vpop.permute.xlu0 %3065
  %v3067 = vsel %vm930, %v3060, %v3064
  %v3068 = vsel %vm930, %v3062, %v3066
  %v3069 = vsel %vm930, %v3056, %v3060
  %v3070 = vsel %vm930, %v3058, %v3062
  %v3071 = vsel %vm930, %v3052, %v3056
  %v3072 = vsel %vm930, %v3054, %v3058
  %v3073 = vsel %vm930, %v3064, %v3052
  %v3074 = vsel %vm930, %v3066, %v3054
  %s3075 = scalar_lea.vmem %s6, 144
  %v3076 = vld [vmem:[%s3075] sm:$0xff]
  %v3077 = vld [vmem:[%s3075 + $0x8] sm:$0xff]
  %3078 = vrot.lane.b32.xlu0 %v3043, 16
  %v3079 = vpop.permute.xlu0 %3078
  %3080 = vrot.lane.b32.xlu0 %v3047, 16
  %v3081 = vpop.permute.xlu0 %3080
  %3082 = vrot.lane.b32.xlu0 %v3044, 16
  %v3083 = vpop.permute.xlu0 %3082
  %3084 = vrot.lane.b32.xlu0 %v3048, 16
  %v3085 = vpop.permute.xlu0 %3084
  %3086 = vrot.lane.b32.xlu0 %v3045, 16
  %v3087 = vpop.permute.xlu0 %3086
  %3088 = vrot.lane.b32.xlu0 %v3049, 16
  %v3089 = vpop.permute.xlu0 %3088
  %3090 = vrot.lane.b32.xlu0 %v3046, 16
  %v3091 = vpop.permute.xlu0 %3090
  %3092 = vrot.lane.b32.xlu0 %v3050, 16
  %v3093 = vpop.permute.xlu0 %3092
  %v3094 = vsel %vm957, %v3087, %v3091
  %v3095 = vsel %vm957, %v3089, %v3093
  %v3096 = vsel %vm957, %v3083, %v3087
  %v3097 = vsel %vm957, %v3085, %v3089
  %v3098 = vsel %vm957, %v3079, %v3083
  %v3099 = vsel %vm957, %v3081, %v3085
  %v3100 = vsel %vm957, %v3091, %v3079
  %v3101 = vsel %vm957, %v3093, %v3081
  %s3102 = scalar_lea.vmem %s6, 160
  %v3103 = vld [vmem:[%s3102] sm:$0xff]
  %v3104 = vld [vmem:[%s3102 + $0x8] sm:$0xff]
  %v3106 = vsel %vm144, %v3103, 0
  %v3109 = vsel %vm144, %v3104, 0
  %3111 = vmatprep.subr.mxu0 %v3098
  %3112 = vmatpush1.msra.mxu0 %v3100
  %3113 = vmatprep.subr.mxu0 %v3099
  %3114 = vmatpush1.msra.mxu0 %v3101
  %3115 = vmatprep.subr.mxu0 0.0
  %3116 = vmatpush1.msra.mxu0 0.0
  %3117 = vmatprep.subr.mxu0 0.0
  %3118 = vmatpush1.msra.mxu0 0.0
  %3119 = vmatprep.subr.mxu0 0.0
  %3120 = vmatpush1.msra.mxu0 0.0
  %3121 = vmatprep.subr.mxu0 0.0
  %3122 = vmatpush1.msra.mxu0 0.0
  %3123 = vmatprep.subr.mxu0 0.0
  %3124 = vmatpush1.msra.mxu0 0.0
  %3125 = vmatprep.subr.mxu0 0.0
  %3126 = vmatpush1.msra.mxu0 0.0
  %3127 = vmatprep.subr.mxu0 0.0
  %3128 = vmatpush1.msra.mxu0 0.0
  %3129 = vmatprep.subr.mxu0 0.0
  %3130 = vmatpush1.msra.mxu0 0.0
  %3131 = vmatprep.subr.mxu0 0.0
  %3132 = vmatpush1.msra.mxu0 0.0
  %3133 = vmatprep.subr.mxu0 0.0
  %3134 = vmatpush1.msra.mxu0 0.0
  %3135 = vmatprep.subr.mxu0 0.0
  %3136 = vmatpush1.msra.mxu0 0.0
  %3137 = vmatprep.subr.mxu0 0.0
  %3138 = vmatpush1.msra.mxu0 0.0
  %3139 = vmatprep.subr.mxu0 0.0
  %3140 = vmatpush1.msra.mxu0 0.0
  %3141 = vmatprep.subr.mxu0 0.0
  %3142 = vmatpush1.msra.mxu0 0.0
  %3143 = vmatprep.subr.mxu0 0.0
  %3144 = vmatpush1.msra.mxu0 0.0
  %3145 = vmatprep.subr.mxu0 0.0
  %3146 = vmatpush1.msra.mxu0 0.0
  %3147 = vmatprep.subr.mxu0 0.0
  %3148 = vmatpush1.msra.mxu0 0.0
  %3149 = vmatprep.subr.mxu0 0.0
  %3150 = vmatpush1.msra.mxu0 0.0
  %3151 = vmatprep.subr.mxu0 0.0
  %3152 = vmatpush1.msra.mxu0 0.0
  %3153 = vmatprep.subr.mxu0 0.0
  %3154 = vmatpush1.msra.mxu0 0.0
  %3155 = vmatprep.subr.mxu0 0.0
  %3156 = vmatpush1.msra.mxu0 0.0
  %3157 = vmatprep.subr.mxu0 0.0
  %3158 = vmatpush1.msra.mxu0 0.0
  %3159 = vmatprep.subr.mxu0 0.0
  %3160 = vmatpush1.msra.mxu0 0.0
  %3161 = vmatprep.subr.mxu0 0.0
  %3162 = vmatpush1.msra.mxu0 0.0
  %3163 = vmatprep.subr.mxu0 0.0
  %3164 = vmatpush1.msra.mxu0 0.0
  %3165 = vmatprep.subr.mxu0 0.0
  %3166 = vmatpush1.msra.mxu0 0.0
  %3167 = vmatprep.subr.mxu0 0.0
  %3168 = vmatpush1.msra.mxu0 0.0
  %3169 = vmatprep.subr.mxu0 0.0
  %3170 = vmatpush1.msra.mxu0 0.0
  %3171 = vmatprep.subr.mxu0 0.0
  %3172 = vmatpush1.msra.mxu0 0.0
  %3173 = vmatprep.subr.mxu0 0.0
  %3174 = vmatpush1.msra.mxu0 0.0
  %3175 = vmatprep.mubr.f32.mxu0 0.0
  %3176 = vmatmul.mubr.f32.gmra.mrb[0].mxu0 %v3106
  %v3177 = vpop.f32.mrb[0].mxu0
  %v3178 = vadd.f32 0.0, %v3177
  %v3179 = vpop.f32.mrb[0].mxu0
  %v3180 = vadd.f32 0.0, %v3179
  %3181 = vmatprep.mubr.f32.mxu0 0.0
  %3182 = vmatmul.mubr.f32.gmra.mrb[0].mxu0 %v3109
  %v3183 = vpop.f32.mrb[0].mxu0
  %v3184 = vadd.f32 0.0, %v3183
  %v3185 = vpop.f32.mrb[0].mxu0
  %v3186 = vadd.f32 0.0, %v3185
  %3187 = vdwg.mxu0
  %3188 = vmatprep.subr.mxu0 %v3094
  %3189 = vmatpush1.msra.mxu0 %v3096
  %3190 = vmatprep.subr.mxu0 %v3095
  %3191 = vmatpush1.msra.mxu0 %v3097
  %3192 = vmatprep.subr.mxu0 0.0
  %3193 = vmatpush1.msra.mxu0 0.0
  %3194 = vmatprep.subr.mxu0 0.0
  %3195 = vmatpush1.msra.mxu0 0.0
  %3196 = vmatprep.subr.mxu0 0.0
  %3197 = vmatpush1.msra.mxu0 0.0
  %3198 = vmatprep.subr.mxu0 0.0
  %3199 = vmatpush1.msra.mxu0 0.0
  %3200 = vmatprep.subr.mxu0 0.0
  %3201 = vmatpush1.msra.mxu0 0.0
  %3202 = vmatprep.subr.mxu0 0.0
  %3203 = vmatpush1.msra.mxu0 0.0
  %3204 = vmatprep.subr.mxu0 0.0
  %3205 = vmatpush1.msra.mxu0 0.0
  %3206 = vmatprep.subr.mxu0 0.0
  %3207 = vmatpush1.msra.mxu0 0.0
  %3208 = vmatprep.subr.mxu0 0.0
  %3209 = vmatpush1.msra.mxu0 0.0
  %3210 = vmatprep.subr.mxu0 0.0
  %3211 = vmatpush1.msra.mxu0 0.0
  %3212 = vmatprep.subr.mxu0 0.0
  %3213 = vmatpush1.msra.mxu0 0.0
  %3214 = vmatprep.subr.mxu0 0.0
  %3215 = vmatpush1.msra.mxu0 0.0
  %3216 = vmatprep.subr.mxu0 0.0
  %3217 = vmatpush1.msra.mxu0 0.0
  %3218 = vmatprep.subr.mxu0 0.0
  %3219 = vmatpush1.msra.mxu0 0.0
  %3220 = vmatprep.subr.mxu0 0.0
  %3221 = vmatpush1.msra.mxu0 0.0
  %3222 = vmatprep.subr.mxu0 0.0
  %3223 = vmatpush1.msra.mxu0 0.0
  %3224 = vmatprep.subr.mxu0 0.0
  %3225 = vmatpush1.msra.mxu0 0.0
  %3226 = vmatprep.subr.mxu0 0.0
  %3227 = vmatpush1.msra.mxu0 0.0
  %3228 = vmatprep.subr.mxu0 0.0
  %3229 = vmatpush1.msra.mxu0 0.0
  %3230 = vmatprep.subr.mxu0 0.0
  %3231 = vmatpush1.msra.mxu0 0.0
  %3232 = vmatprep.subr.mxu0 0.0
  %3233 = vmatpush1.msra.mxu0 0.0
  %3234 = vmatprep.subr.mxu0 0.0
  %3235 = vmatpush1.msra.mxu0 0.0
  %3236 = vmatprep.subr.mxu0 0.0
  %3237 = vmatpush1.msra.mxu0 0.0
  %3238 = vmatprep.subr.mxu0 0.0
  %3239 = vmatpush1.msra.mxu0 0.0
  %3240 = vmatprep.subr.mxu0 0.0
  %3241 = vmatpush1.msra.mxu0 0.0
  %3242 = vmatprep.subr.mxu0 0.0
  %3243 = vmatpush1.msra.mxu0 0.0
  %3244 = vmatprep.subr.mxu0 0.0
  %3245 = vmatpush1.msra.mxu0 0.0
  %3246 = vmatprep.subr.mxu0 0.0
  %3247 = vmatpush1.msra.mxu0 0.0
  %3248 = vmatprep.subr.mxu0 0.0
  %3249 = vmatpush1.msra.mxu0 0.0
  %3250 = vmatprep.subr.mxu0 0.0
  %3251 = vmatpush1.msra.mxu0 0.0
  %3252 = vmatprep.mubr.f32.mxu0 0.0
  %3253 = vmatmul.mubr.f32.gmra.mrb[0].mxu0 %v3106
  %v3254 = vpop.f32.mrb[0].mxu0
  %v3255 = vadd.f32 0.0, %v3254
  %v3256 = vpop.f32.mrb[0].mxu0
  %v3257 = vadd.f32 0.0, %v3256
  %3258 = vmatprep.mubr.f32.mxu0 0.0
  %3259 = vmatmul.mubr.f32.gmra.mrb[0].mxu0 %v3109
  %v3260 = vpop.f32.mrb[0].mxu0
  %v3261 = vadd.f32 0.0, %v3260
  %v3262 = vpop.f32.mrb[0].mxu0
  %v3263 = vadd.f32 0.0, %v3262
  %3264 = vdwg.mxu0
  %v3266 = vsel %vm144, %v3076, 0
  %v3269 = vsel %vm144, %v3077, 0
  %3271 = vmatprep.subr.mxu0 %v3071
  %3272 = vmatpush1.msra.mxu0 %v3073
  %3273 = vmatprep.subr.mxu0 %v3072
  %3274 = vmatpush1.msra.mxu0 %v3074
  %3275 = vmatprep.subr.mxu0 0.0
  %3276 = vmatpush1.msra.mxu0 0.0
  %3277 = vmatprep.subr.mxu0 0.0
  %3278 = vmatpush1.msra.mxu0 0.0
  %3279 = vmatprep.subr.mxu0 0.0
  %3280 = vmatpush1.msra.mxu0 0.0
  %3281 = vmatprep.subr.mxu0 0.0
  %3282 = vmatpush1.msra.mxu0 0.0
  %3283 = vmatprep.subr.mxu0 0.0
  %3284 = vmatpush1.msra.mxu0 0.0
  %3285 = vmatprep.subr.mxu0 0.0
  %3286 = vmatpush1.msra.mxu0 0.0
  %3287 = vmatprep.subr.mxu0 0.0
  %3288 = vmatpush1.msra.mxu0 0.0
  %3289 = vmatprep.subr.mxu0 0.0
  %3290 = vmatpush1.msra.mxu0 0.0
  %3291 = vmatprep.subr.mxu0 0.0
  %3292 = vmatpush1.msra.mxu0 0.0
  %3293 = vmatprep.subr.mxu0 0.0
  %3294 = vmatpush1.msra.mxu0 0.0
  %3295 = vmatprep.subr.mxu0 0.0
  %3296 = vmatpush1.msra.mxu0 0.0
  %3297 = vmatprep.subr.mxu0 0.0
  %3298 = vmatpush1.msra.mxu0 0.0
  %3299 = vmatprep.subr.mxu0 0.0
  %3300 = vmatpush1.msra.mxu0 0.0
  %3301 = vmatprep.subr.mxu0 0.0
  %3302 = vmatpush1.msra.mxu0 0.0
  %3303 = vmatprep.subr.mxu0 0.0
  %3304 = vmatpush1.msra.mxu0 0.0
  %3305 = vmatprep.subr.mxu0 0.0
  %3306 = vmatpush1.msra.mxu0 0.0
  %3307 = vmatprep.subr.mxu0 0.0
  %3308 = vmatpush1.msra.mxu0 0.0
  %3309 = vmatprep.subr.mxu0 0.0
  %3310 = vmatpush1.msra.mxu0 0.0
  %3311 = vmatprep.subr.mxu0 0.0
  %3312 = vmatpush1.msra.mxu0 0.0
  %3313 = vmatprep.subr.mxu0 0.0
  %3314 = vmatpush1.msra.mxu0 0.0
  %3315 = vmatprep.subr.mxu0 0.0
  %3316 = vmatpush1.msra.mxu0 0.0
  %3317 = vmatprep.subr.mxu0 0.0
  %3318 = vmatpush1.msra.mxu0 0.0
  %3319 = vmatprep.subr.mxu0 0.0
  %3320 = vmatpush1.msra.mxu0 0.0
  %3321 = vmatprep.subr.mxu0 0.0
  %3322 = vmatpush1.msra.mxu0 0.0
  %3323 = vmatprep.subr.mxu0 0.0
  %3324 = vmatpush1.msra.mxu0 0.0
  %3325 = vmatprep.subr.mxu0 0.0
  %3326 = vmatpush1.msra.mxu0 0.0
  %3327 = vmatprep.subr.mxu0 0.0
  %3328 = vmatpush1.msra.mxu0 0.0
  %3329 = vmatprep.subr.mxu0 0.0
  %3330 = vmatpush1.msra.mxu0 0.0
  %3331 = vmatprep.subr.mxu0 0.0
  %3332 = vmatpush1.msra.mxu0 0.0
  %3333 = vmatprep.subr.mxu0 0.0
  %3334 = vmatpush1.msra.mxu0 0.0
  %3335 = vmatprep.mubr.f32.mxu0 0.0
  %3336 = vmatmul.mubr.f32.gmra.mrb[0].mxu0 %v3266
  %v3337 = vpop.f32.mrb[0].mxu0
  %v3338 = vadd.f32 %v3178, %v3337
  %v3339 = vpop.f32.mrb[0].mxu0
  %v3340 = vadd.f32 %v3180, %v3339
  %3341 = vmatprep.mubr.f32.mxu0 0.0
  %3342 = vmatmul.mubr.f32.gmra.mrb[0].mxu0 %v3269
  %v3343 = vpop.f32.mrb[0].mxu0
  %v3344 = vadd.f32 %v3184, %v3343
  %v3345 = vpop.f32.mrb[0].mxu0
  %v3346 = vadd.f32 %v3186, %v3345
  %3347 = vdwg.mxu0
  %3348 = vmatprep.subr.mxu0 %v3067
  %3349 = vmatpush1.msra.mxu0 %v3069
  %3350 = vmatprep.subr.mxu0 %v3068
  %3351 = vmatpush1.msra.mxu0 %v3070
  %3352 = vmatprep.subr.mxu0 0.0
  %3353 = vmatpush1.msra.mxu0 0.0
  %3354 = vmatprep.subr.mxu0 0.0
  %3355 = vmatpush1.msra.mxu0 0.0
  %3356 = vmatprep.subr.mxu0 0.0
  %3357 = vmatpush1.msra.mxu0 0.0
  %3358 = vmatprep.subr.mxu0 0.0
  %3359 = vmatpush1.msra.mxu0 0.0
  %3360 = vmatprep.subr.mxu0 0.0
  %3361 = vmatpush1.msra.mxu0 0.0
  %3362 = vmatprep.subr.mxu0 0.0
  %3363 = vmatpush1.msra.mxu0 0.0
  %3364 = vmatprep.subr.mxu0 0.0
  %3365 = vmatpush1.msra.mxu0 0.0
  %3366 = vmatprep.subr.mxu0 0.0
  %3367 = vmatpush1.msra.mxu0 0.0
  %3368 = vmatprep.subr.mxu0 0.0
  %3369 = vmatpush1.msra.mxu0 0.0
  %3370 = vmatprep.subr.mxu0 0.0
  %3371 = vmatpush1.msra.mxu0 0.0
  %3372 = vmatprep.subr.mxu0 0.0
  %3373 = vmatpush1.msra.mxu0 0.0
  %3374 = vmatprep.subr.mxu0 0.0
  %3375 = vmatpush1.msra.mxu0 0.0
  %3376 = vmatprep.subr.mxu0 0.0
  %3377 = vmatpush1.msra.mxu0 0.0
  %3378 = vmatprep.subr.mxu0 0.0
  %3379 = vmatpush1.msra.mxu0 0.0
  %3380 = vmatprep.subr.mxu0 0.0
  %3381 = vmatpush1.msra.mxu0 0.0
  %3382 = vmatprep.subr.mxu0 0.0
  %3383 = vmatpush1.msra.mxu0 0.0
  %3384 = vmatprep.subr.mxu0 0.0
  %3385 = vmatpush1.msra.mxu0 0.0
  %3386 = vmatprep.subr.mxu0 0.0
  %3387 = vmatpush1.msra.mxu0 0.0
  %3388 = vmatprep.subr.mxu0 0.0
  %3389 = vmatpush1.msra.mxu0 0.0
  %3390 = vmatprep.subr.mxu0 0.0
  %3391 = vmatpush1.msra.mxu0 0.0
  %3392 = vmatprep.subr.mxu0 0.0
  %3393 = vmatpush1.msra.mxu0 0.0
  %3394 = vmatprep.subr.mxu0 0.0
  %3395 = vmatpush1.msra.mxu0 0.0
  %3396 = vmatprep.subr.mxu0 0.0
  %3397 = vmatpush1.msra.mxu0 0.0
  %3398 = vmatprep.subr.mxu0 0.0
  %3399 = vmatpush1.msra.mxu0 0.0
  %3400 = vmatprep.subr.mxu0 0.0
  %3401 = vmatpush1.msra.mxu0 0.0
  %3402 = vmatprep.subr.mxu0 0.0
  %3403 = vmatpush1.msra.mxu0 0.0
  %3404 = vmatprep.subr.mxu0 0.0
  %3405 = vmatpush1.msra.mxu0 0.0
  %3406 = vmatprep.subr.mxu0 0.0
  %3407 = vmatpush1.msra.mxu0 0.0
  %3408 = vmatprep.subr.mxu0 0.0
  %3409 = vmatpush1.msra.mxu0 0.0
  %3410 = vmatprep.subr.mxu0 0.0
  %3411 = vmatpush1.msra.mxu0 0.0
  %3412 = vmatprep.mubr.f32.mxu0 0.0
  %3413 = vmatmul.mubr.f32.gmra.mrb[0].mxu0 %v3266
  %v3414 = vpop.f32.mrb[0].mxu0
  %v3415 = vadd.f32 %v3255, %v3414
  %v3416 = vpop.f32.mrb[0].mxu0
  %v3417 = vadd.f32 %v3257, %v3416
  %3418 = vmatprep.mubr.f32.mxu0 0.0
  %3419 = vmatmul.mubr.f32.gmra.mrb[0].mxu0 %v3269
  %v3420 = vpop.f32.mrb[0].mxu0
  %v3421 = vadd.f32 %v3261, %v3420
  %v3422 = vpop.f32.mrb[0].mxu0
  %v3423 = vadd.f32 %v3263, %v3422
  %3424 = vdwg.mxu0
  %3425 = vrot.lane.b32.xlu0 %v3043, 15
  %v3426 = vpop.permute.xlu0 %3425
  %3427 = vrot.lane.b32.xlu0 %v3047, 15
  %v3428 = vpop.permute.xlu0 %3427
  %3429 = vrot.lane.b32.xlu0 %v3044, 15
  %v3430 = vpop.permute.xlu0 %3429
  %3431 = vrot.lane.b32.xlu0 %v3048, 15
  %v3432 = vpop.permute.xlu0 %3431
  %3433 = vrot.lane.b32.xlu0 %v3045, 15
  %v3434 = vpop.permute.xlu0 %3433
  %3435 = vrot.lane.b32.xlu0 %v3049, 15
  %v3436 = vpop.permute.xlu0 %3435
  %3437 = vrot.lane.b32.xlu0 %v3046, 15
  %v3438 = vpop.permute.xlu0 %3437
  %3439 = vrot.lane.b32.xlu0 %v3050, 15
  %v3440 = vpop.permute.xlu0 %3439
  %v3441 = vsel %vm1305, %v3434, %v3438
  %v3442 = vsel %vm1305, %v3436, %v3440
  %v3443 = vsel %vm1305, %v3430, %v3434
  %v3444 = vsel %vm1305, %v3432, %v3436
  %v3445 = vsel %vm1305, %v3426, %v3430
  %v3446 = vsel %vm1305, %v3428, %v3432
  %v3447 = vsel %vm1305, %v3438, %v3426
  %v3448 = vsel %vm1305, %v3440, %v3428
  %s3449 = scalar_lea.vmem %s6, 176
  %v3450 = vld [vmem:[%s3449] sm:$0xff]
  %v3451 = vld [vmem:[%s3449 + $0x8] sm:$0xff]
  %v3453 = vsel %vm144, %v3450, 0
  %v3456 = vsel %vm144, %v3451, 0
  %3458 = vmatprep.subr.mxu0 %v3445
  %3459 = vmatpush1.msra.mxu0 %v3447
  %3460 = vmatprep.subr.mxu0 %v3446
  %3461 = vmatpush1.msra.mxu0 %v3448
  %3462 = vmatprep.subr.mxu0 0.0
  %3463 = vmatpush1.msra.mxu0 0.0
  %3464 = vmatprep.subr.mxu0 0.0
  %3465 = vmatpush1.msra.mxu0 0.0
  %3466 = vmatprep.subr.mxu0 0.0
  %3467 = vmatpush1.msra.mxu0 0.0
  %3468 = vmatprep.subr.mxu0 0.0
  %3469 = vmatpush1.msra.mxu0 0.0
  %3470 = vmatprep.subr.mxu0 0.0
  %3471 = vmatpush1.msra.mxu0 0.0
  %3472 = vmatprep.subr.mxu0 0.0
  %3473 = vmatpush1.msra.mxu0 0.0
  %3474 = vmatprep.subr.mxu0 0.0
  %3475 = vmatpush1.msra.mxu0 0.0
  %3476 = vmatprep.subr.mxu0 0.0
  %3477 = vmatpush1.msra.mxu0 0.0
  %3478 = vmatprep.subr.mxu0 0.0
  %3479 = vmatpush1.msra.mxu0 0.0
  %3480 = vmatprep.subr.mxu0 0.0
  %3481 = vmatpush1.msra.mxu0 0.0
  %3482 = vmatprep.subr.mxu0 0.0
  %3483 = vmatpush1.msra.mxu0 0.0
  %3484 = vmatprep.subr.mxu0 0.0
  %3485 = vmatpush1.msra.mxu0 0.0
  %3486 = vmatprep.subr.mxu0 0.0
  %3487 = vmatpush1.msra.mxu0 0.0
  %3488 = vmatprep.subr.mxu0 0.0
  %3489 = vmatpush1.msra.mxu0 0.0
  %3490 = vmatprep.subr.mxu0 0.0
  %3491 = vmatpush1.msra.mxu0 0.0
  %3492 = vmatprep.subr.mxu0 0.0
  %3493 = vmatpush1.msra.mxu0 0.0
  %3494 = vmatprep.subr.mxu0 0.0
  %3495 = vmatpush1.msra.mxu0 0.0
  %3496 = vmatprep.subr.mxu0 0.0
  %3497 = vmatpush1.msra.mxu0 0.0
  %3498 = vmatprep.subr.mxu0 0.0
  %3499 = vmatpush1.msra.mxu0 0.0
  %3500 = vmatprep.subr.mxu0 0.0
  %3501 = vmatpush1.msra.mxu0 0.0
  %3502 = vmatprep.subr.mxu0 0.0
  %3503 = vmatpush1.msra.mxu0 0.0
  %3504 = vmatprep.subr.mxu0 0.0
  %3505 = vmatpush1.msra.mxu0 0.0
  %3506 = vmatprep.subr.mxu0 0.0
  %3507 = vmatpush1.msra.mxu0 0.0
  %3508 = vmatprep.subr.mxu0 0.0
  %3509 = vmatpush1.msra.mxu0 0.0
  %3510 = vmatprep.subr.mxu0 0.0
  %3511 = vmatpush1.msra.mxu0 0.0
  %3512 = vmatprep.subr.mxu0 0.0
  %3513 = vmatpush1.msra.mxu0 0.0
  %3514 = vmatprep.subr.mxu0 0.0
  %3515 = vmatpush1.msra.mxu0 0.0
  %3516 = vmatprep.subr.mxu0 0.0
  %3517 = vmatpush1.msra.mxu0 0.0
  %3518 = vmatprep.subr.mxu0 0.0
  %3519 = vmatpush1.msra.mxu0 0.0
  %3520 = vmatprep.subr.mxu0 0.0
  %3521 = vmatpush1.msra.mxu0 0.0
  %3522 = vmatprep.mubr.f32.mxu0 0.0
  %3523 = vmatmul.mubr.f32.gmra.mrb[0].mxu0 %v3453
  %v3524 = vpop.f32.mrb[0].mxu0
  %v3525 = vadd.f32 0.0, %v3524
  %v3526 = vpop.f32.mrb[0].mxu0
  %v3527 = vadd.f32 0.0, %v3526
  %3528 = vmatprep.mubr.f32.mxu0 0.0
  %3529 = vmatmul.mubr.f32.gmra.mrb[0].mxu0 %v3456
  %v3530 = vpop.f32.mrb[0].mxu0
  %v3531 = vadd.f32 0.0, %v3530
  %v3532 = vpop.f32.mrb[0].mxu0
  %v3533 = vadd.f32 0.0, %v3532
  %3534 = vdwg.mxu0
  %3535 = vmatprep.subr.mxu0 %v3441
  %3536 = vmatpush1.msra.mxu0 %v3443
  %3537 = vmatprep.subr.mxu0 %v3442
  %3538 = vmatpush1.msra.mxu0 %v3444
  %3539 = vmatprep.subr.mxu0 0.0
  %3540 = vmatpush1.msra.mxu0 0.0
  %3541 = vmatprep.subr.mxu0 0.0
  %3542 = vmatpush1.msra.mxu0 0.0
  %3543 = vmatprep.subr.mxu0 0.0
  %3544 = vmatpush1.msra.mxu0 0.0
  %3545 = vmatprep.subr.mxu0 0.0
  %3546 = vmatpush1.msra.mxu0 0.0
  %3547 = vmatprep.subr.mxu0 0.0
  %3548 = vmatpush1.msra.mxu0 0.0
  %3549 = vmatprep.subr.mxu0 0.0
  %3550 = vmatpush1.msra.mxu0 0.0
  %3551 = vmatprep.subr.mxu0 0.0
  %3552 = vmatpush1.msra.mxu0 0.0
  %3553 = vmatprep.subr.mxu0 0.0
  %3554 = vmatpush1.msra.mxu0 0.0
  %3555 = vmatprep.subr.mxu0 0.0
  %3556 = vmatpush1.msra.mxu0 0.0
  %3557 = vmatprep.subr.mxu0 0.0
  %3558 = vmatpush1.msra.mxu0 0.0
  %3559 = vmatprep.subr.mxu0 0.0
  %3560 = vmatpush1.msra.mxu0 0.0
  %3561 = vmatprep.subr.mxu0 0.0
  %3562 = vmatpush1.msra.mxu0 0.0
  %3563 = vmatprep.subr.mxu0 0.0
  %3564 = vmatpush1.msra.mxu0 0.0
  %3565 = vmatprep.subr.mxu0 0.0
  %3566 = vmatpush1.msra.mxu0 0.0
  %3567 = vmatprep.subr.mxu0 0.0
  %3568 = vmatpush1.msra.mxu0 0.0
  %3569 = vmatprep.subr.mxu0 0.0
  %3570 = vmatpush1.msra.mxu0 0.0
  %3571 = vmatprep.subr.mxu0 0.0
  %3572 = vmatpush1.msra.mxu0 0.0
  %3573 = vmatprep.subr.mxu0 0.0
  %3574 = vmatpush1.msra.mxu0 0.0
  %3575 = vmatprep.subr.mxu0 0.0
  %3576 = vmatpush1.msra.mxu0 0.0
  %3577 = vmatprep.subr.mxu0 0.0
  %3578 = vmatpush1.msra.mxu0 0.0
  %3579 = vmatprep.subr.mxu0 0.0
  %3580 = vmatpush1.msra.mxu0 0.0
  %3581 = vmatprep.subr.mxu0 0.0
  %3582 = vmatpush1.msra.mxu0 0.0
  %3583 = vmatprep.subr.mxu0 0.0
  %3584 = vmatpush1.msra.mxu0 0.0
  %3585 = vmatprep.subr.mxu0 0.0
  %3586 = vmatpush1.msra.mxu0 0.0
  %3587 = vmatprep.subr.mxu0 0.0
  %3588 = vmatpush1.msra.mxu0 0.0
  %3589 = vmatprep.subr.mxu0 0.0
  %3590 = vmatpush1.msra.mxu0 0.0
  %3591 = vmatprep.subr.mxu0 0.0
  %3592 = vmatpush1.msra.mxu0 0.0
  %3593 = vmatprep.subr.mxu0 0.0
  %3594 = vmatpush1.msra.mxu0 0.0
  %3595 = vmatprep.subr.mxu0 0.0
  %3596 = vmatpush1.msra.mxu0 0.0
  %3597 = vmatprep.subr.mxu0 0.0
  %3598 = vmatpush1.msra.mxu0 0.0
  %3599 = vmatprep.mubr.f32.mxu0 0.0
  %3600 = vmatmul.mubr.f32.gmra.mrb[0].mxu0 %v3453
  %v3601 = vpop.f32.mrb[0].mxu0
  %v3602 = vadd.f32 0.0, %v3601
  %v3603 = vpop.f32.mrb[0].mxu0
  %v3604 = vadd.f32 0.0, %v3603
  %3605 = vmatprep.mubr.f32.mxu0 0.0
  %3606 = vmatmul.mubr.f32.gmra.mrb[0].mxu0 %v3456
  %v3607 = vpop.f32.mrb[0].mxu0
  %v3608 = vadd.f32 0.0, %v3607
  %v3609 = vpop.f32.mrb[0].mxu0
  %v3610 = vadd.f32 0.0, %v3609
  %3611 = vdwg.mxu0
  %v3612 = vadd.f32 %v3338, %v3525
  %v3613 = vadd.f32 %v3340, %v3527
  %v3614 = vadd.f32 %v3415, %v3602
  %v3615 = vadd.f32 %v3417, %v3604
  %v3616 = vadd.f32 %v3344, %v3531
  %v3617 = vadd.f32 %v3346, %v3533
  %v3618 = vadd.f32 %v3421, %v3608
  %v3619 = vadd.f32 %v3423, %v3610
  %3620 = vrot.lane.b32.xlu0 %v3043, 1
  %v3621 = vpop.permute.xlu0 %3620
  %3622 = vrot.lane.b32.xlu0 %v3047, 1
  %v3623 = vpop.permute.xlu0 %3622
  %3624 = vrot.lane.b32.xlu0 %v3044, 1
  %v3625 = vpop.permute.xlu0 %3624
  %3626 = vrot.lane.b32.xlu0 %v3048, 1
  %v3627 = vpop.permute.xlu0 %3626
  %3628 = vrot.lane.b32.xlu0 %v3045, 1
  %v3629 = vpop.permute.xlu0 %3628
  %3630 = vrot.lane.b32.xlu0 %v3049, 1
  %v3631 = vpop.permute.xlu0 %3630
  %3632 = vrot.lane.b32.xlu0 %v3046, 1
  %v3633 = vpop.permute.xlu0 %3632
  %3634 = vrot.lane.b32.xlu0 %v3050, 1
  %v3635 = vpop.permute.xlu0 %3634
  %v3636 = vsel %vm1501, %v3629, %v3633
  %v3637 = vsel %vm1501, %v3631, %v3635
  %v3638 = vsel %vm1501, %v3625, %v3629
  %v3639 = vsel %vm1501, %v3627, %v3631
  %v3640 = vsel %vm1501, %v3621, %v3625
  %v3641 = vsel %vm1501, %v3623, %v3627
  %v3642 = vsel %vm1501, %v3633, %v3621
  %v3643 = vsel %vm1501, %v3635, %v3623
  %s3644 = scalar_lea.vmem %s6, 192
  %v3645 = vld [vmem:[%s3644] sm:$0xff]
  %v3646 = vld [vmem:[%s3644 + $0x8] sm:$0xff]
  %v3648 = vsel %vm144, %v3645, 0
  %v3651 = vsel %vm144, %v3646, 0
  %3653 = vmatprep.subr.mxu0 %v3640
  %3654 = vmatpush1.msra.mxu0 %v3642
  %3655 = vmatprep.subr.mxu0 %v3641
  %3656 = vmatpush1.msra.mxu0 %v3643
  %3657 = vmatprep.subr.mxu0 0.0
  %3658 = vmatpush1.msra.mxu0 0.0
  %3659 = vmatprep.subr.mxu0 0.0
  %3660 = vmatpush1.msra.mxu0 0.0
  %3661 = vmatprep.subr.mxu0 0.0
  %3662 = vmatpush1.msra.mxu0 0.0
  %3663 = vmatprep.subr.mxu0 0.0
  %3664 = vmatpush1.msra.mxu0 0.0
  %3665 = vmatprep.subr.mxu0 0.0
  %3666 = vmatpush1.msra.mxu0 0.0
  %3667 = vmatprep.subr.mxu0 0.0
  %3668 = vmatpush1.msra.mxu0 0.0
  %3669 = vmatprep.subr.mxu0 0.0
  %3670 = vmatpush1.msra.mxu0 0.0
  %3671 = vmatprep.subr.mxu0 0.0
  %3672 = vmatpush1.msra.mxu0 0.0
  %3673 = vmatprep.subr.mxu0 0.0
  %3674 = vmatpush1.msra.mxu0 0.0
  %3675 = vmatprep.subr.mxu0 0.0
  %3676 = vmatpush1.msra.mxu0 0.0
  %3677 = vmatprep.subr.mxu0 0.0
  %3678 = vmatpush1.msra.mxu0 0.0
  %3679 = vmatprep.subr.mxu0 0.0
  %3680 = vmatpush1.msra.mxu0 0.0
  %3681 = vmatprep.subr.mxu0 0.0
  %3682 = vmatpush1.msra.mxu0 0.0
  %3683 = vmatprep.subr.mxu0 0.0
  %3684 = vmatpush1.msra.mxu0 0.0
  %3685 = vmatprep.subr.mxu0 0.0
  %3686 = vmatpush1.msra.mxu0 0.0
  %3687 = vmatprep.subr.mxu0 0.0
  %3688 = vmatpush1.msra.mxu0 0.0
  %3689 = vmatprep.subr.mxu0 0.0
  %3690 = vmatpush1.msra.mxu0 0.0
  %3691 = vmatprep.subr.mxu0 0.0
  %3692 = vmatpush1.msra.mxu0 0.0
  %3693 = vmatprep.subr.mxu0 0.0
  %3694 = vmatpush1.msra.mxu0 0.0
  %3695 = vmatprep.subr.mxu0 0.0
  %3696 = vmatpush1.msra.mxu0 0.0
  %3697 = vmatprep.subr.mxu0 0.0
  %3698 = vmatpush1.msra.mxu0 0.0
  %3699 = vmatprep.subr.mxu0 0.0
  %3700 = vmatpush1.msra.mxu0 0.0
  %3701 = vmatprep.subr.mxu0 0.0
  %3702 = vmatpush1.msra.mxu0 0.0
  %3703 = vmatprep.subr.mxu0 0.0
  %3704 = vmatpush1.msra.mxu0 0.0
  %3705 = vmatprep.subr.mxu0 0.0
  %3706 = vmatpush1.msra.mxu0 0.0
  %3707 = vmatprep.subr.mxu0 0.0
  %3708 = vmatpush1.msra.mxu0 0.0
  %3709 = vmatprep.subr.mxu0 0.0
  %3710 = vmatpush1.msra.mxu0 0.0
  %3711 = vmatprep.subr.mxu0 0.0
  %3712 = vmatpush1.msra.mxu0 0.0
  %3713 = vmatprep.subr.mxu0 0.0
  %3714 = vmatpush1.msra.mxu0 0.0
  %3715 = vmatprep.subr.mxu0 0.0
  %3716 = vmatpush1.msra.mxu0 0.0
  %3717 = vmatprep.mubr.f32.mxu0 0.0
  %3718 = vmatmul.mubr.f32.gmra.mrb[0].mxu0 %v3648
  %v3719 = vpop.f32.mrb[0].mxu0
  %v3720 = vadd.f32 0.0, %v3719
  %v3721 = vpop.f32.mrb[0].mxu0
  %v3722 = vadd.f32 0.0, %v3721
  %3723 = vmatprep.mubr.f32.mxu0 0.0
  %3724 = vmatmul.mubr.f32.gmra.mrb[0].mxu0 %v3651
  %v3725 = vpop.f32.mrb[0].mxu0
  %v3726 = vadd.f32 0.0, %v3725
  %v3727 = vpop.f32.mrb[0].mxu0
  %v3728 = vadd.f32 0.0, %v3727
  %3729 = vdwg.mxu0
  %3730 = vmatprep.subr.mxu0 %v3636
  %3731 = vmatpush1.msra.mxu0 %v3638
  %3732 = vmatprep.subr.mxu0 %v3637
  %3733 = vmatpush1.msra.mxu0 %v3639
  %3734 = vmatprep.subr.mxu0 0.0
  %3735 = vmatpush1.msra.mxu0 0.0
  %3736 = vmatprep.subr.mxu0 0.0
  %3737 = vmatpush1.msra.mxu0 0.0
  %3738 = vmatprep.subr.mxu0 0.0
  %3739 = vmatpush1.msra.mxu0 0.0
  %3740 = vmatprep.subr.mxu0 0.0
  %3741 = vmatpush1.msra.mxu0 0.0
  %3742 = vmatprep.subr.mxu0 0.0
  %3743 = vmatpush1.msra.mxu0 0.0
  %3744 = vmatprep.subr.mxu0 0.0
  %3745 = vmatpush1.msra.mxu0 0.0
  %3746 = vmatprep.subr.mxu0 0.0
  %3747 = vmatpush1.msra.mxu0 0.0
  %3748 = vmatprep.subr.mxu0 0.0
  %3749 = vmatpush1.msra.mxu0 0.0
  %3750 = vmatprep.subr.mxu0 0.0
  %3751 = vmatpush1.msra.mxu0 0.0
  %3752 = vmatprep.subr.mxu0 0.0
  %3753 = vmatpush1.msra.mxu0 0.0
  %3754 = vmatprep.subr.mxu0 0.0
  %3755 = vmatpush1.msra.mxu0 0.0
  %3756 = vmatprep.subr.mxu0 0.0
  %3757 = vmatpush1.msra.mxu0 0.0
  %3758 = vmatprep.subr.mxu0 0.0
  %3759 = vmatpush1.msra.mxu0 0.0
  %3760 = vmatprep.subr.mxu0 0.0
  %3761 = vmatpush1.msra.mxu0 0.0
  %3762 = vmatprep.subr.mxu0 0.0
  %3763 = vmatpush1.msra.mxu0 0.0
  %3764 = vmatprep.subr.mxu0 0.0
  %3765 = vmatpush1.msra.mxu0 0.0
  %3766 = vmatprep.subr.mxu0 0.0
  %3767 = vmatpush1.msra.mxu0 0.0
  %3768 = vmatprep.subr.mxu0 0.0
  %3769 = vmatpush1.msra.mxu0 0.0
  %3770 = vmatprep.subr.mxu0 0.0
  %3771 = vmatpush1.msra.mxu0 0.0
  %3772 = vmatprep.subr.mxu0 0.0
  %3773 = vmatpush1.msra.mxu0 0.0
  %3774 = vmatprep.subr.mxu0 0.0
  %3775 = vmatpush1.msra.mxu0 0.0
  %3776 = vmatprep.subr.mxu0 0.0
  %3777 = vmatpush1.msra.mxu0 0.0
  %3778 = vmatprep.subr.mxu0 0.0
  %3779 = vmatpush1.msra.mxu0 0.0
  %3780 = vmatprep.subr.mxu0 0.0
  %3781 = vmatpush1.msra.mxu0 0.0
  %3782 = vmatprep.subr.mxu0 0.0
  %3783 = vmatpush1.msra.mxu0 0.0
  %3784 = vmatprep.subr.mxu0 0.0
  %3785 = vmatpush1.msra.mxu0 0.0
  %3786 = vmatprep.subr.mxu0 0.0
  %3787 = vmatpush1.msra.mxu0 0.0
  %3788 = vmatprep.subr.mxu0 0.0
  %3789 = vmatpush1.msra.mxu0 0.0
  %3790 = vmatprep.subr.mxu0 0.0
  %3791 = vmatpush1.msra.mxu0 0.0
  %3792 = vmatprep.subr.mxu0 0.0
  %3793 = vmatpush1.msra.mxu0 0.0
  %3794 = vmatprep.mubr.f32.mxu0 0.0
  %3795 = vmatmul.mubr.f32.gmra.mrb[0].mxu0 %v3648
  %v3796 = vpop.f32.mrb[0].mxu0
  %v3797 = vadd.f32 0.0, %v3796
  %v3798 = vpop.f32.mrb[0].mxu0
  %v3799 = vadd.f32 0.0, %v3798
  %3800 = vmatprep.mubr.f32.mxu0 0.0
  %3801 = vmatmul.mubr.f32.gmra.mrb[0].mxu0 %v3651
  %v3802 = vpop.f32.mrb[0].mxu0
  %v3803 = vadd.f32 0.0, %v3802
  %v3804 = vpop.f32.mrb[0].mxu0
  %v3805 = vadd.f32 0.0, %v3804
  %3806 = vdwg.mxu0
  %v3807 = vadd.f32 %v3612, %v3720
  %v3808 = vadd.f32 %v3613, %v3722
  %v3809 = vadd.f32 %v3614, %v3797
  %v3810 = vadd.f32 %v3615, %v3799
  %v3811 = vadd.f32 %v3616, %v3726
  %v3812 = vadd.f32 %v3617, %v3728
  %v3813 = vadd.f32 %v3618, %v3803
  %v3814 = vadd.f32 %v3619, %v3805
  %s3815 = scalar_lea.vmem %s6, 208
  %v3816 = vld [vmem:[%s3815] sm:$0xff]
  %v3817 = vld [vmem:[%s3815 + $0x8] sm:$0xff]
  %v3819 = vsel %vm144, %v3816, 0
  %v3822 = vsel %vm144, %v3817, 0
  %3824 = vmatprep.subr.mxu0 %v3044
  %3825 = vmatpush1.msra.mxu0 %v3043
  %3826 = vmatprep.subr.mxu0 %v3048
  %3827 = vmatpush1.msra.mxu0 %v3047
  %3828 = vmatprep.subr.mxu0 0.0
  %3829 = vmatpush1.msra.mxu0 0.0
  %3830 = vmatprep.subr.mxu0 0.0
  %3831 = vmatpush1.msra.mxu0 0.0
  %3832 = vmatprep.subr.mxu0 0.0
  %3833 = vmatpush1.msra.mxu0 0.0
  %3834 = vmatprep.subr.mxu0 0.0
  %3835 = vmatpush1.msra.mxu0 0.0
  %3836 = vmatprep.subr.mxu0 0.0
  %3837 = vmatpush1.msra.mxu0 0.0
  %3838 = vmatprep.subr.mxu0 0.0
  %3839 = vmatpush1.msra.mxu0 0.0
  %3840 = vmatprep.subr.mxu0 0.0
  %3841 = vmatpush1.msra.mxu0 0.0
  %3842 = vmatprep.subr.mxu0 0.0
  %3843 = vmatpush1.msra.mxu0 0.0
  %3844 = vmatprep.subr.mxu0 0.0
  %3845 = vmatpush1.msra.mxu0 0.0
  %3846 = vmatprep.subr.mxu0 0.0
  %3847 = vmatpush1.msra.mxu0 0.0
  %3848 = vmatprep.subr.mxu0 0.0
  %3849 = vmatpush1.msra.mxu0 0.0
  %3850 = vmatprep.subr.mxu0 0.0
  %3851 = vmatpush1.msra.mxu0 0.0
  %3852 = vmatprep.subr.mxu0 0.0
  %3853 = vmatpush1.msra.mxu0 0.0
  %3854 = vmatprep.subr.mxu0 0.0
  %3855 = vmatpush1.msra.mxu0 0.0
  %3856 = vmatprep.subr.mxu0 0.0
  %3857 = vmatpush1.msra.mxu0 0.0
  %3858 = vmatprep.subr.mxu0 0.0
  %3859 = vmatpush1.msra.mxu0 0.0
  %3860 = vmatprep.subr.mxu0 0.0
  %3861 = vmatpush1.msra.mxu0 0.0
  %3862 = vmatprep.subr.mxu0 0.0
  %3863 = vmatpush1.msra.mxu0 0.0
  %3864 = vmatprep.subr.mxu0 0.0
  %3865 = vmatpush1.msra.mxu0 0.0
  %3866 = vmatprep.subr.mxu0 0.0
  %3867 = vmatpush1.msra.mxu0 0.0
  %3868 = vmatprep.subr.mxu0 0.0
  %3869 = vmatpush1.msra.mxu0 0.0
  %3870 = vmatprep.subr.mxu0 0.0
  %3871 = vmatpush1.msra.mxu0 0.0
  %3872 = vmatprep.subr.mxu0 0.0
  %3873 = vmatpush1.msra.mxu0 0.0
  %3874 = vmatprep.subr.mxu0 0.0
  %3875 = vmatpush1.msra.mxu0 0.0
  %3876 = vmatprep.subr.mxu0 0.0
  %3877 = vmatpush1.msra.mxu0 0.0
  %3878 = vmatprep.subr.mxu0 0.0
  %3879 = vmatpush1.msra.mxu0 0.0
  %3880 = vmatprep.subr.mxu0 0.0
  %3881 = vmatpush1.msra.mxu0 0.0
  %3882 = vmatprep.subr.mxu0 0.0
  %3883 = vmatpush1.msra.mxu0 0.0
  %3884 = vmatprep.subr.mxu0 0.0
  %3885 = vmatpush1.msra.mxu0 0.0
  %3886 = vmatprep.subr.mxu0 0.0
  %3887 = vmatpush1.msra.mxu0 0.0
  %3888 = vmatprep.mubr.f32.mxu0 0.0
  %3889 = vmatmul.mubr.f32.gmra.mrb[0].mxu0 %v3819
  %v3890 = vpop.f32.mrb[0].mxu0
  %v3891 = vadd.f32 0.0, %v3890
  %v3892 = vpop.f32.mrb[0].mxu0
  %v3893 = vadd.f32 0.0, %v3892
  %3894 = vmatprep.mubr.f32.mxu0 0.0
  %3895 = vmatmul.mubr.f32.gmra.mrb[0].mxu0 %v3822
  %v3896 = vpop.f32.mrb[0].mxu0
  %v3897 = vadd.f32 0.0, %v3896
  %v3898 = vpop.f32.mrb[0].mxu0
  %v3899 = vadd.f32 0.0, %v3898
  %3900 = vdwg.mxu0
  %3901 = vmatprep.subr.mxu0 %v3046
  %3902 = vmatpush1.msra.mxu0 %v3045
  %3903 = vmatprep.subr.mxu0 %v3050
  %3904 = vmatpush1.msra.mxu0 %v3049
  %3905 = vmatprep.subr.mxu0 0.0
  %3906 = vmatpush1.msra.mxu0 0.0
  %3907 = vmatprep.subr.mxu0 0.0
  %3908 = vmatpush1.msra.mxu0 0.0
  %3909 = vmatprep.subr.mxu0 0.0
  %3910 = vmatpush1.msra.mxu0 0.0
  %3911 = vmatprep.subr.mxu0 0.0
  %3912 = vmatpush1.msra.mxu0 0.0
  %3913 = vmatprep.subr.mxu0 0.0
  %3914 = vmatpush1.msra.mxu0 0.0
  %3915 = vmatprep.subr.mxu0 0.0
  %3916 = vmatpush1.msra.mxu0 0.0
  %3917 = vmatprep.subr.mxu0 0.0
  %3918 = vmatpush1.msra.mxu0 0.0
  %3919 = vmatprep.subr.mxu0 0.0
  %3920 = vmatpush1.msra.mxu0 0.0
  %3921 = vmatprep.subr.mxu0 0.0
  %3922 = vmatpush1.msra.mxu0 0.0
  %3923 = vmatprep.subr.mxu0 0.0
  %3924 = vmatpush1.msra.mxu0 0.0
  %3925 = vmatprep.subr.mxu0 0.0
  %3926 = vmatpush1.msra.mxu0 0.0
  %3927 = vmatprep.subr.mxu0 0.0
  %3928 = vmatpush1.msra.mxu0 0.0
  %3929 = vmatprep.subr.mxu0 0.0
  %3930 = vmatpush1.msra.mxu0 0.0
  %3931 = vmatprep.subr.mxu0 0.0
  %3932 = vmatpush1.msra.mxu0 0.0
  %3933 = vmatprep.subr.mxu0 0.0
  %3934 = vmatpush1.msra.mxu0 0.0
  %3935 = vmatprep.subr.mxu0 0.0
  %3936 = vmatpush1.msra.mxu0 0.0
  %3937 = vmatprep.subr.mxu0 0.0
  %3938 = vmatpush1.msra.mxu0 0.0
  %3939 = vmatprep.subr.mxu0 0.0
  %3940 = vmatpush1.msra.mxu0 0.0
  %3941 = vmatprep.subr.mxu0 0.0
  %3942 = vmatpush1.msra.mxu0 0.0
  %3943 = vmatprep.subr.mxu0 0.0
  %3944 = vmatpush1.msra.mxu0 0.0
  %3945 = vmatprep.subr.mxu0 0.0
  %3946 = vmatpush1.msra.mxu0 0.0
  %3947 = vmatprep.subr.mxu0 0.0
  %3948 = vmatpush1.msra.mxu0 0.0
  %3949 = vmatprep.subr.mxu0 0.0
  %3950 = vmatpush1.msra.mxu0 0.0
  %3951 = vmatprep.subr.mxu0 0.0
  %3952 = vmatpush1.msra.mxu0 0.0
  %3953 = vmatprep.subr.mxu0 0.0
  %3954 = vmatpush1.msra.mxu0 0.0
  %3955 = vmatprep.subr.mxu0 0.0
  %3956 = vmatpush1.msra.mxu0 0.0
  %3957 = vmatprep.subr.mxu0 0.0
  %3958 = vmatpush1.msra.mxu0 0.0
  %3959 = vmatprep.subr.mxu0 0.0
  %3960 = vmatpush1.msra.mxu0 0.0
  %3961 = vmatprep.subr.mxu0 0.0
  %3962 = vmatpush1.msra.mxu0 0.0
  %3963 = vmatprep.subr.mxu0 0.0
  %3964 = vmatpush1.msra.mxu0 0.0
  %3965 = vmatprep.mubr.f32.mxu0 0.0
  %3966 = vmatmul.mubr.f32.gmra.mrb[0].mxu0 %v3819
  %v3967 = vpop.f32.mrb[0].mxu0
  %v3968 = vadd.f32 0.0, %v3967
  %v3969 = vpop.f32.mrb[0].mxu0
  %v3970 = vadd.f32 0.0, %v3969
  %3971 = vmatprep.mubr.f32.mxu0 0.0
  %3972 = vmatmul.mubr.f32.gmra.mrb[0].mxu0 %v3822
  %v3973 = vpop.f32.mrb[0].mxu0
  %v3974 = vadd.f32 0.0, %v3973
  %v3975 = vpop.f32.mrb[0].mxu0
  %v3976 = vadd.f32 0.0, %v3975
  %3977 = vdwg.mxu0
  %v3978 = vadd.f32 %v3807, %v3891
  %v3979 = vadd.f32 %v3808, %v3893
  %v3980 = vadd.f32 %v3809, %v3968
  %v3981 = vadd.f32 %v3810, %v3970
  %v3982 = vadd.f32 %v3811, %v3897
  %v3983 = vadd.f32 %v3812, %v3899
  %v3984 = vadd.f32 %v3813, %v3974
  %v3985 = vadd.f32 %v3814, %v3976
  %3986 = vrot.lane.b32.xlu0 %v3043, 127
  %v3987 = vpop.permute.xlu0 %3986
  %3988 = vrot.lane.b32.xlu0 %v3047, 127
  %v3989 = vpop.permute.xlu0 %3988
  %3990 = vrot.lane.b32.xlu0 %v3044, 127
  %v3991 = vpop.permute.xlu0 %3990
  %3992 = vrot.lane.b32.xlu0 %v3048, 127
  %v3993 = vpop.permute.xlu0 %3992
  %3994 = vrot.lane.b32.xlu0 %v3045, 127
  %v3995 = vpop.permute.xlu0 %3994
  %3996 = vrot.lane.b32.xlu0 %v3049, 127
  %v3997 = vpop.permute.xlu0 %3996
  %3998 = vrot.lane.b32.xlu0 %v3046, 127
  %v3999 = vpop.permute.xlu0 %3998
  %4000 = vrot.lane.b32.xlu0 %v3050, 127
  %v4001 = vpop.permute.xlu0 %4000
  %v4002 = vsel %vm1868, %v3995, %v3999
  %v4003 = vsel %vm1868, %v3997, %v4001
  %v4004 = vsel %vm1868, %v3991, %v3995
  %v4005 = vsel %vm1868, %v3993, %v3997
  %v4006 = vsel %vm1868, %v3987, %v3991
  %v4007 = vsel %vm1868, %v3989, %v3993
  %v4008 = vsel %vm1868, %v3999, %v3987
  %v4009 = vsel %vm1868, %v4001, %v3989
  %s4010 = scalar_lea.vmem %s6, 224
  %v4011 = vld [vmem:[%s4010] sm:$0xff]
  %v4012 = vld [vmem:[%s4010 + $0x8] sm:$0xff]
  %v4014 = vsel %vm144, %v4011, 0
  %v4017 = vsel %vm144, %v4012, 0
  %4019 = vmatprep.subr.mxu0 %v4004
  %4020 = vmatpush1.msra.mxu0 %v4006
  %4021 = vmatprep.subr.mxu0 %v4005
  %4022 = vmatpush1.msra.mxu0 %v4007
  %4023 = vmatprep.subr.mxu0 0.0
  %4024 = vmatpush1.msra.mxu0 0.0
  %4025 = vmatprep.subr.mxu0 0.0
  %4026 = vmatpush1.msra.mxu0 0.0
  %4027 = vmatprep.subr.mxu0 0.0
  %4028 = vmatpush1.msra.mxu0 0.0
  %4029 = vmatprep.subr.mxu0 0.0
  %4030 = vmatpush1.msra.mxu0 0.0
  %4031 = vmatprep.subr.mxu0 0.0
  %4032 = vmatpush1.msra.mxu0 0.0
  %4033 = vmatprep.subr.mxu0 0.0
  %4034 = vmatpush1.msra.mxu0 0.0
  %4035 = vmatprep.subr.mxu0 0.0
  %4036 = vmatpush1.msra.mxu0 0.0
  %4037 = vmatprep.subr.mxu0 0.0
  %4038 = vmatpush1.msra.mxu0 0.0
  %4039 = vmatprep.subr.mxu0 0.0
  %4040 = vmatpush1.msra.mxu0 0.0
  %4041 = vmatprep.subr.mxu0 0.0
  %4042 = vmatpush1.msra.mxu0 0.0
  %4043 = vmatprep.subr.mxu0 0.0
  %4044 = vmatpush1.msra.mxu0 0.0
  %4045 = vmatprep.subr.mxu0 0.0
  %4046 = vmatpush1.msra.mxu0 0.0
  %4047 = vmatprep.subr.mxu0 0.0
  %4048 = vmatpush1.msra.mxu0 0.0
  %4049 = vmatprep.subr.mxu0 0.0
  %4050 = vmatpush1.msra.mxu0 0.0
  %4051 = vmatprep.subr.mxu0 0.0
  %4052 = vmatpush1.msra.mxu0 0.0
  %4053 = vmatprep.subr.mxu0 0.0
  %4054 = vmatpush1.msra.mxu0 0.0
  %4055 = vmatprep.subr.mxu0 0.0
  %4056 = vmatpush1.msra.mxu0 0.0
  %4057 = vmatprep.subr.mxu0 0.0
  %4058 = vmatpush1.msra.mxu0 0.0
  %4059 = vmatprep.subr.mxu0 0.0
  %4060 = vmatpush1.msra.mxu0 0.0
  %4061 = vmatprep.subr.mxu0 0.0
  %4062 = vmatpush1.msra.mxu0 0.0
  %4063 = vmatprep.subr.mxu0 0.0
  %4064 = vmatpush1.msra.mxu0 0.0
  %4065 = vmatprep.subr.mxu0 0.0
  %4066 = vmatpush1.msra.mxu0 0.0
  %4067 = vmatprep.subr.mxu0 0.0
  %4068 = vmatpush1.msra.mxu0 0.0
  %4069 = vmatprep.subr.mxu0 0.0
  %4070 = vmatpush1.msra.mxu0 0.0
  %4071 = vmatprep.subr.mxu0 0.0
  %4072 = vmatpush1.msra.mxu0 0.0
  %4073 = vmatprep.subr.mxu0 0.0
  %4074 = vmatpush1.msra.mxu0 0.0
  %4075 = vmatprep.subr.mxu0 0.0
  %4076 = vmatpush1.msra.mxu0 0.0
  %4077 = vmatprep.subr.mxu0 0.0
  %4078 = vmatpush1.msra.mxu0 0.0
  %4079 = vmatprep.subr.mxu0 0.0
  %4080 = vmatpush1.msra.mxu0 0.0
  %4081 = vmatprep.subr.mxu0 0.0
  %4082 = vmatpush1.msra.mxu0 0.0
  %4083 = vmatprep.mubr.f32.mxu0 0.0
  %4084 = vmatmul.mubr.f32.gmra.mrb[0].mxu0 %v4014
  %v4085 = vpop.f32.mrb[0].mxu0
  %v4086 = vadd.f32 0.0, %v4085
  %v4087 = vpop.f32.mrb[0].mxu0
  %v4088 = vadd.f32 0.0, %v4087
  %4089 = vmatprep.mubr.f32.mxu0 0.0
  %4090 = vmatmul.mubr.f32.gmra.mrb[0].mxu0 %v4017
  %v4091 = vpop.f32.mrb[0].mxu0
  %v4092 = vadd.f32 0.0, %v4091
  %v4093 = vpop.f32.mrb[0].mxu0
  %v4094 = vadd.f32 0.0, %v4093
  %4095 = vdwg.mxu0
  %4096 = vmatprep.subr.mxu0 %v4008
  %4097 = vmatpush1.msra.mxu0 %v4002
  %4098 = vmatprep.subr.mxu0 %v4009
  %4099 = vmatpush1.msra.mxu0 %v4003
  %4100 = vmatprep.subr.mxu0 0.0
  %4101 = vmatpush1.msra.mxu0 0.0
  %4102 = vmatprep.subr.mxu0 0.0
  %4103 = vmatpush1.msra.mxu0 0.0
  %4104 = vmatprep.subr.mxu0 0.0
  %4105 = vmatpush1.msra.mxu0 0.0
  %4106 = vmatprep.subr.mxu0 0.0
  %4107 = vmatpush1.msra.mxu0 0.0
  %4108 = vmatprep.subr.mxu0 0.0
  %4109 = vmatpush1.msra.mxu0 0.0
  %4110 = vmatprep.subr.mxu0 0.0
  %4111 = vmatpush1.msra.mxu0 0.0
  %4112 = vmatprep.subr.mxu0 0.0
  %4113 = vmatpush1.msra.mxu0 0.0
  %4114 = vmatprep.subr.mxu0 0.0
  %4115 = vmatpush1.msra.mxu0 0.0
  %4116 = vmatprep.subr.mxu0 0.0
  %4117 = vmatpush1.msra.mxu0 0.0
  %4118 = vmatprep.subr.mxu0 0.0
  %4119 = vmatpush1.msra.mxu0 0.0
  %4120 = vmatprep.subr.mxu0 0.0
  %4121 = vmatpush1.msra.mxu0 0.0
  %4122 = vmatprep.subr.mxu0 0.0
  %4123 = vmatpush1.msra.mxu0 0.0
  %4124 = vmatprep.subr.mxu0 0.0
  %4125 = vmatpush1.msra.mxu0 0.0
  %4126 = vmatprep.subr.mxu0 0.0
  %4127 = vmatpush1.msra.mxu0 0.0
  %4128 = vmatprep.subr.mxu0 0.0
  %4129 = vmatpush1.msra.mxu0 0.0
  %4130 = vmatprep.subr.mxu0 0.0
  %4131 = vmatpush1.msra.mxu0 0.0
  %4132 = vmatprep.subr.mxu0 0.0
  %4133 = vmatpush1.msra.mxu0 0.0
  %4134 = vmatprep.subr.mxu0 0.0
  %4135 = vmatpush1.msra.mxu0 0.0
  %4136 = vmatprep.subr.mxu0 0.0
  %4137 = vmatpush1.msra.mxu0 0.0
  %4138 = vmatprep.subr.mxu0 0.0
  %4139 = vmatpush1.msra.mxu0 0.0
  %4140 = vmatprep.subr.mxu0 0.0
  %4141 = vmatpush1.msra.mxu0 0.0
  %4142 = vmatprep.subr.mxu0 0.0
  %4143 = vmatpush1.msra.mxu0 0.0
  %4144 = vmatprep.subr.mxu0 0.0
  %4145 = vmatpush1.msra.mxu0 0.0
  %4146 = vmatprep.subr.mxu0 0.0
  %4147 = vmatpush1.msra.mxu0 0.0
  %4148 = vmatprep.subr.mxu0 0.0
  %4149 = vmatpush1.msra.mxu0 0.0
  %4150 = vmatprep.subr.mxu0 0.0
  %4151 = vmatpush1.msra.mxu0 0.0
  %4152 = vmatprep.subr.mxu0 0.0
  %4153 = vmatpush1.msra.mxu0 0.0
  %4154 = vmatprep.subr.mxu0 0.0
  %4155 = vmatpush1.msra.mxu0 0.0
  %4156 = vmatprep.subr.mxu0 0.0
  %4157 = vmatpush1.msra.mxu0 0.0
  %4158 = vmatprep.subr.mxu0 0.0
  %4159 = vmatpush1.msra.mxu0 0.0
  %4160 = vmatprep.mubr.f32.mxu0 0.0
  %4161 = vmatmul.mubr.f32.gmra.mrb[0].mxu0 %v4014
  %v4162 = vpop.f32.mrb[0].mxu0
  %v4163 = vadd.f32 0.0, %v4162
  %v4164 = vpop.f32.mrb[0].mxu0
  %v4165 = vadd.f32 0.0, %v4164
  %4166 = vmatprep.mubr.f32.mxu0 0.0
  %4167 = vmatmul.mubr.f32.gmra.mrb[0].mxu0 %v4017
  %v4168 = vpop.f32.mrb[0].mxu0
  %v4169 = vadd.f32 0.0, %v4168
  %v4170 = vpop.f32.mrb[0].mxu0
  %v4171 = vadd.f32 0.0, %v4170
  %4172 = vdwg.mxu0
  %v4173 = vadd.f32 %v3978, %v4086
  %v4174 = vadd.f32 %v3979, %v4088
  %v4175 = vadd.f32 %v3980, %v4163
  %v4176 = vadd.f32 %v3981, %v4165
  %v4177 = vadd.f32 %v3982, %v4092
  %v4178 = vadd.f32 %v3983, %v4094
  %v4179 = vadd.f32 %v3984, %v4169
  %v4180 = vadd.f32 %v3985, %v4171
  %4181 = vrot.lane.b32.xlu0 %v3043, 113
  %v4182 = vpop.permute.xlu0 %4181
  %4183 = vrot.lane.b32.xlu0 %v3047, 113
  %v4184 = vpop.permute.xlu0 %4183
  %4185 = vrot.lane.b32.xlu0 %v3044, 113
  %v4186 = vpop.permute.xlu0 %4185
  %4187 = vrot.lane.b32.xlu0 %v3048, 113
  %v4188 = vpop.permute.xlu0 %4187
  %4189 = vrot.lane.b32.xlu0 %v3045, 113
  %v4190 = vpop.permute.xlu0 %4189
  %4191 = vrot.lane.b32.xlu0 %v3049, 113
  %v4192 = vpop.permute.xlu0 %4191
  %4193 = vrot.lane.b32.xlu0 %v3046, 113
  %v4194 = vpop.permute.xlu0 %4193
  %4195 = vrot.lane.b32.xlu0 %v3050, 113
  %v4196 = vpop.permute.xlu0 %4195
  %v4197 = vsel %vm2064, %v4190, %v4194
  %v4198 = vsel %vm2064, %v4192, %v4196
  %v4199 = vsel %vm2064, %v4186, %v4190
  %v4200 = vsel %vm2064, %v4188, %v4192
  %v4201 = vsel %vm2064, %v4182, %v4186
  %v4202 = vsel %vm2064, %v4184, %v4188
  %v4203 = vsel %vm2064, %v4194, %v4182
  %v4204 = vsel %vm2064, %v4196, %v4184
  %s4205 = scalar_lea.vmem %s6, 240
  %v4206 = vld [vmem:[%s4205] sm:$0xff]
  %v4207 = vld [vmem:[%s4205 + $0x8] sm:$0xff]
  %v4209 = vsel %vm144, %v4206, 0
  %v4212 = vsel %vm144, %v4207, 0
  %4214 = vmatprep.subr.mxu0 %v4199
  %4215 = vmatpush1.msra.mxu0 %v4201
  %4216 = vmatprep.subr.mxu0 %v4200
  %4217 = vmatpush1.msra.mxu0 %v4202
  %4218 = vmatprep.subr.mxu0 0.0
  %4219 = vmatpush1.msra.mxu0 0.0
  %4220 = vmatprep.subr.mxu0 0.0
  %4221 = vmatpush1.msra.mxu0 0.0
  %4222 = vmatprep.subr.mxu0 0.0
  %4223 = vmatpush1.msra.mxu0 0.0
  %4224 = vmatprep.subr.mxu0 0.0
  %4225 = vmatpush1.msra.mxu0 0.0
  %4226 = vmatprep.subr.mxu0 0.0
  %4227 = vmatpush1.msra.mxu0 0.0
  %4228 = vmatprep.subr.mxu0 0.0
  %4229 = vmatpush1.msra.mxu0 0.0
  %4230 = vmatprep.subr.mxu0 0.0
  %4231 = vmatpush1.msra.mxu0 0.0
  %4232 = vmatprep.subr.mxu0 0.0
  %4233 = vmatpush1.msra.mxu0 0.0
  %4234 = vmatprep.subr.mxu0 0.0
  %4235 = vmatpush1.msra.mxu0 0.0
  %4236 = vmatprep.subr.mxu0 0.0
  %4237 = vmatpush1.msra.mxu0 0.0
  %4238 = vmatprep.subr.mxu0 0.0
  %4239 = vmatpush1.msra.mxu0 0.0
  %4240 = vmatprep.subr.mxu0 0.0
  %4241 = vmatpush1.msra.mxu0 0.0
  %4242 = vmatprep.subr.mxu0 0.0
  %4243 = vmatpush1.msra.mxu0 0.0
  %4244 = vmatprep.subr.mxu0 0.0
  %4245 = vmatpush1.msra.mxu0 0.0
  %4246 = vmatprep.subr.mxu0 0.0
  %4247 = vmatpush1.msra.mxu0 0.0
  %4248 = vmatprep.subr.mxu0 0.0
  %4249 = vmatpush1.msra.mxu0 0.0
  %4250 = vmatprep.subr.mxu0 0.0
  %4251 = vmatpush1.msra.mxu0 0.0
  %4252 = vmatprep.subr.mxu0 0.0
  %4253 = vmatpush1.msra.mxu0 0.0
  %4254 = vmatprep.subr.mxu0 0.0
  %4255 = vmatpush1.msra.mxu0 0.0
  %4256 = vmatprep.subr.mxu0 0.0
  %4257 = vmatpush1.msra.mxu0 0.0
  %4258 = vmatprep.subr.mxu0 0.0
  %4259 = vmatpush1.msra.mxu0 0.0
  %4260 = vmatprep.subr.mxu0 0.0
  %4261 = vmatpush1.msra.mxu0 0.0
  %4262 = vmatprep.subr.mxu0 0.0
  %4263 = vmatpush1.msra.mxu0 0.0
  %4264 = vmatprep.subr.mxu0 0.0
  %4265 = vmatpush1.msra.mxu0 0.0
  %4266 = vmatprep.subr.mxu0 0.0
  %4267 = vmatpush1.msra.mxu0 0.0
  %4268 = vmatprep.subr.mxu0 0.0
  %4269 = vmatpush1.msra.mxu0 0.0
  %4270 = vmatprep.subr.mxu0 0.0
  %4271 = vmatpush1.msra.mxu0 0.0
  %4272 = vmatprep.subr.mxu0 0.0
  %4273 = vmatpush1.msra.mxu0 0.0
  %4274 = vmatprep.subr.mxu0 0.0
  %4275 = vmatpush1.msra.mxu0 0.0
  %4276 = vmatprep.subr.mxu0 0.0
  %4277 = vmatpush1.msra.mxu0 0.0
  %4278 = vmatprep.mubr.f32.mxu0 0.0
  %4279 = vmatmul.mubr.f32.gmra.mrb[0].mxu0 %v4209
  %v4280 = vpop.f32.mrb[0].mxu0
  %v4281 = vadd.f32 0.0, %v4280
  %v4282 = vpop.f32.mrb[0].mxu0
  %v4283 = vadd.f32 0.0, %v4282
  %4284 = vmatprep.mubr.f32.mxu0 0.0
  %4285 = vmatmul.mubr.f32.gmra.mrb[0].mxu0 %v4212
  %v4286 = vpop.f32.mrb[0].mxu0
  %v4287 = vadd.f32 0.0, %v4286
  %v4288 = vpop.f32.mrb[0].mxu0
  %v4289 = vadd.f32 0.0, %v4288
  %4290 = vdwg.mxu0
  %4291 = vmatprep.subr.mxu0 %v4203
  %4292 = vmatpush1.msra.mxu0 %v4197
  %4293 = vmatprep.subr.mxu0 %v4204
  %4294 = vmatpush1.msra.mxu0 %v4198
  %4295 = vmatprep.subr.mxu0 0.0
  %4296 = vmatpush1.msra.mxu0 0.0
  %4297 = vmatprep.subr.mxu0 0.0
  %4298 = vmatpush1.msra.mxu0 0.0
  %4299 = vmatprep.subr.mxu0 0.0
  %4300 = vmatpush1.msra.mxu0 0.0
  %4301 = vmatprep.subr.mxu0 0.0
  %4302 = vmatpush1.msra.mxu0 0.0
  %4303 = vmatprep.subr.mxu0 0.0
  %4304 = vmatpush1.msra.mxu0 0.0
  %4305 = vmatprep.subr.mxu0 0.0
  %4306 = vmatpush1.msra.mxu0 0.0
  %4307 = vmatprep.subr.mxu0 0.0
  %4308 = vmatpush1.msra.mxu0 0.0
  %4309 = vmatprep.subr.mxu0 0.0
  %4310 = vmatpush1.msra.mxu0 0.0
  %4311 = vmatprep.subr.mxu0 0.0
  %4312 = vmatpush1.msra.mxu0 0.0
  %4313 = vmatprep.subr.mxu0 0.0
  %4314 = vmatpush1.msra.mxu0 0.0
  %4315 = vmatprep.subr.mxu0 0.0
  %4316 = vmatpush1.msra.mxu0 0.0
  %4317 = vmatprep.subr.mxu0 0.0
  %4318 = vmatpush1.msra.mxu0 0.0
  %4319 = vmatprep.subr.mxu0 0.0
  %4320 = vmatpush1.msra.mxu0 0.0
  %4321 = vmatprep.subr.mxu0 0.0
  %4322 = vmatpush1.msra.mxu0 0.0
  %4323 = vmatprep.subr.mxu0 0.0
  %4324 = vmatpush1.msra.mxu0 0.0
  %4325 = vmatprep.subr.mxu0 0.0
  %4326 = vmatpush1.msra.mxu0 0.0
  %4327 = vmatprep.subr.mxu0 0.0
  %4328 = vmatpush1.msra.mxu0 0.0
  %4329 = vmatprep.subr.mxu0 0.0
  %4330 = vmatpush1.msra.mxu0 0.0
  %4331 = vmatprep.subr.mxu0 0.0
  %4332 = vmatpush1.msra.mxu0 0.0
  %4333 = vmatprep.subr.mxu0 0.0
  %4334 = vmatpush1.msra.mxu0 0.0
  %4335 = vmatprep.subr.mxu0 0.0
  %4336 = vmatpush1.msra.mxu0 0.0
  %4337 = vmatprep.subr.mxu0 0.0
  %4338 = vmatpush1.msra.mxu0 0.0
  %4339 = vmatprep.subr.mxu0 0.0
  %4340 = vmatpush1.msra.mxu0 0.0
  %4341 = vmatprep.subr.mxu0 0.0
  %4342 = vmatpush1.msra.mxu0 0.0
  %4343 = vmatprep.subr.mxu0 0.0
  %4344 = vmatpush1.msra.mxu0 0.0
  %4345 = vmatprep.subr.mxu0 0.0
  %4346 = vmatpush1.msra.mxu0 0.0
  %4347 = vmatprep.subr.mxu0 0.0
  %4348 = vmatpush1.msra.mxu0 0.0
  %4349 = vmatprep.subr.mxu0 0.0
  %4350 = vmatpush1.msra.mxu0 0.0
  %4351 = vmatprep.subr.mxu0 0.0
  %4352 = vmatpush1.msra.mxu0 0.0
  %4353 = vmatprep.subr.mxu0 0.0
  %4354 = vmatpush1.msra.mxu0 0.0
  %4355 = vmatprep.mubr.f32.mxu0 0.0
  %4356 = vmatmul.mubr.f32.gmra.mrb[0].mxu0 %v4209
  %v4357 = vpop.f32.mrb[0].mxu0
  %v4358 = vadd.f32 0.0, %v4357
  %v4359 = vpop.f32.mrb[0].mxu0
  %v4360 = vadd.f32 0.0, %v4359
  %4361 = vmatprep.mubr.f32.mxu0 0.0
  %4362 = vmatmul.mubr.f32.gmra.mrb[0].mxu0 %v4212
  %v4363 = vpop.f32.mrb[0].mxu0
  %v4364 = vadd.f32 0.0, %v4363
  %v4365 = vpop.f32.mrb[0].mxu0
  %v4366 = vadd.f32 0.0, %v4365
  %4367 = vdwg.mxu0
  %v4368 = vadd.f32 %v4173, %v4281
  %v4369 = vadd.f32 %v4174, %v4283
  %v4370 = vadd.f32 %v4175, %v4358
  %v4371 = vadd.f32 %v4176, %v4360
  %v4372 = vadd.f32 %v4177, %v4287
  %v4373 = vadd.f32 %v4178, %v4289
  %v4374 = vadd.f32 %v4179, %v4364
  %v4375 = vadd.f32 %v4180, %v4366
  %4376 = vrot.lane.b32.xlu0 %v3043, 112
  %v4377 = vpop.permute.xlu0 %4376
  %4378 = vrot.lane.b32.xlu0 %v3047, 112
  %v4379 = vpop.permute.xlu0 %4378
  %4380 = vrot.lane.b32.xlu0 %v3044, 112
  %v4381 = vpop.permute.xlu0 %4380
  %4382 = vrot.lane.b32.xlu0 %v3048, 112
  %v4383 = vpop.permute.xlu0 %4382
  %4384 = vrot.lane.b32.xlu0 %v3045, 112
  %v4385 = vpop.permute.xlu0 %4384
  %4386 = vrot.lane.b32.xlu0 %v3049, 112
  %v4387 = vpop.permute.xlu0 %4386
  %4388 = vrot.lane.b32.xlu0 %v3046, 112
  %v4389 = vpop.permute.xlu0 %4388
  %4390 = vrot.lane.b32.xlu0 %v3050, 112
  %v4391 = vpop.permute.xlu0 %4390
  %v4392 = vsel %vm2260, %v4385, %v4389
  %v4393 = vsel %vm2260, %v4387, %v4391
  %v4394 = vsel %vm2260, %v4381, %v4385
  %v4395 = vsel %vm2260, %v4383, %v4387
  %v4396 = vsel %vm2260, %v4377, %v4381
  %v4397 = vsel %vm2260, %v4379, %v4383
  %v4398 = vsel %vm2260, %v4389, %v4377
  %v4399 = vsel %vm2260, %v4391, %v4379
  %s4400 = scalar_lea.vmem %s6, 256
  %v4401 = vld [vmem:[%s4400] sm:$0xff]
  %v4402 = vld [vmem:[%s4400 + $0x8] sm:$0xff]
  %v4404 = vsel %vm144, %v4401, 0
  %v4407 = vsel %vm144, %v4402, 0
  %4409 = vmatprep.subr.mxu0 %v4394
  %4410 = vmatpush1.msra.mxu0 %v4396
  %4411 = vmatprep.subr.mxu0 %v4395
  %4412 = vmatpush1.msra.mxu0 %v4397
  %4413 = vmatprep.subr.mxu0 0.0
  %4414 = vmatpush1.msra.mxu0 0.0
  %4415 = vmatprep.subr.mxu0 0.0
  %4416 = vmatpush1.msra.mxu0 0.0
  %4417 = vmatprep.subr.mxu0 0.0
  %4418 = vmatpush1.msra.mxu0 0.0
  %4419 = vmatprep.subr.mxu0 0.0
  %4420 = vmatpush1.msra.mxu0 0.0
  %4421 = vmatprep.subr.mxu0 0.0
  %4422 = vmatpush1.msra.mxu0 0.0
  %4423 = vmatprep.subr.mxu0 0.0
  %4424 = vmatpush1.msra.mxu0 0.0
  %4425 = vmatprep.subr.mxu0 0.0
  %4426 = vmatpush1.msra.mxu0 0.0
  %4427 = vmatprep.subr.mxu0 0.0
  %4428 = vmatpush1.msra.mxu0 0.0
  %4429 = vmatprep.subr.mxu0 0.0
  %4430 = vmatpush1.msra.mxu0 0.0
  %4431 = vmatprep.subr.mxu0 0.0
  %4432 = vmatpush1.msra.mxu0 0.0
  %4433 = vmatprep.subr.mxu0 0.0
  %4434 = vmatpush1.msra.mxu0 0.0
  %4435 = vmatprep.subr.mxu0 0.0
  %4436 = vmatpush1.msra.mxu0 0.0
  %4437 = vmatprep.subr.mxu0 0.0
  %4438 = vmatpush1.msra.mxu0 0.0
  %4439 = vmatprep.subr.mxu0 0.0
  %4440 = vmatpush1.msra.mxu0 0.0
  %4441 = vmatprep.subr.mxu0 0.0
  %4442 = vmatpush1.msra.mxu0 0.0
  %4443 = vmatprep.subr.mxu0 0.0
  %4444 = vmatpush1.msra.mxu0 0.0
  %4445 = vmatprep.subr.mxu0 0.0
  %4446 = vmatpush1.msra.mxu0 0.0
  %4447 = vmatprep.subr.mxu0 0.0
  %4448 = vmatpush1.msra.mxu0 0.0
  %4449 = vmatprep.subr.mxu0 0.0
  %4450 = vmatpush1.msra.mxu0 0.0
  %4451 = vmatprep.subr.mxu0 0.0
  %4452 = vmatpush1.msra.mxu0 0.0
  %4453 = vmatprep.subr.mxu0 0.0
  %4454 = vmatpush1.msra.mxu0 0.0
  %4455 = vmatprep.subr.mxu0 0.0
  %4456 = vmatpush1.msra.mxu0 0.0
  %4457 = vmatprep.subr.mxu0 0.0
  %4458 = vmatpush1.msra.mxu0 0.0
  %4459 = vmatprep.subr.mxu0 0.0
  %4460 = vmatpush1.msra.mxu0 0.0
  %4461 = vmatprep.subr.mxu0 0.0
  %4462 = vmatpush1.msra.mxu0 0.0
  %4463 = vmatprep.subr.mxu0 0.0
  %4464 = vmatpush1.msra.mxu0 0.0
  %4465 = vmatprep.subr.mxu0 0.0
  %4466 = vmatpush1.msra.mxu0 0.0
  %4467 = vmatprep.subr.mxu0 0.0
  %4468 = vmatpush1.msra.mxu0 0.0
  %4469 = vmatprep.subr.mxu0 0.0
  %4470 = vmatpush1.msra.mxu0 0.0
  %4471 = vmatprep.subr.mxu0 0.0
  %4472 = vmatpush1.msra.mxu0 0.0
  %4473 = vmatprep.mubr.f32.mxu0 0.0
  %4474 = vmatmul.mubr.f32.gmra.mrb[0].mxu0 %v4404
  %v4475 = vpop.f32.mrb[0].mxu0
  %v4476 = vadd.f32 0.0, %v4475
  %v4477 = vpop.f32.mrb[0].mxu0
  %v4478 = vadd.f32 0.0, %v4477
  %4479 = vmatprep.mubr.f32.mxu0 0.0
  %4480 = vmatmul.mubr.f32.gmra.mrb[0].mxu0 %v4407
  %v4481 = vpop.f32.mrb[0].mxu0
  %v4482 = vadd.f32 0.0, %v4481
  %v4483 = vpop.f32.mrb[0].mxu0
  %v4484 = vadd.f32 0.0, %v4483
  %4485 = vdwg.mxu0
  %4486 = vmatprep.subr.mxu0 %v4398
  %4487 = vmatpush1.msra.mxu0 %v4392
  %4488 = vmatprep.subr.mxu0 %v4399
  %4489 = vmatpush1.msra.mxu0 %v4393
  %4490 = vmatprep.subr.mxu0 0.0
  %4491 = vmatpush1.msra.mxu0 0.0
  %4492 = vmatprep.subr.mxu0 0.0
  %4493 = vmatpush1.msra.mxu0 0.0
  %4494 = vmatprep.subr.mxu0 0.0
  %4495 = vmatpush1.msra.mxu0 0.0
  %4496 = vmatprep.subr.mxu0 0.0
  %4497 = vmatpush1.msra.mxu0 0.0
  %4498 = vmatprep.subr.mxu0 0.0
  %4499 = vmatpush1.msra.mxu0 0.0
  %4500 = vmatprep.subr.mxu0 0.0
  %4501 = vmatpush1.msra.mxu0 0.0
  %4502 = vmatprep.subr.mxu0 0.0
  %4503 = vmatpush1.msra.mxu0 0.0
  %4504 = vmatprep.subr.mxu0 0.0
  %4505 = vmatpush1.msra.mxu0 0.0
  %4506 = vmatprep.subr.mxu0 0.0
  %4507 = vmatpush1.msra.mxu0 0.0
  %4508 = vmatprep.subr.mxu0 0.0
  %4509 = vmatpush1.msra.mxu0 0.0
  %4510 = vmatprep.subr.mxu0 0.0
  %4511 = vmatpush1.msra.mxu0 0.0
  %4512 = vmatprep.subr.mxu0 0.0
  %4513 = vmatpush1.msra.mxu0 0.0
  %4514 = vmatprep.subr.mxu0 0.0
  %4515 = vmatpush1.msra.mxu0 0.0
  %4516 = vmatprep.subr.mxu0 0.0
  %4517 = vmatpush1.msra.mxu0 0.0
  %4518 = vmatprep.subr.mxu0 0.0
  %4519 = vmatpush1.msra.mxu0 0.0
  %4520 = vmatprep.subr.mxu0 0.0
  %4521 = vmatpush1.msra.mxu0 0.0
  %4522 = vmatprep.subr.mxu0 0.0
  %4523 = vmatpush1.msra.mxu0 0.0
  %4524 = vmatprep.subr.mxu0 0.0
  %4525 = vmatpush1.msra.mxu0 0.0
  %4526 = vmatprep.subr.mxu0 0.0
  %4527 = vmatpush1.msra.mxu0 0.0
  %4528 = vmatprep.subr.mxu0 0.0
  %4529 = vmatpush1.msra.mxu0 0.0
  %4530 = vmatprep.subr.mxu0 0.0
  %4531 = vmatpush1.msra.mxu0 0.0
  %4532 = vmatprep.subr.mxu0 0.0
  %4533 = vmatpush1.msra.mxu0 0.0
  %4534 = vmatprep.subr.mxu0 0.0
  %4535 = vmatpush1.msra.mxu0 0.0
  %4536 = vmatprep.subr.mxu0 0.0
  %4537 = vmatpush1.msra.mxu0 0.0
  %4538 = vmatprep.subr.mxu0 0.0
  %4539 = vmatpush1.msra.mxu0 0.0
  %4540 = vmatprep.subr.mxu0 0.0
  %4541 = vmatpush1.msra.mxu0 0.0
  %4542 = vmatprep.subr.mxu0 0.0
  %4543 = vmatpush1.msra.mxu0 0.0
  %4544 = vmatprep.subr.mxu0 0.0
  %4545 = vmatpush1.msra.mxu0 0.0
  %4546 = vmatprep.subr.mxu0 0.0
  %4547 = vmatpush1.msra.mxu0 0.0
  %4548 = vmatprep.subr.mxu0 0.0
  %4549 = vmatpush1.msra.mxu0 0.0
  %4550 = vmatprep.mubr.f32.mxu0 0.0
  %4551 = vmatmul.mubr.f32.gmra.mrb[0].mxu0 %v4404
  %v4552 = vpop.f32.mrb[0].mxu0
  %v4553 = vadd.f32 0.0, %v4552
  %v4554 = vpop.f32.mrb[0].mxu0
  %v4555 = vadd.f32 0.0, %v4554
  %4556 = vmatprep.mubr.f32.mxu0 0.0
  %4557 = vmatmul.mubr.f32.gmra.mrb[0].mxu0 %v4407
  %v4558 = vpop.f32.mrb[0].mxu0
  %v4559 = vadd.f32 0.0, %v4558
  %v4560 = vpop.f32.mrb[0].mxu0
  %v4561 = vadd.f32 0.0, %v4560
  %4562 = vdwg.mxu0
  %v4563 = vadd.f32 %v4368, %v4476
  %v4564 = vadd.f32 %v4369, %v4478
  %v4565 = vadd.f32 %v4370, %v4553
  %v4566 = vadd.f32 %v4371, %v4555
  %v4567 = vadd.f32 %v4372, %v4482
  %v4568 = vadd.f32 %v4373, %v4484
  %v4569 = vadd.f32 %v4374, %v4559
  %v4570 = vadd.f32 %v4375, %v4561
  %4571 = vrot.lane.b32.xlu0 %v3043, 111
  %v4572 = vpop.permute.xlu0 %4571
  %4573 = vrot.lane.b32.xlu0 %v3047, 111
  %v4574 = vpop.permute.xlu0 %4573
  %4575 = vrot.lane.b32.xlu0 %v3044, 111
  %v4576 = vpop.permute.xlu0 %4575
  %4577 = vrot.lane.b32.xlu0 %v3048, 111
  %v4578 = vpop.permute.xlu0 %4577
  %4579 = vrot.lane.b32.xlu0 %v3045, 111
  %v4580 = vpop.permute.xlu0 %4579
  %4581 = vrot.lane.b32.xlu0 %v3049, 111
  %v4582 = vpop.permute.xlu0 %4581
  %4583 = vrot.lane.b32.xlu0 %v3046, 111
  %v4584 = vpop.permute.xlu0 %4583
  %4585 = vrot.lane.b32.xlu0 %v3050, 111
  %v4586 = vpop.permute.xlu0 %4585
  %v4587 = vsel %vm2456, %v4580, %v4584
  %v4588 = vsel %vm2456, %v4582, %v4586
  %v4589 = vsel %vm2456, %v4576, %v4580
  %v4590 = vsel %vm2456, %v4578, %v4582
  %v4591 = vsel %vm2456, %v4572, %v4576
  %v4592 = vsel %vm2456, %v4574, %v4578
  %v4593 = vsel %vm2456, %v4584, %v4572
  %v4594 = vsel %vm2456, %v4586, %v4574
  %s4595 = scalar_lea.vmem %s6, 272
  %v4596 = vld [vmem:[%s4595] sm:$0xff]
  %v4597 = vld [vmem:[%s4595 + $0x8] sm:$0xff]
  %v4599 = vsel %vm144, %v4596, 0
  %v4602 = vsel %vm144, %v4597, 0
  %4604 = vmatprep.subr.mxu0 %v4589
  %4605 = vmatpush1.msra.mxu0 %v4591
  %4606 = vmatprep.subr.mxu0 %v4590
  %4607 = vmatpush1.msra.mxu0 %v4592
  %4608 = vmatprep.subr.mxu0 0.0
  %4609 = vmatpush1.msra.mxu0 0.0
  %4610 = vmatprep.subr.mxu0 0.0
  %4611 = vmatpush1.msra.mxu0 0.0
  %4612 = vmatprep.subr.mxu0 0.0
  %4613 = vmatpush1.msra.mxu0 0.0
  %4614 = vmatprep.subr.mxu0 0.0
  %4615 = vmatpush1.msra.mxu0 0.0
  %4616 = vmatprep.subr.mxu0 0.0
  %4617 = vmatpush1.msra.mxu0 0.0
  %4618 = vmatprep.subr.mxu0 0.0
  %4619 = vmatpush1.msra.mxu0 0.0
  %4620 = vmatprep.subr.mxu0 0.0
  %4621 = vmatpush1.msra.mxu0 0.0
  %4622 = vmatprep.subr.mxu0 0.0
  %4623 = vmatpush1.msra.mxu0 0.0
  %4624 = vmatprep.subr.mxu0 0.0
  %4625 = vmatpush1.msra.mxu0 0.0
  %4626 = vmatprep.subr.mxu0 0.0
  %4627 = vmatpush1.msra.mxu0 0.0
  %4628 = vmatprep.subr.mxu0 0.0
  %4629 = vmatpush1.msra.mxu0 0.0
  %4630 = vmatprep.subr.mxu0 0.0
  %4631 = vmatpush1.msra.mxu0 0.0
  %4632 = vmatprep.subr.mxu0 0.0
  %4633 = vmatpush1.msra.mxu0 0.0
  %4634 = vmatprep.subr.mxu0 0.0
  %4635 = vmatpush1.msra.mxu0 0.0
  %4636 = vmatprep.subr.mxu0 0.0
  %4637 = vmatpush1.msra.mxu0 0.0
  %4638 = vmatprep.subr.mxu0 0.0
  %4639 = vmatpush1.msra.mxu0 0.0
  %4640 = vmatprep.subr.mxu0 0.0
  %4641 = vmatpush1.msra.mxu0 0.0
  %4642 = vmatprep.subr.mxu0 0.0
  %4643 = vmatpush1.msra.mxu0 0.0
  %4644 = vmatprep.subr.mxu0 0.0
  %4645 = vmatpush1.msra.mxu0 0.0
  %4646 = vmatprep.subr.mxu0 0.0
  %4647 = vmatpush1.msra.mxu0 0.0
  %4648 = vmatprep.subr.mxu0 0.0
  %4649 = vmatpush1.msra.mxu0 0.0
  %4650 = vmatprep.subr.mxu0 0.0
  %4651 = vmatpush1.msra.mxu0 0.0
  %4652 = vmatprep.subr.mxu0 0.0
  %4653 = vmatpush1.msra.mxu0 0.0
  %4654 = vmatprep.subr.mxu0 0.0
  %4655 = vmatpush1.msra.mxu0 0.0
  %4656 = vmatprep.subr.mxu0 0.0
  %4657 = vmatpush1.msra.mxu0 0.0
  %4658 = vmatprep.subr.mxu0 0.0
  %4659 = vmatpush1.msra.mxu0 0.0
  %4660 = vmatprep.subr.mxu0 0.0
  %4661 = vmatpush1.msra.mxu0 0.0
  %4662 = vmatprep.subr.mxu0 0.0
  %4663 = vmatpush1.msra.mxu0 0.0
  %4664 = vmatprep.subr.mxu0 0.0
  %4665 = vmatpush1.msra.mxu0 0.0
  %4666 = vmatprep.subr.mxu0 0.0
  %4667 = vmatpush1.msra.mxu0 0.0
  %4668 = vmatprep.mubr.f32.mxu0 0.0
  %4669 = vmatmul.mubr.f32.gmra.mrb[0].mxu0 %v4599
  %v4670 = vpop.f32.mrb[0].mxu0
  %v4671 = vadd.f32 0.0, %v4670
  %v4672 = vpop.f32.mrb[0].mxu0
  %v4673 = vadd.f32 0.0, %v4672
  %4674 = vmatprep.mubr.f32.mxu0 0.0
  %4675 = vmatmul.mubr.f32.gmra.mrb[0].mxu0 %v4602
  %v4676 = vpop.f32.mrb[0].mxu0
  %v4677 = vadd.f32 0.0, %v4676
  %v4678 = vpop.f32.mrb[0].mxu0
  %v4679 = vadd.f32 0.0, %v4678
  %4680 = vdwg.mxu0
  %4681 = vmatprep.subr.mxu0 %v4593
  %4682 = vmatpush1.msra.mxu0 %v4587
  %4683 = vmatprep.subr.mxu0 %v4594
  %4684 = vmatpush1.msra.mxu0 %v4588
  %4685 = vmatprep.subr.mxu0 0.0
  %4686 = vmatpush1.msra.mxu0 0.0
  %4687 = vmatprep.subr.mxu0 0.0
  %4688 = vmatpush1.msra.mxu0 0.0
  %4689 = vmatprep.subr.mxu0 0.0
  %4690 = vmatpush1.msra.mxu0 0.0
  %4691 = vmatprep.subr.mxu0 0.0
  %4692 = vmatpush1.msra.mxu0 0.0
  %4693 = vmatprep.subr.mxu0 0.0
  %4694 = vmatpush1.msra.mxu0 0.0
  %4695 = vmatprep.subr.mxu0 0.0
  %4696 = vmatpush1.msra.mxu0 0.0
  %4697 = vmatprep.subr.mxu0 0.0
  %4698 = vmatpush1.msra.mxu0 0.0
  %4699 = vmatprep.subr.mxu0 0.0
  %4700 = vmatpush1.msra.mxu0 0.0
  %4701 = vmatprep.subr.mxu0 0.0
  %4702 = vmatpush1.msra.mxu0 0.0
  %4703 = vmatprep.subr.mxu0 0.0
  %4704 = vmatpush1.msra.mxu0 0.0
  %4705 = vmatprep.subr.mxu0 0.0
  %4706 = vmatpush1.msra.mxu0 0.0
  %4707 = vmatprep.subr.mxu0 0.0
  %4708 = vmatpush1.msra.mxu0 0.0
  %4709 = vmatprep.subr.mxu0 0.0
  %4710 = vmatpush1.msra.mxu0 0.0
  %4711 = vmatprep.subr.mxu0 0.0
  %4712 = vmatpush1.msra.mxu0 0.0
  %4713 = vmatprep.subr.mxu0 0.0
  %4714 = vmatpush1.msra.mxu0 0.0
  %4715 = vmatprep.subr.mxu0 0.0
  %4716 = vmatpush1.msra.mxu0 0.0
  %4717 = vmatprep.subr.mxu0 0.0
  %4718 = vmatpush1.msra.mxu0 0.0
  %4719 = vmatprep.subr.mxu0 0.0
  %4720 = vmatpush1.msra.mxu0 0.0
  %4721 = vmatprep.subr.mxu0 0.0
  %4722 = vmatpush1.msra.mxu0 0.0
  %4723 = vmatprep.subr.mxu0 0.0
  %4724 = vmatpush1.msra.mxu0 0.0
  %4725 = vmatprep.subr.mxu0 0.0
  %4726 = vmatpush1.msra.mxu0 0.0
  %4727 = vmatprep.subr.mxu0 0.0
  %4728 = vmatpush1.msra.mxu0 0.0
  %4729 = vmatprep.subr.mxu0 0.0
  %4730 = vmatpush1.msra.mxu0 0.0
  %4731 = vmatprep.subr.mxu0 0.0
  %4732 = vmatpush1.msra.mxu0 0.0
  %4733 = vmatprep.subr.mxu0 0.0
  %4734 = vmatpush1.msra.mxu0 0.0
  %4735 = vmatprep.subr.mxu0 0.0
  %4736 = vmatpush1.msra.mxu0 0.0
  %4737 = vmatprep.subr.mxu0 0.0
  %4738 = vmatpush1.msra.mxu0 0.0
  %4739 = vmatprep.subr.mxu0 0.0
  %4740 = vmatpush1.msra.mxu0 0.0
  %4741 = vmatprep.subr.mxu0 0.0
  %4742 = vmatpush1.msra.mxu0 0.0
  %4743 = vmatprep.subr.mxu0 0.0
  %4744 = vmatpush1.msra.mxu0 0.0
  %4745 = vmatprep.mubr.f32.mxu0 0.0
  %4746 = vmatmul.mubr.f32.gmra.mrb[0].mxu0 %v4599
  %v4747 = vpop.f32.mrb[0].mxu0
  %v4748 = vadd.f32 0.0, %v4747
  %v4749 = vpop.f32.mrb[0].mxu0
  %v4750 = vadd.f32 0.0, %v4749
  %4751 = vmatprep.mubr.f32.mxu0 0.0
  %4752 = vmatmul.mubr.f32.gmra.mrb[0].mxu0 %v4602
  %v4753 = vpop.f32.mrb[0].mxu0
  %v4754 = vadd.f32 0.0, %v4753
  %v4755 = vpop.f32.mrb[0].mxu0
  %v4756 = vadd.f32 0.0, %v4755
  %4757 = vdwg.mxu0
  %v4758 = vadd.f32 %v4563, %v4671
  %v4759 = vadd.f32 %v4564, %v4673
  %v4760 = vadd.f32 %v4565, %v4748
  %v4761 = vadd.f32 %v4566, %v4750
  %v4762 = vadd.f32 %v4567, %v4677
  %v4763 = vadd.f32 %v4568, %v4679
  %v4764 = vadd.f32 %v4569, %v4754
  %v4765 = vadd.f32 %v4570, %v4756
  %v4766 = vadd.f32 %v570, 1.0
  %v4767 = vadd.f32 %v575, 1.0
  %4769 = vset.pattern.permute.xlu0 0
  %4770 = vperm.xlu0 %4769, %v2756
  %v4771 = vpop.permute.xlu0 %4770
  %4774 = vset.pattern.permute.xlu0 0
  %4775 = vperm.xlu0 %4774, %v2757
  %v4776 = vpop.permute.xlu0 %4775
  %v4778 = vmul.f32 %v4771, %v4766
  %v4779 = vmul.f32 %v4776, %v4767
  %4781 = vset.pattern.permute.xlu0 0
  %4782 = vperm.xlu0 %4781, %v4778
  %v4783 = vpop.permute.xlu0 %4782
  %4786 = vset.pattern.permute.xlu0 0
  %4787 = vperm.xlu0 %4786, %v4779
  %v4788 = vpop.permute.xlu0 %4787
  %4790 = vset.pattern.permute.xlu0 1
  %4791 = vperm.xlu0 %4790, %v4778
  %v4792 = vpop.permute.xlu0 %4791
  %4794 = vset.pattern.permute.xlu0 1
  %4795 = vperm.xlu0 %4794, %v4779
  %v4796 = vpop.permute.xlu0 %4795
  %v4798 = vsel %vm814, %v4792, %v4783
  %v4799 = vsel %vm815, %v4792, %v4783
  %v4800 = vsel %vm816, %v4792, %v4783
  %v4801 = vsel %vm817, %v4792, %v4783
  %v4802 = vsel %vm814, %v4796, %v4788
  %v4803 = vsel %vm815, %v4796, %v4788
  %v4804 = vsel %vm816, %v4796, %v4788
  %v4805 = vsel %vm817, %v4796, %v4788
  %v4806 = vmul.f32 %v4758, %v4798
  %v4807 = vmul.f32 %v4759, %v4799
  %v4808 = vmul.f32 %v4760, %v4800
  %v4809 = vmul.f32 %v4761, %v4801
  %v4810 = vmul.f32 %v4762, %v4802
  %v4811 = vmul.f32 %v4763, %v4803
  %v4812 = vmul.f32 %v4764, %v4804
  %v4813 = vmul.f32 %v4765, %v4805
  %4815 = vset.pattern.permute.xlu0 0
  %4816 = vperm.xlu0 %4815, %v2754
  %v4817 = vpop.permute.xlu0 %4816
  %4820 = vset.pattern.permute.xlu0 0
  %4821 = vperm.xlu0 %4820, %v2755
  %v4822 = vpop.permute.xlu0 %4821
  %v4824 = vmul.f32 %v4817, %v4778
  %v4825 = vmul.f32 %v4822, %v4779
  %v4826 = vadd.f32 %v580, %v4824
  %v4827 = vadd.f32 %v585, %v4825
  %4829 = vset.pattern.permute.xlu0 0
  %4830 = vperm.xlu0 %4829, %v4826
  %v4831 = vpop.permute.xlu0 %4830
  %4834 = vset.pattern.permute.xlu0 0
  %4835 = vperm.xlu0 %4834, %v4827
  %v4836 = vpop.permute.xlu0 %4835
  %4838 = vset.pattern.permute.xlu0 1
  %4839 = vperm.xlu0 %4838, %v4826
  %v4840 = vpop.permute.xlu0 %4839
  %4842 = vset.pattern.permute.xlu0 1
  %4843 = vperm.xlu0 %4842, %v4827
  %v4844 = vpop.permute.xlu0 %4843
  %v4846 = vsel %vm814, %v4840, %v4831
  %v4847 = vsel %vm815, %v4840, %v4831
  %v4848 = vsel %vm816, %v4840, %v4831
  %v4849 = vsel %vm817, %v4840, %v4831
  %v4850 = vsel %vm814, %v4844, %v4836
  %v4851 = vsel %vm815, %v4844, %v4836
  %v4852 = vsel %vm816, %v4844, %v4836
  %v4853 = vsel %vm817, %v4844, %v4836
  %v4854 = vadd.f32 %v4806, %v4846
  %v4855 = vadd.f32 %v4807, %v4847
  %v4856 = vadd.f32 %v4808, %v4848
  %v4857 = vadd.f32 %v4809, %v4849
  %v4858 = vadd.f32 %v4810, %v4850
  %v4859 = vadd.f32 %v4811, %v4851
  %v4860 = vadd.f32 %v4812, %v4852
  %v4861 = vadd.f32 %v4813, %v4853
  %v4862 = vadd.f32 %v4854, %v2931
  %v4863 = vadd.f32 %v4855, %v2932
  %v4864 = vadd.f32 %v4856, %v2933
  %v4865 = vadd.f32 %v4857, %v2934
  %v4866 = vadd.f32 %v4858, %v2935
  %v4867 = vadd.f32 %v4859, %v2936
  %v4868 = vadd.f32 %v4860, %v2937
  %v4869 = vadd.f32 %v4861, %v2938
  %v4870 = vmax.f32 %v4862, 0.0
  %v4871 = vmax.f32 %v4863, 0.0
  %v4872 = vmax.f32 %v4864, 0.0
  %v4873 = vmax.f32 %v4865, 0.0
  %v4874 = vmax.f32 %v4866, 0.0
  %v4875 = vmax.f32 %v4867, 0.0
  %v4876 = vmax.f32 %v4868, 0.0
  %v4877 = vmax.f32 %v4869, 0.0
  %vm4878 = vmand %vm66, %vm54
  %vm4879 = vmand %vm67, %vm55
  %vm4880 = vmand %vm68, %vm56
  %vm4881 = vmand %vm69, %vm57
  %v4882 = vsel %vm4878, 1, 0
  %v4883 = vsel %vm4879, 1, 0
  %v4884 = vsel %vm4880, 1, 0
  %v4885 = vsel %vm4881, 1, 0
  %vm4886 = vcmp.eq.s32.totalorder %v4882, 1
  %vm4887 = vcmp.eq.s32.totalorder %v4883, 1
  %vm4888 = vcmp.eq.s32.totalorder %v4884, 1
  %vm4889 = vcmp.eq.s32.totalorder %v4885, 1
  %v4890 = vsel %vm4886, %v4870, -inf
  %v4891 = vsel %vm4887, %v4871, -inf
  %v4892 = vsel %vm4888, %v4872, -inf
  %v4893 = vsel %vm4889, %v4873, -inf
  %v4894 = vsel %vm4886, %v4874, -inf
  %v4895 = vsel %vm4887, %v4875, -inf
  %v4896 = vsel %vm4888, %v4876, -inf
  %v4897 = vsel %vm4889, %v4877, -inf
  %v4898 = vmax.f32 %v4890, %v4892
  %v4899 = vmax.f32 %v4891, %v4893
  %v4900 = vmax.f32 %v4898, %v4899
  %4901 = vmax.xlane.f32.xlu0 %v4900
  %v4902 = vpop.xlane.xlu0 %4901
  %v4903 = vmax.f32 %v4894, %v4896
  %v4904 = vmax.f32 %v4895, %v4897
  %v4905 = vmax.f32 %v4903, %v4904
  %4906 = vmax.xlane.f32.xlu0 %v4905
  %v4907 = vpop.xlane.xlu0 %4906
  %vm4908 = vmand %vm78, %vm54
  %vm4909 = vmand %vm79, %vm55
  %vm4910 = vmand %vm80, %vm56
  %vm4911 = vmand %vm81, %vm57
  %v4912 = vsel %vm4908, 1, 0
  %v4913 = vsel %vm4909, 1, 0
  %v4914 = vsel %vm4910, 1, 0
  %v4915 = vsel %vm4911, 1, 0
  %vm4916 = vcmp.eq.s32.totalorder %v4912, 1
  %vm4917 = vcmp.eq.s32.totalorder %v4913, 1
  %vm4918 = vcmp.eq.s32.totalorder %v4914, 1
  %vm4919 = vcmp.eq.s32.totalorder %v4915, 1
  %v4920 = vsel %vm4916, %v4870, -inf
  %v4921 = vsel %vm4917, %v4871, -inf
  %v4922 = vsel %vm4918, %v4872, -inf
  %v4923 = vsel %vm4919, %v4873, -inf
  %v4924 = vsel %vm4916, %v4874, -inf
  %v4925 = vsel %vm4917, %v4875, -inf
  %v4926 = vsel %vm4918, %v4876, -inf
  %v4927 = vsel %vm4919, %v4877, -inf
  %v4928 = vmax.f32 %v4920, %v4922
  %v4929 = vmax.f32 %v4921, %v4923
  %v4930 = vmax.f32 %v4928, %v4929
  %4931 = vmax.xlane.f32.xlu0 %v4930
  %v4932 = vpop.xlane.xlu0 %4931
  %v4933 = vmax.f32 %v4924, %v4926
  %v4934 = vmax.f32 %v4925, %v4927
  %v4935 = vmax.f32 %v4933, %v4934
  %4936 = vmax.xlane.f32.xlu0 %v4935
  %v4937 = vpop.xlane.xlu0 %4936
  %vm4938 = vcmask 7168
  %v4939 = vsel %vm4938, %v4902, %v4932
  %v4940 = vsel %vm4938, %v4907, %v4937
  %v4941 = vld [vmem:[%s7] sm:$0xff]
  %v4942 = vld [vmem:[%s7 + $0x8] sm:$0xff]
  %v4943 = vld [vmem:[%s7 + $0x10] sm:$0xff]
  %v4944 = vld [vmem:[%s7 + $0x18] sm:$0xff]
  %v4945 = vld [vmem:[%s7 + $0x20] sm:$0xff]
  %v4946 = vld [vmem:[%s7 + $0x28] sm:$0xff]
  %v4947 = vld [vmem:[%s7 + $0x30] sm:$0xff]
  %v4948 = vld [vmem:[%s7 + $0x38] sm:$0xff]
  %v4949 = vld [vmem:[%s2 + $0xc0] sm:$0xff]
  %v4950 = vld [vmem:[%s2 + $0xc8] sm:$0xff]
  %v4951 = vld [vmem:[%s2 + $0xd0] sm:$0xff]
  %v4952 = vld [vmem:[%s2 + $0xd8] sm:$0xff]
  %v4953 = vld [vmem:[%s2 + $0xe0] sm:$0xff]
  %v4954 = vld [vmem:[%s2 + $0xe8] sm:$0xff]
  %v4955 = vld [vmem:[%s2 + $0xf0] sm:$0xff]
  %v4956 = vld [vmem:[%s2 + $0xf8] sm:$0xff]
  %4958 = vset.pattern.permute.xlu0 0
  %4959 = vperm.xlu0 %4958, %v4949
  %v4960 = vpop.permute.xlu0 %4959
  %4963 = vset.pattern.permute.xlu0 0
  %4964 = vperm.xlu0 %4963, %v4950
  %v4965 = vpop.permute.xlu0 %4964
  %4968 = vset.pattern.permute.xlu0 0
  %4969 = vperm.xlu0 %4968, %v4951
  %v4970 = vpop.permute.xlu0 %4969
  %4973 = vset.pattern.permute.xlu0 0
  %4974 = vperm.xlu0 %4973, %v4952
  %v4975 = vpop.permute.xlu0 %4974
  %4978 = vset.pattern.permute.xlu0 0
  %4979 = vperm.xlu0 %4978, %v4953
  %v4980 = vpop.permute.xlu0 %4979
  %4983 = vset.pattern.permute.xlu0 0
  %4984 = vperm.xlu0 %4983, %v4954
  %v4985 = vpop.permute.xlu0 %4984
  %4988 = vset.pattern.permute.xlu0 0
  %4989 = vperm.xlu0 %4988, %v4955
  %v4990 = vpop.permute.xlu0 %4989
  %4993 = vset.pattern.permute.xlu0 0
  %4994 = vperm.xlu0 %4993, %v4956
  %v4995 = vpop.permute.xlu0 %4994
  %vm4997 = vcmask 392192
  %v4999 = vsel %vm4997, %v4941, 0
  %v5002 = vsel %vm4997, %v4942, 0
  %v5005 = vsel %vm4997, %v4943, 0
  %v5008 = vsel %vm4997, %v4944, 0
  %v5011 = vsel %vm4997, %v4945, 0
  %v5014 = vsel %vm4997, %v4946, 0
  %v5017 = vsel %vm4997, %v4947, 0
  %v5020 = vsel %vm4997, %v4948, 0
  %5022 = vmatprep.subr.mxu0 0.0
  %5023 = vmatpush1.msra.mxu0 %v4939
  %5024 = vmatprep.subr.mxu0 0.0
  %5025 = vmatpush1.msra.mxu0 %v4940
  %5026 = vmatprep.subr.mxu0 0.0
  %5027 = vmatpush1.msra.mxu0 %v86
  %5028 = vmatprep.subr.mxu0 0.0
  %5029 = vmatpush1.msra.mxu0 %v87
  %5030 = vmatprep.subr.mxu0 0.0
  %5031 = vmatpush1.msra.mxu0 %v82
  %5032 = vmatprep.subr.mxu0 0.0
  %5033 = vmatpush1.msra.mxu0 %v83
  %5034 = vmatprep.subr.mxu0 0.0
  %5035 = vmatpush1.msra.mxu0 0.0
  %5036 = vmatprep.subr.mxu0 0.0
  %5037 = vmatpush1.msra.mxu0 0.0
  %5038 = vmatprep.subr.mxu0 0.0
  %5039 = vmatpush1.msra.mxu0 0.0
  %5040 = vmatprep.subr.mxu0 0.0
  %5041 = vmatpush1.msra.mxu0 0.0
  %5042 = vmatprep.subr.mxu0 0.0
  %5043 = vmatpush1.msra.mxu0 0.0
  %5044 = vmatprep.subr.mxu0 0.0
  %5045 = vmatpush1.msra.mxu0 0.0
  %5046 = vmatprep.subr.mxu0 0.0
  %5047 = vmatpush1.msra.mxu0 0.0
  %5048 = vmatprep.subr.mxu0 0.0
  %5049 = vmatpush1.msra.mxu0 0.0
  %5050 = vmatprep.subr.mxu0 0.0
  %5051 = vmatpush1.msra.mxu0 0.0
  %5052 = vmatprep.subr.mxu0 0.0
  %5053 = vmatpush1.msra.mxu0 0.0
  %5054 = vmatprep.subr.mxu0 0.0
  %5055 = vmatpush1.msra.mxu0 0.0
  %5056 = vmatprep.subr.mxu0 0.0
  %5057 = vmatpush1.msra.mxu0 0.0
  %5058 = vmatprep.subr.mxu0 0.0
  %5059 = vmatpush1.msra.mxu0 0.0
  %5060 = vmatprep.subr.mxu0 0.0
  %5061 = vmatpush1.msra.mxu0 0.0
  %5062 = vmatprep.subr.mxu0 0.0
  %5063 = vmatpush1.msra.mxu0 0.0
  %5064 = vmatprep.subr.mxu0 0.0
  %5065 = vmatpush1.msra.mxu0 0.0
  %5066 = vmatprep.subr.mxu0 0.0
  %5067 = vmatpush1.msra.mxu0 0.0
  %5068 = vmatprep.subr.mxu0 0.0
  %5069 = vmatpush1.msra.mxu0 0.0
  %5070 = vmatprep.subr.mxu0 0.0
  %5071 = vmatpush1.msra.mxu0 0.0
  %5072 = vmatprep.subr.mxu0 0.0
  %5073 = vmatpush1.msra.mxu0 0.0
  %5074 = vmatprep.subr.mxu0 0.0
  %5075 = vmatpush1.msra.mxu0 0.0
  %5076 = vmatprep.subr.mxu0 0.0
  %5077 = vmatpush1.msra.mxu0 0.0
  %5078 = vmatprep.subr.mxu0 0.0
  %5079 = vmatpush1.msra.mxu0 0.0
  %5080 = vmatprep.subr.mxu0 0.0
  %5081 = vmatpush1.msra.mxu0 0.0
  %5082 = vmatprep.subr.mxu0 0.0
  %5083 = vmatpush1.msra.mxu0 0.0
  %5084 = vmatprep.subr.mxu0 0.0
  %5085 = vmatpush1.msra.mxu0 0.0
  %5086 = vmatprep.mubr.f32.mxu0 0.0
  %5087 = vmatmul.mubr.f32.gmra.mrb[0].mxu0 %v4999
  %v5088 = vpop.f32.mrb[0].mxu0
  %v5089 = vadd.f32 %v4960, %v5088
  %v5090 = vpop.f32.mrb[0].mxu0
  %5091 = vmatprep.mubr.f32.mxu0 0.0
  %5092 = vmatmul.mubr.f32.gmra.mrb[0].mxu0 %v5002
  %v5093 = vpop.f32.mrb[0].mxu0
  %v5094 = vadd.f32 %v4965, %v5093
  %v5095 = vpop.f32.mrb[0].mxu0
  %5096 = vmatprep.mubr.f32.mxu0 0.0
  %5097 = vmatmul.mubr.f32.gmra.mrb[0].mxu0 %v5005
  %v5098 = vpop.f32.mrb[0].mxu0
  %v5099 = vadd.f32 %v4970, %v5098
  %v5100 = vpop.f32.mrb[0].mxu0
  %5101 = vmatprep.mubr.f32.mxu0 0.0
  %5102 = vmatmul.mubr.f32.gmra.mrb[0].mxu0 %v5008
  %v5103 = vpop.f32.mrb[0].mxu0
  %v5104 = vadd.f32 %v4975, %v5103
  %v5105 = vpop.f32.mrb[0].mxu0
  %5106 = vmatprep.mubr.f32.mxu0 0.0
  %5107 = vmatmul.mubr.f32.gmra.mrb[0].mxu0 %v5011
  %v5108 = vpop.f32.mrb[0].mxu0
  %v5109 = vadd.f32 %v4980, %v5108
  %v5110 = vpop.f32.mrb[0].mxu0
  %5111 = vmatprep.mubr.f32.mxu0 0.0
  %5112 = vmatmul.mubr.f32.gmra.mrb[0].mxu0 %v5014
  %v5113 = vpop.f32.mrb[0].mxu0
  %v5114 = vadd.f32 %v4985, %v5113
  %v5115 = vpop.f32.mrb[0].mxu0
  %5116 = vmatprep.mubr.f32.mxu0 0.0
  %5117 = vmatmul.mubr.f32.gmra.mrb[0].mxu0 %v5017
  %v5118 = vpop.f32.mrb[0].mxu0
  %v5119 = vadd.f32 %v4990, %v5118
  %v5120 = vpop.f32.mrb[0].mxu0
  %5121 = vmatprep.mubr.f32.mxu0 0.0
  %5122 = vmatmul.mubr.f32.gmra.mrb[0].mxu0 %v5020
  %v5123 = vpop.f32.mrb[0].mxu0
  %v5124 = vadd.f32 %v4995, %v5123
  %v5125 = vpop.f32.mrb[0].mxu0
  %5126 = vdwg.mxu0
  %v5127 = vxor.u32 %v5089, 2147483648
  %v5128 = vxor.u32 %v5094, 2147483648
  %v5129 = vxor.u32 %v5099, 2147483648
  %v5130 = vxor.u32 %v5104, 2147483648
  %v5131 = vxor.u32 %v5109, 2147483648
  %v5132 = vxor.u32 %v5114, 2147483648
  %v5133 = vmul.f32 %v5127, 1.442695
  %v5134 = vpow.pop %v5133
  %v5135 = vmul.f32 %v5128, 1.442695
  %v5136 = vpow.pop %v5135
  %v5137 = vmul.f32 %v5129, 1.442695
  %v5138 = vpow.pop %v5137
  %v5139 = vmul.f32 %v5130, 1.442695
  %v5140 = vpow.pop %v5139
  %v5141 = vmul.f32 %v5131, 1.442695
  %v5142 = vpow.pop %v5141
  %v5143 = vmul.f32 %v5132, 1.442695
  %v5144 = vpow.pop %v5143
  %v5145 = vadd.f32 %v5134, 1.0
  %v5146 = vadd.f32 %v5136, 1.0
  %v5147 = vadd.f32 %v5138, 1.0
  %v5148 = vadd.f32 %v5140, 1.0
  %v5149 = vadd.f32 %v5142, 1.0
  %v5150 = vadd.f32 %v5144, 1.0
  %v5151 = vrcp.pop %v5145
  %v5152 = vmul.f32 1.0, %v5151
  %v5153 = vrcp.pop %v5146
  %v5154 = vmul.f32 1.0, %v5153
  %v5155 = vrcp.pop %v5147
  %v5156 = vmul.f32 1.0, %v5155
  %v5157 = vrcp.pop %v5148
  %v5158 = vmul.f32 1.0, %v5157
  %v5159 = vrcp.pop %v5149
  %v5160 = vmul.f32 1.0, %v5159
  %v5161 = vrcp.pop %v5150
  %v5162 = vmul.f32 1.0, %v5161
  %v5163 = vmul.f32 %v5160, %v84
  %v5164 = vmul.f32 %v5162, %v85
  %v5165 = vmul.f32 %v5152, %v5119
  %v5166 = vmul.f32 %v5154, %v5124
  %v5167 = vadd.f32 %v5163, %v5165
  %v5168 = vadd.f32 %v5164, %v5166
  %v5169 = vtanh.pop %v5167
  %v5170 = vtanh.pop %v5168
  %v5171 = vmul.f32 %v5156, %v5169
  %v5172 = vmul.f32 %v5158, %v5170
  %vm5173 = vcmask 15360
  %5174 = vst.msk [vmem:[%s8] sm:$0xff] %vm5173, %v5171
  %5175 = vst.msk [vmem:[%s8 + $0x8] sm:$0xff] %vm5173, %v5172
  %5176 = vst.msk [vmem:[%s8 + $0x10] sm:$0xff] %vm5173, %v5167
  %5177 = vst.msk [vmem:[%s8 + $0x18] sm:$0xff] %vm5173, %v5168
  // Predicated region
  $region34: #{rescore_forward.1} parent=0 // pred_check
    _
  $region35: #{rescore_forward.1} parent=0 // pred_check_branch
    %5179 = sbr.rel (0) target = $region37
  $region36: #{rescore_forward.1} parent=0 // pred_region
    _
  $region37: #{rescore_forward.1} parent=0 // pred_fallthru
    _
  // Predicated region
  $region38: #{rescore_forward.1} parent=0 // pred_check
    _
  $region39: #{rescore_forward.1} parent=0 // pred_check_branch
    %5181 = sbr.rel (0) target = $region41
  $region40: #{rescore_forward.1} parent=0 // pred_region
    _
  $region41: #{rescore_forward.1} parent=0 // pred_fallthru
    _

</llo_original>
